<compile_context>
chip_gen: v6e
topology: v6e:2x2x1
jax: 0.10.0
libtpu: 0.0.40
codegen_flags: <defaults>
</compile_context>

<pallas_src>
import numpy as np
import jax
import jax.numpy as jnp
from jax.experimental import pallas as pl
from jax.experimental.pallas import tpu as pltpu


# ---------------------------------------------------------------------------
# Fused kernel
# ---------------------------------------------------------------------------
def net_kernel(x1_ref, t1_ref, b1_ref, t2_ref, b2_ref,
               wf1_ref, bf1_ref, wf2_ref, bf2_ref, o_ref, y1_ref):
    """One batch tile (TB samples); all intermediates stay in VMEM.

    x1_ref : (6, TB, 256) bf16  height-im2col input: slab m, lane s*28+j = x[4m+s, j]
    t1_ref : (256, 1024)  bf16  conv1 banded weights; col = h*512+qi*256+qj*128+j1*10+c1
    b1_ref : (1, 128)     f32   conv1 bias over lanes j1*10+c1 (0 in pad lanes)
    t2_ref : (3, 256, 512) bf16 conv2 paired banded weights; row = h'*128+wj*10+c1,
                                col = qi2*256+qj2*128+pj*20+c2
    b2_ref : (1, 128)     f32   conv2 bias over lanes pj*20+c2
    wf1_ref: (512, 256)   bf16  fc1 weights; row = pi*128+pj*20+c2, col = hidden (150+pad)
    bf1_ref: (1, 256)     f32   fc1 bias (150 real + 106 zeros)
    wf2_ref: (256, 128)   bf16  fc2 weights: 10 real class columns + 118 zero columns
    bf2_ref: (1, 128)     f32   fc2 bias; pad classes get -1e30 so log_softmax ignores them
    o_ref  : (TB, 128)    f32   log-probs (first 10 lanes valid)
    y1_ref : (6, TB, 256) bf16  VMEM scratch: conv1+pool+relu output, slab m holds
                                pooled rows 2m (lanes 0..127) and 2m+1 (lanes 128..255)
    """
    TB = x1_ref.shape[1]

    # ---- conv1 (1->10, k=5) + 2x2 max-pool + bias + ReLU: ONE bf16 dot ------
    xs = x1_ref[...].reshape(6 * TB, 256)                       # tile-aligned merge
    acc = jnp.dot(xs, t1_ref[...], preferred_element_type=jnp.float32)  # (6TB,1024) f32
    # max over the four (pool-height, pool-width) 128-lane sections of each half
    p0 = jnp.maximum(jnp.maximum(acc[:, 0:128], acc[:, 128:256]),
                     jnp.maximum(acc[:, 256:384], acc[:, 384:512]))
    p1 = jnp.maximum(jnp.maximum(acc[:, 512:640], acc[:, 640:768]),
                     jnp.maximum(acc[:, 768:896], acc[:, 896:1024]))
    b1 = b1_ref[...]
    # max_pool(conv + b) == max_pool(conv) + b  (bias constant per channel)
    y1 = jnp.concatenate([jnp.maximum(p0 + b1, 0.0),
                          jnp.maximum(p1 + b1, 0.0)], axis=-1)  # (6TB, 256) f32
    y1_ref[...] = y1.reshape(6, TB, 256).astype(jnp.bfloat16)

    # ---- conv2 (10->20, k=5) + 2x2 max-pool + bias + ReLU -------------------
    # For pooled row pi: three K=256 dots, LHS = contiguous bf16 slab y1_ref[pi+u].
    y2_slabs = []
    for pi in range(4):
        acc2 = jnp.dot(y1_ref[pi], t2_ref[0], preferred_element_type=jnp.float32)
        for u in range(1, 3):
            acc2 = acc2 + jnp.dot(y1_ref[pi + u], t2_ref[u],
                                  preferred_element_type=jnp.float32)
        p2 = jnp.maximum(jnp.maximum(acc2[:, 0:128], acc2[:, 128:256]),
                         jnp.maximum(acc2[:, 256:384], acc2[:, 384:512]))
        y2_slabs.append(jnp.maximum(p2 + b2_ref[...], 0.0).astype(jnp.bfloat16))
    y2 = jnp.concatenate(y2_slabs, axis=-1)                     # (TB, 512) bf16

    # ---- fc1 (one K=512 dot) + ReLU -> (dropout: identity) -> fc2 -> log_softmax
    # TODO(synk): F.dropout / nn.Dropout2d are stochastic train-time ops; identity in eval.
    h = jnp.maximum(jnp.dot(y2, wf1_ref[...], preferred_element_type=jnp.float32)
                    + bf1_ref[...], 0.0)                        # (TB, 256) f32
    logits = jnp.dot(h.astype(jnp.bfloat16), wf2_ref[...],
                     preferred_element_type=jnp.float32) + bf2_ref[...]  # (TB, 128)
    m = jnp.max(logits, axis=-1, keepdims=True)
    lse = jnp.log(jnp.sum(jnp.exp(logits - m), axis=-1, keepdims=True)) + m
    o_ref[...] = (logits - lse).astype(o_ref.dtype)


# ---------------------------------------------------------------------------
# Weight re-layout (host-side, once per parameter set)
# ---------------------------------------------------------------------------
def _conv1_table(conv1_w):
    """(256, 1024) bf16: t1[s*28+j, h*512+qi*256+qj*128+j1*10+c1] = w1[c1, s-2h-qi, j-2j1-qj]."""
    k = np.arange(256)[:, None]
    c = np.arange(1024)[None, :]
    s, j_in = k // 28, k % 28
    h = c // 512
    rem512 = c % 512
    qi, qj = rem512 // 256, (rem512 // 128) % 2
    rem = rem512 % 128
    j1, c1 = rem // 10, rem % 10
    di = s - 2 * h - qi
    dj = j_in - (2 * j1 + qj)
    valid = (k < 224) & (rem < 120) & (di >= 0) & (di <= 4) & (dj >= 0) & (dj <= 4)
    widx = c1 * 25 + np.clip(di, 0, 4) * 5 + np.clip(dj, 0, 4)
    w = np.asarray(conv1_w).reshape(-1)                        # flat c1*25+di*5+dj
    return jnp.asarray(np.where(valid, w[widx], 0.0), dtype=jnp.bfloat16)


def _conv2_table(conv2_w):
    """(3, 256, 512) bf16: t2[u, h'*128+wj*10+c1, qi2*256+qj2*128+pj*20+c2]
       = w2[c2, c1, 2u+h'-qi2, wj-2pj-qj2]."""
    u = np.arange(3)[:, None, None]
    k = np.arange(256)[None, :, None]
    col = np.arange(512)[None, None, :]
    hp, krem = k // 128, k % 128
    wj, c1 = krem // 10, krem % 10
    qi2, qj2 = col // 256, (col // 128) % 2
    rem = col % 128
    pj, c2 = rem // 20, rem % 20
    di = 2 * u + hp - qi2
    dj = wj - (2 * pj + qj2)
    valid = (krem < 120) & (rem < 80) & (di >= 0) & (di <= 4) & (dj >= 0) & (dj <= 4)
    widx = ((c2 * 10 + c1) * 5 + np.clip(di, 0, 4)) * 5 + np.clip(dj, 0, 4)
    w = np.asarray(conv2_w).reshape(-1)                        # flat ((c2*10+c1)*5+di)*5+dj
    return jnp.asarray(np.where(valid, w[widx], 0.0), dtype=jnp.bfloat16)


def _fc1_table(fc1_w):
    """(512, 256) bf16: wf1[pi*128+pj*20+c2, h] = fc1_w[h, c2*16+pi*4+pj] (CHW flatten)."""
    r = np.arange(512)
    pi, rem = r // 128, r % 128
    pj, c2 = rem // 20, rem % 20
    valid = rem < 80
    idx = np.where(valid, c2 * 16 + pi * 4 + pj, 0)            # [512] into 320
    w = np.asarray(fc1_w)                                      # (150, 320)
    tab = w[:, idx].T * valid[:, None]                         # (512, 150)
    tab = np.pad(tab, ((0, 0), (0, 106)))
    return jnp.asarray(tab, dtype=jnp.bfloat16)


def pack_params(p):
    """One-time re-layout into MXU-friendly packed tables (call outside jit)."""
    return dict(
        t1=_conv1_table(p["conv1_w"]),
        b1=jnp.asarray(np.pad(np.tile(np.asarray(p["conv1_b"]), 12), (0, 8))
                       .reshape(1, 128).astype(np.float32)),
        t2=_conv2_table(p["conv2_w"]),
        b2=jnp.asarray(np.pad(np.tile(np.asarray(p["conv2_b"]), 4), (0, 48))
                       .reshape(1, 128).astype(np.float32)),
        wf1=_fc1_table(p["fc1_w"]),
        bf1=jnp.asarray(np.pad(np.asarray(p["fc1_b"]), (0, 106))
                        .reshape(1, 256).astype(np.float32)),
        wf2=jnp.asarray(np.pad(np.asarray(p["fc2_w"]).T, ((0, 106), (0, 118)))
                        .astype(np.float32)).astype(jnp.bfloat16),
        bf2=jnp.asarray(np.concatenate([np.asarray(p["fc2_b"], np.float32),
                                        np.full((118,), -1e30, np.float32)])
                        .reshape(1, 128)),
    )


# ---------------------------------------------------------------------------
# Forward pass
# ---------------------------------------------------------------------------
def _round8(n):
    return 8 * ((n + 7) // 8)


def _pick_tb(batch):
    try:
        kind = jax.devices()[0].device_kind.lower()
    except Exception:
        kind = ""
    tb = min(128, _round8(batch))
    # v7x has 2 TensorCores: make sure the "parallel" batch axis has >= 2 steps.
    if "v7" in kind and batch > 8 and (batch + tb - 1) // tb < 2:
        tb = max(8, _round8((batch + 1) // 2))
    return tb


def net_forward(x_nchw, w):
    B = x_nchw.shape[0]
    TB = _pick_tb(B)
    Bpad = TB * ((B + TB - 1) // TB)

    # Height-only im2col in bf16: slab m holds input rows 4m..4m+7
    # (8*28 = 224 lanes, zero-padded to 256); batch zero-padded to TB multiple.
    xb = jnp.pad(x_nchw[:, 0], ((0, Bpad - B), (0, 0), (0, 0)))       # (Bpad, 28, 28)
    xr = xb.reshape(Bpad, 28 * 28)
    x1 = jnp.stack([xr[:, 112 * m: 112 * m + 224] for m in range(6)], axis=0)
    x1 = jnp.pad(x1, ((0, 0), (0, 0), (0, 32))).astype(jnp.bfloat16)  # (6, Bpad, 256)

    out = pl.pallas_call(
        net_kernel,
        out_shape=jax.ShapeDtypeStruct((Bpad, 128), jnp.float32),
        grid=(Bpad // TB,),
        in_specs=[
            pl.BlockSpec((6, TB, 256), lambda i: (0, i, 0)),
            # Weight/bias specs have constant index maps -> no re-DMA across steps.
            pl.BlockSpec((256, 1024), lambda i: (0, 0)),
            pl.BlockSpec((1, 128), lambda i: (0, 0)),
            pl.BlockSpec((3, 256, 512), lambda i: (0, 0, 0)),
            pl.BlockSpec((1, 128), lambda i: (0, 0)),
            pl.BlockSpec((512, 256), lambda i: (0, 0)),
            pl.BlockSpec((1, 256), lambda i: (0, 0)),
            pl.BlockSpec((256, 128), lambda i: (0, 0)),
            pl.BlockSpec((1, 128), lambda i: (0, 0)),
        ],
        out_specs=pl.BlockSpec((TB, 128), lambda i: (i, 0)),
        scratch_shapes=[pltpu.VMEM((6, TB, 256), jnp.bfloat16)],
        compiler_params=pltpu.CompilerParams(
            dimension_semantics=("parallel",),
            vmem_limit_bytes=32 * 1024 * 1024),
    )(x1, w["t1"], w["b1"], w["t2"], w["b2"],
      w["wf1"], w["bf1"], w["wf2"], w["bf2"])

    return out[:B, :10]


# ---------------------------------------------------------------------------
# Pure-JAX reference + params
# ---------------------------------------------------------------------------
def reference_forward(x, p):
    """Pure-JAX f32 reference for correctness checking."""
    dn = ("NCHW", "OIHW", "NCHW")
    y = jax.lax.conv_general_dilated(x, p["conv1_w"], (1, 1), "VALID",
                                     dimension_numbers=dn)
    y = y + p["conv1_b"][None, :, None, None]
    y = jax.lax.reduce_window(y, -jnp.inf, jax.lax.max,
                              (1, 1, 2, 2), (1, 1, 2, 2), "VALID")
    y = jnp.maximum(y, 0.0)
    y = jax.lax.conv_general_dilated(y, p["conv2_w"], (1, 1), "VALID",
                                     dimension_numbers=dn)
    y = y + p["conv2_b"][None, :, None, None]
    # adaptive_max_pool2d(., 4) on the 8x8 conv2 output == 2x2/stride-2 max-pool
    y = jax.lax.reduce_window(y, -jnp.inf, jax.lax.max,
                              (1, 1, 2, 2), (1, 1, 2, 2), "VALID")
    y = jnp.maximum(y, 0.0)
    y = y.reshape(x.shape[0], 320)
    y = jnp.maximum(y @ p["fc1_w"].T + p["fc1_b"], 0.0)
    y = y @ p["fc2_w"].T + p["fc2_b"]
    return jax.nn.log_softmax(y, axis=-1)


def init_params(key):
    ks = jax.random.split(key, 8)
    return dict(
        conv1_w=0.1 * jax.random.normal(ks[0], (10, 1, 5, 5), jnp.float32),
        conv1_b=0.1 * jax.random.normal(ks[1], (10,), jnp.float32),
        conv2_w=0.1 * jax.random.normal(ks[2], (20, 10, 5, 5), jnp.float32),
        conv2_b=0.1 * jax.random.normal(ks[3], (20,), jnp.float32),
        fc1_w=0.05 * jax.random.normal(ks[4], (150, 320), jnp.float32),
        fc1_b=0.05 * jax.random.normal(ks[5], (150,), jnp.float32),
        fc2_w=0.05 * jax.random.normal(ks[6], (10, 150), jnp.float32),
        fc2_b=0.05 * jax.random.normal(ks[7], (10,), jnp.float32),
    )


if __name__ == "__main__":
    key = jax.random.PRNGKey(0)
    k_x, k_p = jax.random.split(key)
    B = 2
    x = jax.random.normal(k_x, (B, 1, 28, 28), jnp.float32)   # NCHW, MNIST-shaped
    params = init_params(k_p)
    packed = pack_params(params)                               # once per param set

    out = jax.block_until_ready(jax.jit(net_forward)(x, packed))
    ref = jax.block_until_ready(reference_forward(x, params))

    assert out.shape == (B, 10), out.shape
    # bf16 weights/activations on all dots (f32 accumulation) -> loose tolerance vs f32 ref
    assert jnp.allclose(out, ref, atol=5e-2, rtol=5e-2), (out, ref)
    # log_softmax rows should sum (in prob space) to ~1
    assert jnp.allclose(jnp.sum(jnp.exp(out), axis=-1), 1.0, atol=1e-3)

    print("KERNEL_OK")
</pallas_src>

<mosaic_0001>
module attributes {stable_mosaic.version = 11 : i64} {
  func.func @net_kernel(%arg0: i32, %arg1: memref<6x8x256xbf16, #tpu.memory_space<vmem>>, %arg2: memref<256x1024xbf16, #tpu.memory_space<vmem>>, %arg3: memref<1x128xf32, #tpu.memory_space<vmem>>, %arg4: memref<3x256x512xbf16, #tpu.memory_space<vmem>>, %arg5: memref<1x128xf32, #tpu.memory_space<vmem>>, %arg6: memref<512x256xbf16, #tpu.memory_space<vmem>>, %arg7: memref<1x256xf32, #tpu.memory_space<vmem>>, %arg8: memref<256x128xbf16, #tpu.memory_space<vmem>>, %arg9: memref<1x128xf32, #tpu.memory_space<vmem>>, %arg10: memref<8x128xf32, #tpu.memory_space<vmem>>, %arg11: memref<6x8x256xbf16, #tpu.memory_space<vmem>>) attributes {dimension_semantics = [#tpu.dimension_semantics<parallel>], iteration_bounds = array<i64: 1>, scalar_prefetch = 0 : i64, scratch_operands = 1 : i64, tpu.core_type = #tpu.core_type<tc>, window_params = [{transform_indices = @transform_0, window_bounds = array<i64: 6, 8, 256>}, {pipeline_mode = #tpu.pipeline_mode<synchronous>, transform_indices = @transform_1, window_bounds = array<i64: 256, 1024>}, {pipeline_mode = #tpu.pipeline_mode<synchronous>, transform_indices = @transform_2, window_bounds = array<i64: 1, 128>}, {pipeline_mode = #tpu.pipeline_mode<synchronous>, transform_indices = @transform_3, window_bounds = array<i64: 3, 256, 512>}, {pipeline_mode = #tpu.pipeline_mode<synchronous>, transform_indices = @transform_4, window_bounds = array<i64: 1, 128>}, {pipeline_mode = #tpu.pipeline_mode<synchronous>, transform_indices = @transform_5, window_bounds = array<i64: 512, 256>}, {pipeline_mode = #tpu.pipeline_mode<synchronous>, transform_indices = @transform_6, window_bounds = array<i64: 1, 256>}, {pipeline_mode = #tpu.pipeline_mode<synchronous>, transform_indices = @transform_7, window_bounds = array<i64: 256, 128>}, {pipeline_mode = #tpu.pipeline_mode<synchronous>, transform_indices = @transform_8, window_bounds = array<i64: 1, 128>}, {transform_indices = @transform_9, window_bounds = array<i64: 8, 128>}]} {
    %c0 = arith.constant 0 : index
    %c0_0 = arith.constant 0 : index
    %c0_1 = arith.constant 0 : index
    %0 = vector.load %arg1[%c0, %c0_0, %c0_1] : memref<6x8x256xbf16, #tpu.memory_space<vmem>>, vector<6x8x256xbf16>
    %1 = vector.shape_cast %0 : vector<6x8x256xbf16> to vector<48x256xbf16>
    %c0_2 = arith.constant 0 : index
    %c0_3 = arith.constant 0 : index
    %2 = vector.load %arg2[%c0_2, %c0_3] : memref<256x1024xbf16, #tpu.memory_space<vmem>>, vector<256x1024xbf16>
    %cst = arith.constant dense<0.000000e+00> : vector<48x1024xf32>
    %3 = tpu.matmul %1, %2, %cst {dimension_numbers = #tpu.dot_dimension_numbers<[1], [0], [0], [1], [0, 0, 1, 1], [], []>} : vector<48x256xbf16>, vector<256x1024xbf16>, vector<48x1024xf32> -> vector<48x1024xf32>
    %4 = vector.extract_strided_slice %3 {offsets = [0, 0], sizes = [48, 128], strides = [1, 1]} : vector<48x1024xf32> to vector<48x128xf32>
    %5 = vector.extract_strided_slice %3 {offsets = [0, 128], sizes = [48, 128], strides = [1, 1]} : vector<48x1024xf32> to vector<48x128xf32>
    %6 = arith.maximumf %4, %5 : vector<48x128xf32>
    %7 = vector.extract_strided_slice %3 {offsets = [0, 256], sizes = [48, 128], strides = [1, 1]} : vector<48x1024xf32> to vector<48x128xf32>
    %8 = vector.extract_strided_slice %3 {offsets = [0, 384], sizes = [48, 128], strides = [1, 1]} : vector<48x1024xf32> to vector<48x128xf32>
    %9 = arith.maximumf %7, %8 : vector<48x128xf32>
    %10 = arith.maximumf %6, %9 : vector<48x128xf32>
    %11 = vector.extract_strided_slice %3 {offsets = [0, 512], sizes = [48, 128], strides = [1, 1]} : vector<48x1024xf32> to vector<48x128xf32>
    %12 = vector.extract_strided_slice %3 {offsets = [0, 640], sizes = [48, 128], strides = [1, 1]} : vector<48x1024xf32> to vector<48x128xf32>
    %13 = arith.maximumf %11, %12 : vector<48x128xf32>
    %14 = vector.extract_strided_slice %3 {offsets = [0, 768], sizes = [48, 128], strides = [1, 1]} : vector<48x1024xf32> to vector<48x128xf32>
    %15 = vector.extract_strided_slice %3 {offsets = [0, 896], sizes = [48, 128], strides = [1, 1]} : vector<48x1024xf32> to vector<48x128xf32>
    %16 = arith.maximumf %14, %15 : vector<48x128xf32>
    %17 = arith.maximumf %13, %16 : vector<48x128xf32>
    %c0_4 = arith.constant 0 : index
    %c0_5 = arith.constant 0 : index
    %18 = vector.load %arg3[%c0_4, %c0_5] : memref<1x128xf32, #tpu.memory_space<vmem>>, vector<1x128xf32>
    %19 = vector.broadcast %18 : vector<1x128xf32> to vector<48x128xf32>
    %20 = arith.addf %10, %19 : vector<48x128xf32>
    %cst_6 = arith.constant 0.000000e+00 : f32
    %21 = vector.broadcast %cst_6 : f32 to vector<48x128xf32>
    %22 = arith.maximumf %20, %21 : vector<48x128xf32>
    %23 = vector.broadcast %18 : vector<1x128xf32> to vector<48x128xf32>
    %24 = arith.addf %17, %23 : vector<48x128xf32>
    %cst_7 = arith.constant 0.000000e+00 : f32
    %25 = vector.broadcast %cst_7 : f32 to vector<48x128xf32>
    %26 = arith.maximumf %24, %25 : vector<48x128xf32>
    %27 = tpu.concatenate %22, %26 in 1 : vector<48x128xf32>, vector<48x128xf32> -> vector<48x256xf32>
    %28 = vector.shape_cast %27 : vector<48x256xf32> to vector<6x8x256xf32>
    %29 = arith.truncf %28 : vector<6x8x256xf32> to vector<6x8x256xbf16>
    %c0_8 = arith.constant 0 : index
    %c0_9 = arith.constant 0 : index
    %c0_10 = arith.constant 0 : index
    %30 = vector.load %arg11[%c0_8, %c0_9, %c0_10] : memref<6x8x256xbf16, #tpu.memory_space<vmem>>, vector<6x8x256xbf16>
    tpu.vector_store %arg11[%c0_8, %c0_9, %c0_10], %29 {strides = array<i32>} : memref<6x8x256xbf16, #tpu.memory_space<vmem>>, vector<6x8x256xbf16>,
    %c0_11 = arith.constant 0 : index
    %c0_12 = arith.constant 0 : index
    %c0_13 = arith.constant 0 : index
    %31 = vector.load %arg11[%c0_11, %c0_12, %c0_13] : memref<6x8x256xbf16, #tpu.memory_space<vmem>>, vector<1x8x256xbf16>
    %32 = vector.shape_cast %31 : vector<1x8x256xbf16> to vector<8x256xbf16>
    %c0_14 = arith.constant 0 : index
    %c0_15 = arith.constant 0 : index
    %c0_16 = arith.constant 0 : index
    %33 = vector.load %arg4[%c0_14, %c0_15, %c0_16] : memref<3x256x512xbf16, #tpu.memory_space<vmem>>, vector<1x256x512xbf16>
    %34 = vector.shape_cast %33 : vector<1x256x512xbf16> to vector<256x512xbf16>
    %cst_17 = arith.constant dense<0.000000e+00> : vector<8x512xf32>
    %35 = tpu.matmul %32, %34, %cst_17 {dimension_numbers = #tpu.dot_dimension_numbers<[1], [0], [0], [1], [0, 0, 1, 1], [], []>} : vector<8x256xbf16>, vector<256x512xbf16>, vector<8x512xf32> -> vector<8x512xf32>
    %c1 = arith.constant 1 : index
    %c0_18 = arith.constant 0 : index
    %c0_19 = arith.constant 0 : index
    %36 = vector.load %arg11[%c1, %c0_18, %c0_19] : memref<6x8x256xbf16, #tpu.memory_space<vmem>>, vector<1x8x256xbf16>
    %37 = vector.shape_cast %36 : vector<1x8x256xbf16> to vector<8x256xbf16>
    %c1_20 = arith.constant 1 : index
    %c0_21 = arith.constant 0 : index
    %c0_22 = arith.constant 0 : index
    %38 = vector.load %arg4[%c1_20, %c0_21, %c0_22] : memref<3x256x512xbf16, #tpu.memory_space<vmem>>, vector<1x256x512xbf16>
    %39 = vector.shape_cast %38 : vector<1x256x512xbf16> to vector<256x512xbf16>
    %cst_23 = arith.constant dense<0.000000e+00> : vector<8x512xf32>
    %40 = tpu.matmul %37, %39, %cst_23 {dimension_numbers = #tpu.dot_dimension_numbers<[1], [0], [0], [1], [0, 0, 1, 1], [], []>} : vector<8x256xbf16>, vector<256x512xbf16>, vector<8x512xf32> -> vector<8x512xf32>
    %41 = arith.addf %35, %40 : vector<8x512xf32>
    %c2 = arith.constant 2 : index
    %c0_24 = arith.constant 0 : index
    %c0_25 = arith.constant 0 : index
    %42 = vector.load %arg11[%c2, %c0_24, %c0_25] : memref<6x8x256xbf16, #tpu.memory_space<vmem>>, vector<1x8x256xbf16>
    %43 = vector.shape_cast %42 : vector<1x8x256xbf16> to vector<8x256xbf16>
    %c2_26 = arith.constant 2 : index
    %c0_27 = arith.constant 0 : index
    %c0_28 = arith.constant 0 : index
    %44 = vector.load %arg4[%c2_26, %c0_27, %c0_28] : memref<3x256x512xbf16, #tpu.memory_space<vmem>>, vector<1x256x512xbf16>
    %45 = vector.shape_cast %44 : vector<1x256x512xbf16> to vector<256x512xbf16>
    %cst_29 = arith.constant dense<0.000000e+00> : vector<8x512xf32>
    %46 = tpu.matmul %43, %45, %cst_29 {dimension_numbers = #tpu.dot_dimension_numbers<[1], [0], [0], [1], [0, 0, 1, 1], [], []>} : vector<8x256xbf16>, vector<256x512xbf16>, vector<8x512xf32> -> vector<8x512xf32>
    %47 = arith.addf %41, %46 : vector<8x512xf32>
    %48 = vector.extract_strided_slice %47 {offsets = [0, 0], sizes = [8, 128], strides = [1, 1]} : vector<8x512xf32> to vector<8x128xf32>
    %49 = vector.extract_strided_slice %47 {offsets = [0, 128], sizes = [8, 128], strides = [1, 1]} : vector<8x512xf32> to vector<8x128xf32>
    %50 = arith.maximumf %48, %49 : vector<8x128xf32>
    %51 = vector.extract_strided_slice %47 {offsets = [0, 256], sizes = [8, 128], strides = [1, 1]} : vector<8x512xf32> to vector<8x128xf32>
    %52 = vector.extract_strided_slice %47 {offsets = [0, 384], sizes = [8, 128], strides = [1, 1]} : vector<8x512xf32> to vector<8x128xf32>
    %53 = arith.maximumf %51, %52 : vector<8x128xf32>
    %54 = arith.maximumf %50, %53 : vector<8x128xf32>
    %c0_30 = arith.constant 0 : index
    %c0_31 = arith.constant 0 : index
    %55 = vector.load %arg5[%c0_30, %c0_31] : memref<1x128xf32, #tpu.memory_space<vmem>>, vector<1x128xf32>
    %56 = vector.broadcast %55 : vector<1x128xf32> to vector<8x128xf32>
    %57 = arith.addf %54, %56 : vector<8x128xf32>
    %cst_32 = arith.constant 0.000000e+00 : f32
    %58 = vector.broadcast %cst_32 : f32 to vector<8x128xf32>
    %59 = arith.maximumf %57, %58 : vector<8x128xf32>
    %60 = arith.truncf %59 : vector<8x128xf32> to vector<8x128xbf16>
    %c1_33 = arith.constant 1 : index
    %c0_34 = arith.constant 0 : index
    %c0_35 = arith.constant 0 : index
    %61 = vector.load %arg11[%c1_33, %c0_34, %c0_35] : memref<6x8x256xbf16, #tpu.memory_space<vmem>>, vector<1x8x256xbf16>
    %62 = vector.shape_cast %61 : vector<1x8x256xbf16> to vector<8x256xbf16>
    %c0_36 = arith.constant 0 : index
    %c0_37 = arith.constant 0 : index
    %c0_38 = arith.constant 0 : index
    %63 = vector.load %arg4[%c0_36, %c0_37, %c0_38] : memref<3x256x512xbf16, #tpu.memory_space<vmem>>, vector<1x256x512xbf16>
    %64 = vector.shape_cast %63 : vector<1x256x512xbf16> to vector<256x512xbf16>
    %cst_39 = arith.constant dense<0.000000e+00> : vector<8x512xf32>
    %65 = tpu.matmul %62, %64, %cst_39 {dimension_numbers = #tpu.dot_dimension_numbers<[1], [0], [0], [1], [0, 0, 1, 1], [], []>} : vector<8x256xbf16>, vector<256x512xbf16>, vector<8x512xf32> -> vector<8x512xf32>
    %c2_40 = arith.constant 2 : index
    %c0_41 = arith.constant 0 : index
    %c0_42 = arith.constant 0 : index
    %66 = vector.load %arg11[%c2_40, %c0_41, %c0_42] : memref<6x8x256xbf16, #tpu.memory_space<vmem>>, vector<1x8x256xbf16>
    %67 = vector.shape_cast %66 : vector<1x8x256xbf16> to vector<8x256xbf16>
    %c1_43 = arith.constant 1 : index
    %c0_44 = arith.constant 0 : index
    %c0_45 = arith.constant 0 : index
    %68 = vector.load %arg4[%c1_43, %c0_44, %c0_45] : memref<3x256x512xbf16, #tpu.memory_space<vmem>>, vector<1x256x512xbf16>
    %69 = vector.shape_cast %68 : vector<1x256x512xbf16> to vector<256x512xbf16>
    %cst_46 = arith.constant dense<0.000000e+00> : vector<8x512xf32>
    %70 = tpu.matmul %67, %69, %cst_46 {dimension_numbers = #tpu.dot_dimension_numbers<[1], [0], [0], [1], [0, 0, 1, 1], [], []>} : vector<8x256xbf16>, vector<256x512xbf16>, vector<8x512xf32> -> vector<8x512xf32>
    %71 = arith.addf %65, %70 : vector<8x512xf32>
    %c3 = arith.constant 3 : index
    %c0_47 = arith.constant 0 : index
    %c0_48 = arith.constant 0 : index
    %72 = vector.load %arg11[%c3, %c0_47, %c0_48] : memref<6x8x256xbf16, #tpu.memory_space<vmem>>, vector<1x8x256xbf16>
    %73 = vector.shape_cast %72 : vector<1x8x256xbf16> to vector<8x256xbf16>
    %c2_49 = arith.constant 2 : index
    %c0_50 = arith.constant 0 : index
    %c0_51 = arith.constant 0 : index
    %74 = vector.load %arg4[%c2_49, %c0_50, %c0_51] : memref<3x256x512xbf16, #tpu.memory_space<vmem>>, vector<1x256x512xbf16>
    %75 = vector.shape_cast %74 : vector<1x256x512xbf16> to vector<256x512xbf16>
    %cst_52 = arith.constant dense<0.000000e+00> : vector<8x512xf32>
    %76 = tpu.matmul %73, %75, %cst_52 {dimension_numbers = #tpu.dot_dimension_numbers<[1], [0], [0], [1], [0, 0, 1, 1], [], []>} : vector<8x256xbf16>, vector<256x512xbf16>, vector<8x512xf32> -> vector<8x512xf32>
    %77 = arith.addf %71, %76 : vector<8x512xf32>
    %78 = vector.extract_strided_slice %77 {offsets = [0, 0], sizes = [8, 128], strides = [1, 1]} : vector<8x512xf32> to vector<8x128xf32>
    %79 = vector.extract_strided_slice %77 {offsets = [0, 128], sizes = [8, 128], strides = [1, 1]} : vector<8x512xf32> to vector<8x128xf32>
    %80 = arith.maximumf %78, %79 : vector<8x128xf32>
    %81 = vector.extract_strided_slice %77 {offsets = [0, 256], sizes = [8, 128], strides = [1, 1]} : vector<8x512xf32> to vector<8x128xf32>
    %82 = vector.extract_strided_slice %77 {offsets = [0, 384], sizes = [8, 128], strides = [1, 1]} : vector<8x512xf32> to vector<8x128xf32>
    %83 = arith.maximumf %81, %82 : vector<8x128xf32>
    %84 = arith.maximumf %80, %83 : vector<8x128xf32>
    %c0_53 = arith.constant 0 : index
    %c0_54 = arith.constant 0 : index
    %85 = vector.load %arg5[%c0_53, %c0_54] : memref<1x128xf32, #tpu.memory_space<vmem>>, vector<1x128xf32>
    %86 = vector.broadcast %85 : vector<1x128xf32> to vector<8x128xf32>
    %87 = arith.addf %84, %86 : vector<8x128xf32>
    %cst_55 = arith.constant 0.000000e+00 : f32
    %88 = vector.broadcast %cst_55 : f32 to vector<8x128xf32>
    %89 = arith.maximumf %87, %88 : vector<8x128xf32>
    %90 = arith.truncf %89 : vector<8x128xf32> to vector<8x128xbf16>
    %c2_56 = arith.constant 2 : index
    %c0_57 = arith.constant 0 : index
    %c0_58 = arith.constant 0 : index
    %91 = vector.load %arg11[%c2_56, %c0_57, %c0_58] : memref<6x8x256xbf16, #tpu.memory_space<vmem>>, vector<1x8x256xbf16>
    %92 = vector.shape_cast %91 : vector<1x8x256xbf16> to vector<8x256xbf16>
    %c0_59 = arith.constant 0 : index
    %c0_60 = arith.constant 0 : index
    %c0_61 = arith.constant 0 : index
    %93 = vector.load %arg4[%c0_59, %c0_60, %c0_61] : memref<3x256x512xbf16, #tpu.memory_space<vmem>>, vector<1x256x512xbf16>
    %94 = vector.shape_cast %93 : vector<1x256x512xbf16> to vector<256x512xbf16>
    %cst_62 = arith.constant dense<0.000000e+00> : vector<8x512xf32>
    %95 = tpu.matmul %92, %94, %cst_62 {dimension_numbers = #tpu.dot_dimension_numbers<[1], [0], [0], [1], [0, 0, 1, 1], [], []>} : vector<8x256xbf16>, vector<256x512xbf16>, vector<8x512xf32> -> vector<8x512xf32>
    %c3_63 = arith.constant 3 : index
    %c0_64 = arith.constant 0 : index
    %c0_65 = arith.constant 0 : index
    %96 = vector.load %arg11[%c3_63, %c0_64, %c0_65] : memref<6x8x256xbf16, #tpu.memory_space<vmem>>, vector<1x8x256xbf16>
    %97 = vector.shape_cast %96 : vector<1x8x256xbf16> to vector<8x256xbf16>
    %c1_66 = arith.constant 1 : index
    %c0_67 = arith.constant 0 : index
    %c0_68 = arith.constant 0 : index
    %98 = vector.load %arg4[%c1_66, %c0_67, %c0_68] : memref<3x256x512xbf16, #tpu.memory_space<vmem>>, vector<1x256x512xbf16>
    %99 = vector.shape_cast %98 : vector<1x256x512xbf16> to vector<256x512xbf16>
    %cst_69 = arith.constant dense<0.000000e+00> : vector<8x512xf32>
    %100 = tpu.matmul %97, %99, %cst_69 {dimension_numbers = #tpu.dot_dimension_numbers<[1], [0], [0], [1], [0, 0, 1, 1], [], []>} : vector<8x256xbf16>, vector<256x512xbf16>, vector<8x512xf32> -> vector<8x512xf32>
    %101 = arith.addf %95, %100 : vector<8x512xf32>
    %c4 = arith.constant 4 : index
    %c0_70 = arith.constant 0 : index
    %c0_71 = arith.constant 0 : index
    %102 = vector.load %arg11[%c4, %c0_70, %c0_71] : memref<6x8x256xbf16, #tpu.memory_space<vmem>>, vector<1x8x256xbf16>
    %103 = vector.shape_cast %102 : vector<1x8x256xbf16> to vector<8x256xbf16>
    %c2_72 = arith.constant 2 : index
    %c0_73 = arith.constant 0 : index
    %c0_74 = arith.constant 0 : index
    %104 = vector.load %arg4[%c2_72, %c0_73, %c0_74] : memref<3x256x512xbf16, #tpu.memory_space<vmem>>, vector<1x256x512xbf16>
    %105 = vector.shape_cast %104 : vector<1x256x512xbf16> to vector<256x512xbf16>
    %cst_75 = arith.constant dense<0.000000e+00> : vector<8x512xf32>
    %106 = tpu.matmul %103, %105, %cst_75 {dimension_numbers = #tpu.dot_dimension_numbers<[1], [0], [0], [1], [0, 0, 1, 1], [], []>} : vector<8x256xbf16>, vector<256x512xbf16>, vector<8x512xf32> -> vector<8x512xf32>
    %107 = arith.addf %101, %106 : vector<8x512xf32>
    %108 = vector.extract_strided_slice %107 {offsets = [0, 0], sizes = [8, 128], strides = [1, 1]} : vector<8x512xf32> to vector<8x128xf32>
    %109 = vector.extract_strided_slice %107 {offsets = [0, 128], sizes = [8, 128], strides = [1, 1]} : vector<8x512xf32> to vector<8x128xf32>
    %110 = arith.maximumf %108, %109 : vector<8x128xf32>
    %111 = vector.extract_strided_slice %107 {offsets = [0, 256], sizes = [8, 128], strides = [1, 1]} : vector<8x512xf32> to vector<8x128xf32>
    %112 = vector.extract_strided_slice %107 {offsets = [0, 384], sizes = [8, 128], strides = [1, 1]} : vector<8x512xf32> to vector<8x128xf32>
    %113 = arith.maximumf %111, %112 : vector<8x128xf32>
    %114 = arith.maximumf %110, %113 : vector<8x128xf32>
    %c0_76 = arith.constant 0 : index
    %c0_77 = arith.constant 0 : index
    %115 = vector.load %arg5[%c0_76, %c0_77] : memref<1x128xf32, #tpu.memory_space<vmem>>, vector<1x128xf32>
    %116 = vector.broadcast %115 : vector<1x128xf32> to vector<8x128xf32>
    %117 = arith.addf %114, %116 : vector<8x128xf32>
    %cst_78 = arith.constant 0.000000e+00 : f32
    %118 = vector.broadcast %cst_78 : f32 to vector<8x128xf32>
    %119 = arith.maximumf %117, %118 : vector<8x128xf32>
    %120 = arith.truncf %119 : vector<8x128xf32> to vector<8x128xbf16>
    %c3_79 = arith.constant 3 : index
    %c0_80 = arith.constant 0 : index
    %c0_81 = arith.constant 0 : index
    %121 = vector.load %arg11[%c3_79, %c0_80, %c0_81] : memref<6x8x256xbf16, #tpu.memory_space<vmem>>, vector<1x8x256xbf16>
    %122 = vector.shape_cast %121 : vector<1x8x256xbf16> to vector<8x256xbf16>
    %c0_82 = arith.constant 0 : index
    %c0_83 = arith.constant 0 : index
    %c0_84 = arith.constant 0 : index
    %123 = vector.load %arg4[%c0_82, %c0_83, %c0_84] : memref<3x256x512xbf16, #tpu.memory_space<vmem>>, vector<1x256x512xbf16>
    %124 = vector.shape_cast %123 : vector<1x256x512xbf16> to vector<256x512xbf16>
    %cst_85 = arith.constant dense<0.000000e+00> : vector<8x512xf32>
    %125 = tpu.matmul %122, %124, %cst_85 {dimension_numbers = #tpu.dot_dimension_numbers<[1], [0], [0], [1], [0, 0, 1, 1], [], []>} : vector<8x256xbf16>, vector<256x512xbf16>, vector<8x512xf32> -> vector<8x512xf32>
    %c4_86 = arith.constant 4 : index
    %c0_87 = arith.constant 0 : index
    %c0_88 = arith.constant 0 : index
    %126 = vector.load %arg11[%c4_86, %c0_87, %c0_88] : memref<6x8x256xbf16, #tpu.memory_space<vmem>>, vector<1x8x256xbf16>
    %127 = vector.shape_cast %126 : vector<1x8x256xbf16> to vector<8x256xbf16>
    %c1_89 = arith.constant 1 : index
    %c0_90 = arith.constant 0 : index
    %c0_91 = arith.constant 0 : index
    %128 = vector.load %arg4[%c1_89, %c0_90, %c0_91] : memref<3x256x512xbf16, #tpu.memory_space<vmem>>, vector<1x256x512xbf16>
    %129 = vector.shape_cast %128 : vector<1x256x512xbf16> to vector<256x512xbf16>
    %cst_92 = arith.constant dense<0.000000e+00> : vector<8x512xf32>
    %130 = tpu.matmul %127, %129, %cst_92 {dimension_numbers = #tpu.dot_dimension_numbers<[1], [0], [0], [1], [0, 0, 1, 1], [], []>} : vector<8x256xbf16>, vector<256x512xbf16>, vector<8x512xf32> -> vector<8x512xf32>
    %131 = arith.addf %125, %130 : vector<8x512xf32>
    %c5 = arith.constant 5 : index
    %c0_93 = arith.constant 0 : index
    %c0_94 = arith.constant 0 : index
    %132 = vector.load %arg11[%c5, %c0_93, %c0_94] : memref<6x8x256xbf16, #tpu.memory_space<vmem>>, vector<1x8x256xbf16>
    %133 = vector.shape_cast %132 : vector<1x8x256xbf16> to vector<8x256xbf16>
    %c2_95 = arith.constant 2 : index
    %c0_96 = arith.constant 0 : index
    %c0_97 = arith.constant 0 : index
    %134 = vector.load %arg4[%c2_95, %c0_96, %c0_97] : memref<3x256x512xbf16, #tpu.memory_space<vmem>>, vector<1x256x512xbf16>
    %135 = vector.shape_cast %134 : vector<1x256x512xbf16> to vector<256x512xbf16>
    %cst_98 = arith.constant dense<0.000000e+00> : vector<8x512xf32>
    %136 = tpu.matmul %133, %135, %cst_98 {dimension_numbers = #tpu.dot_dimension_numbers<[1], [0], [0], [1], [0, 0, 1, 1], [], []>} : vector<8x256xbf16>, vector<256x512xbf16>, vector<8x512xf32> -> vector<8x512xf32>
    %137 = arith.addf %131, %136 : vector<8x512xf32>
    %138 = vector.extract_strided_slice %137 {offsets = [0, 0], sizes = [8, 128], strides = [1, 1]} : vector<8x512xf32> to vector<8x128xf32>
    %139 = vector.extract_strided_slice %137 {offsets = [0, 128], sizes = [8, 128], strides = [1, 1]} : vector<8x512xf32> to vector<8x128xf32>
    %140 = arith.maximumf %138, %139 : vector<8x128xf32>
    %141 = vector.extract_strided_slice %137 {offsets = [0, 256], sizes = [8, 128], strides = [1, 1]} : vector<8x512xf32> to vector<8x128xf32>
    %142 = vector.extract_strided_slice %137 {offsets = [0, 384], sizes = [8, 128], strides = [1, 1]} : vector<8x512xf32> to vector<8x128xf32>
    %143 = arith.maximumf %141, %142 : vector<8x128xf32>
    %144 = arith.maximumf %140, %143 : vector<8x128xf32>
    %c0_99 = arith.constant 0 : index
    %c0_100 = arith.constant 0 : index
    %145 = vector.load %arg5[%c0_99, %c0_100] : memref<1x128xf32, #tpu.memory_space<vmem>>, vector<1x128xf32>
    %146 = vector.broadcast %145 : vector<1x128xf32> to vector<8x128xf32>
    %147 = arith.addf %144, %146 : vector<8x128xf32>
    %cst_101 = arith.constant 0.000000e+00 : f32
    %148 = vector.broadcast %cst_101 : f32 to vector<8x128xf32>
    %149 = arith.maximumf %147, %148 : vector<8x128xf32>
    %150 = arith.truncf %149 : vector<8x128xf32> to vector<8x128xbf16>
    %151 = tpu.concatenate %60, %90, %120, %150 in 1 : vector<8x128xbf16>, vector<8x128xbf16>, vector<8x128xbf16>, vector<8x128xbf16> -> vector<8x512xbf16>
    %c0_102 = arith.constant 0 : index
    %c0_103 = arith.constant 0 : index
    %152 = vector.load %arg6[%c0_102, %c0_103] : memref<512x256xbf16, #tpu.memory_space<vmem>>, vector<512x256xbf16>
    %cst_104 = arith.constant dense<0.000000e+00> : vector<8x256xf32>
    %153 = tpu.matmul %151, %152, %cst_104 {dimension_numbers = #tpu.dot_dimension_numbers<[1], [0], [0], [1], [0, 0, 1, 1], [], []>} : vector<8x512xbf16>, vector<512x256xbf16>, vector<8x256xf32> -> vector<8x256xf32>
    %c0_105 = arith.constant 0 : index
    %c0_106 = arith.constant 0 : index
    %154 = vector.load %arg7[%c0_105, %c0_106] : memref<1x256xf32, #tpu.memory_space<vmem>>, vector<1x256xf32>
    %155 = vector.broadcast %154 : vector<1x256xf32> to vector<8x256xf32>
    %156 = arith.addf %153, %155 : vector<8x256xf32>
    %cst_107 = arith.constant 0.000000e+00 : f32
    %157 = vector.broadcast %cst_107 : f32 to vector<8x256xf32>
    %158 = arith.maximumf %156, %157 : vector<8x256xf32>
    %159 = arith.truncf %158 : vector<8x256xf32> to vector<8x256xbf16>
    %c0_108 = arith.constant 0 : index
    %c0_109 = arith.constant 0 : index
    %160 = vector.load %arg8[%c0_108, %c0_109] : memref<256x128xbf16, #tpu.memory_space<vmem>>, vector<256x128xbf16>
    %cst_110 = arith.constant dense<0.000000e+00> : vector<8x128xf32>
    %161 = tpu.matmul %159, %160, %cst_110 {dimension_numbers = #tpu.dot_dimension_numbers<[1], [0], [0], [1], [0, 0, 1, 1], [], []>} : vector<8x256xbf16>, vector<256x128xbf16>, vector<8x128xf32> -> vector<8x128xf32>
    %c0_111 = arith.constant 0 : index
    %c0_112 = arith.constant 0 : index
    %162 = vector.load %arg9[%c0_111, %c0_112] : memref<1x128xf32, #tpu.memory_space<vmem>>, vector<1x128xf32>
    %163 = vector.broadcast %162 : vector<1x128xf32> to vector<8x128xf32>
    %164 = arith.addf %161, %163 : vector<8x128xf32>
    %cst_113 = arith.constant dense<0xFF800000> : vector<8xf32>
    %165 = vector.multi_reduction <maximumf>, %164, %cst_113 [1] : vector<8x128xf32> to vector<8xf32>
    %166 = vector.shape_cast %165 : vector<8xf32> to vector<8x1xf32>
    %167 = vector.broadcast %166 : vector<8x1xf32> to vector<8x128xf32>
    %168 = arith.subf %164, %167 : vector<8x128xf32>
    %169 = math.exp %168 : vector<8x128xf32>
    %cst_114 = arith.constant dense<0.000000e+00> : vector<8xf32>
    %170 = vector.multi_reduction <add>, %169, %cst_114 [1] : vector<8x128xf32> to vector<8xf32>
    %171 = vector.shape_cast %170 : vector<8xf32> to vector<8x1xf32>
    %172 = math.log %171 : vector<8x1xf32>
    %173 = arith.addf %172, %166 : vector<8x1xf32>
    %174 = vector.broadcast %173 : vector<8x1xf32> to vector<8x128xf32>
    %175 = arith.subf %164, %174 : vector<8x128xf32>
    %c0_115 = arith.constant 0 : index
    %c0_116 = arith.constant 0 : index
    %176 = vector.load %arg10[%c0_115, %c0_116] : memref<8x128xf32, #tpu.memory_space<vmem>>, vector<8x128xf32>
    tpu.vector_store %arg10[%c0_115, %c0_116], %175 {strides = array<i32>} : memref<8x128xf32, #tpu.memory_space<vmem>>, vector<8x128xf32>,
    return
  }
  func.func @transform_0(%arg0: i32) -> (i32, i32, i32) {
    %c0_i32 = arith.constant 0 : i32
    %c0_i32_0 = arith.constant 0 : i32
    %c0_i32_1 = arith.constant 0 : i32
    return %c0_i32, %arg0, %c0_i32_0 : i32, i32, i32
  }
  func.func @transform_1(%arg0: i32) -> (i32, i32) {
    %c0_i32 = arith.constant 0 : i32
    %c0_i32_0 = arith.constant 0 : i32
    %c0_i32_1 = arith.constant 0 : i32
    return %c0_i32, %c0_i32_0 : i32, i32
  }
  func.func @transform_2(%arg0: i32) -> (i32, i32) {
    %c0_i32 = arith.constant 0 : i32
    %c0_i32_0 = arith.constant 0 : i32
    %c0_i32_1 = arith.constant 0 : i32
    return %c0_i32, %c0_i32_0 : i32, i32
  }
  func.func @transform_3(%arg0: i32) -> (i32, i32, i32) {
    %c0_i32 = arith.constant 0 : i32
    %c0_i32_0 = arith.constant 0 : i32
    %c0_i32_1 = arith.constant 0 : i32
    %c0_i32_2 = arith.constant 0 : i32
    return %c0_i32, %c0_i32_0, %c0_i32_1 : i32, i32, i32
  }
  func.func @transform_4(%arg0: i32) -> (i32, i32) {
    %c0_i32 = arith.constant 0 : i32
    %c0_i32_0 = arith.constant 0 : i32
    %c0_i32_1 = arith.constant 0 : i32
    return %c0_i32, %c0_i32_0 : i32, i32
  }
  func.func @transform_5(%arg0: i32) -> (i32, i32) {
    %c0_i32 = arith.constant 0 : i32
    %c0_i32_0 = arith.constant 0 : i32
    %c0_i32_1 = arith.constant 0 : i32
    return %c0_i32, %c0_i32_0 : i32, i32
  }
  func.func @transform_6(%arg0: i32) -> (i32, i32) {
    %c0_i32 = arith.constant 0 : i32
    %c0_i32_0 = arith.constant 0 : i32
    %c0_i32_1 = arith.constant 0 : i32
    return %c0_i32, %c0_i32_0 : i32, i32
  }
  func.func @transform_7(%arg0: i32) -> (i32, i32) {
    %c0_i32 = arith.constant 0 : i32
    %c0_i32_0 = arith.constant 0 : i32
    %c0_i32_1 = arith.constant 0 : i32
    return %c0_i32, %c0_i32_0 : i32, i32
  }
  func.func @transform_8(%arg0: i32) -> (i32, i32) {
    %c0_i32 = arith.constant 0 : i32
    %c0_i32_0 = arith.constant 0 : i32
    %c0_i32_1 = arith.constant 0 : i32
    return %c0_i32, %c0_i32_0 : i32, i32
  }
  func.func @transform_9(%arg0: i32) -> (i32, i32) {
    %c0_i32 = arith.constant 0 : i32
    %c0_i32_0 = arith.constant 0 : i32
    return %arg0, %c0_i32 : i32, i32
  }
}

</mosaic_0001>

<llo_original>
// kernel: net_forward.1
$region0: #{net_forward.1}
  #allocation0 [shape = 'u32[]', space=smem, size = 0x4, offset = 0x4, fixed_abs, tag = 'smem constant byte address 0x4 - core index']
  #allocation1 [shape = 'u32[144,128]{1,0:T(1,128)}', space=vmem, size = 0x12000, scoped, tag = 'internal scratch']
  #allocation2 [shape = 'bf16[6,8,256]{2,1,0:T(8,128)(2,1)}', space=vmem, size = 0x6000, scoped, tag = 'scratch operand']
  %s0 = inlined_call_operand.vmem [shape: bf16[6,8,256], index: 0, kind: input, shape index: {}]
  %s1 = inlined_call_operand.hbm [shape: bf16[256,1024], index: 1, kind: input, shape index: {}]
  %s2 = inlined_call_operand.vmem [shape: f32[1,128], index: 2, kind: input, shape index: {}]
  %s3 = inlined_call_operand.hbm [shape: bf16[3,256,512], index: 3, kind: input, shape index: {}]
  %s4 = inlined_call_operand.vmem [shape: f32[1,128], index: 4, kind: input, shape index: {}]
  %s5 = inlined_call_operand.vmem [shape: bf16[512,256], index: 5, kind: input, shape index: {}]
  %s6 = inlined_call_operand.vmem [shape: f32[1,256], index: 6, kind: input, shape index: {}]
  %s7 = inlined_call_operand.vmem [shape: bf16[256,128], index: 7, kind: input, shape index: {}]
  %s8 = inlined_call_operand.vmem [shape: f32[1,128], index: 8, kind: input, shape index: {}]
  %s9 = inlined_call_operand.vmem [shape: f32[8,128], index: 9, kind: output, shape index: {}]
  %s10 = sld [smem:[#allocation0]]
  $region54: #{net_forward.1} parent=0
    _
  %s12 = ssub.s32 1, %s10
  %s13 = scalar_select 0, %s12, %s10
  $region1: #{net_forward.1} parent=0
    #allocation3 [shape = 'u8[524288]{0}', space=vmem, size = 0x80000, scoped, tag = 'input window, operand 1, single buffered']
    #allocation4 [shape = 's32[1]{0}', space=sflag, size = 0x4, scoped, tag = 'scoped memory for net_forward.1']
    #allocation5 [shape = 'u8[786432]{0}', space=vmem, size = 0xc0000, scoped, tag = 'input window, operand 3, single buffered']
    #allocation6 [shape = 's32[1]{0}', space=sflag, size = 0x4, scoped, tag = 'scoped memory for net_forward.1']
    %14 = vsyncpa [#allocation4], 0
    %15 = vsyncpa [#allocation6], 0
    // Predicated region
    $region2: #{net_forward.1} parent=1 // pred_check
      _
    $region3: #{net_forward.1} parent=1 // pred_check_branch
      %17 = sbr.rel (0) target = $region5
    $region4: #{net_forward.1} parent=1 // pred_region
      _
    $region5: #{net_forward.1} parent=1 // pred_fallthru
      _
    // Predicated region
    $region6: #{net_forward.1} parent=1 // pred_check
      _
    $region7: #{net_forward.1} parent=1 // pred_check_branch
      %19 = sbr.rel (0) target = $region9
    $region8: #{net_forward.1} parent=1 // pred_region
      %s21 = ssub.s32 16384, 16384
      %22 = vsyncadd [#allocation4], %s21
      %s23 = sshll.u32 [#allocation3], 4
      %s24 = int_to_ptr.vmem [resolvable:$true] %s23
      %29 = dma.hbm_to_vmem [thread:$0]  %s1, 16384, %s24, [#allocation4], 512, 512, 32
    $region9: #{net_forward.1} parent=1 // pred_fallthru
      _
    // Predicated region
    $region10: #{net_forward.1} parent=1 // pred_check
      _
    $region11: #{net_forward.1} parent=1 // pred_check_branch
      %31 = sbr.rel (0) target = $region13
    $region12: #{net_forward.1} parent=1 // pred_region
      _
    $region13: #{net_forward.1} parent=1 // pred_fallthru
      _
    // Predicated region
    $region14: #{net_forward.1} parent=1 // pred_check
      _
    $region15: #{net_forward.1} parent=1 // pred_check_branch
      %33 = sbr.rel (0) target = $region17
    $region16: #{net_forward.1} parent=1 // pred_region
      %s35 = ssub.s32 24576, 24576
      %36 = vsyncadd [#allocation6], %s35
      %s37 = sshll.u32 [#allocation5], 4
      %s38 = int_to_ptr.vmem [resolvable:$true] %s37
      %43 = dma.hbm_to_vmem [thread:$0]  %s3, 24576, %s38, [#allocation6], 256, 256, 16
    $region17: #{net_forward.1} parent=1 // pred_fallthru
      _
    // Predicated region
    $region18: #{net_forward.1} parent=1 // pred_check
      _
    $region19: #{net_forward.1} parent=1 // pred_check_branch
      %45 = sbr.rel (0) target = $region21
    $region20: #{net_forward.1} parent=1 // pred_region
      _
    $region21: #{net_forward.1} parent=1 // pred_fallthru
      _
    // Predicated region
    $region22: #{net_forward.1} parent=1 // pred_check
      _
    $region23: #{net_forward.1} parent=1 // pred_check_branch
      %47 = sbr.rel (0) target = $region25
    $region24: #{net_forward.1} parent=1 // pred_region
      _
    $region25: #{net_forward.1} parent=1 // pred_fallthru
      _
    // Predicated region
    $region26: #{net_forward.1} parent=1 // pred_check
      _
    $region27: #{net_forward.1} parent=1 // pred_check_branch
      %49 = sbr.rel (0) target = $region29
    $region28: #{net_forward.1} parent=1 // pred_region
      _
    $region29: #{net_forward.1} parent=1 // pred_fallthru
      _
    // Predicated region
    $region30: #{net_forward.1} parent=1 // pred_check
      _
    $region31: #{net_forward.1} parent=1 // pred_check_branch
      %51 = sbr.rel (0) target = $region33
    $region32: #{net_forward.1} parent=1 // pred_region
      _
    $region33: #{net_forward.1} parent=1 // pred_fallthru
      _
    // Predicated region
    $region34: #{net_forward.1} parent=1 // pred_check
      _
    $region35: #{net_forward.1} parent=1 // pred_check_branch
      %53 = sbr.rel (0) target = $region37
    $region36: #{net_forward.1} parent=1 // pred_region
      _
    $region37: #{net_forward.1} parent=1 // pred_fallthru
      _
    // Predicated region
    $region38: #{net_forward.1} parent=1 // pred_check
      _
    $region39: #{net_forward.1} parent=1 // pred_check_branch
      %55 = sbr.rel (0) target = $region41
    $region40: #{net_forward.1} parent=1 // pred_region
      %56 = dma.done [#allocation4], 16384
    $region41: #{net_forward.1} parent=1 // pred_fallthru
      _
    // Predicated region
    $region42: #{net_forward.1} parent=1 // pred_check
      _
    $region43: #{net_forward.1} parent=1 // pred_check_branch
      %58 = sbr.rel (0) target = $region45
    $region44: #{net_forward.1} parent=1 // pred_region
      %59 = dma.done [#allocation6], 24576
    $region45: #{net_forward.1} parent=1 // pred_fallthru
      _
    %v61 = vld [vmem:[%s0] sm:$0xff]
    %v62 = vld [vmem:[%s0 + $0x8] sm:$0xff]
    %v63 = vld [vmem:[%s0 + $0x10] sm:$0xff]
    %v64 = vld [vmem:[%s0 + $0x18] sm:$0xff]
    %v65 = vld [vmem:[%s0 + $0x20] sm:$0xff]
    %v66 = vld [vmem:[%s0 + $0x28] sm:$0xff]
    %v67 = vld [vmem:[#allocation3] sm:$0xff]
    %v68 = vld [vmem:[#allocation3 + $0x8] sm:$0xff]
    %v69 = vld [vmem:[#allocation3 + $0x10] sm:$0xff]
    %v70 = vld [vmem:[#allocation3 + $0x18] sm:$0xff]
    %v71 = vld [vmem:[#allocation3 + $0x20] sm:$0xff]
    %v72 = vld [vmem:[#allocation3 + $0x28] sm:$0xff]
    %v73 = vld [vmem:[#allocation3 + $0x30] sm:$0xff]
    %v74 = vld [vmem:[#allocation3 + $0x38] sm:$0xff]
    %v75 = vld [vmem:[#allocation3 + $0x40] sm:$0xff]
    %v76 = vld [vmem:[#allocation3 + $0x48] sm:$0xff]
    %v77 = vld [vmem:[#allocation3 + $0x50] sm:$0xff]
    %v78 = vld [vmem:[#allocation3 + $0x58] sm:$0xff]
    %v79 = vld [vmem:[#allocation3 + $0x60] sm:$0xff]
    %v80 = vld [vmem:[#allocation3 + $0x68] sm:$0xff]
    %v81 = vld [vmem:[#allocation3 + $0x70] sm:$0xff]
    %v82 = vld [vmem:[#allocation3 + $0x78] sm:$0xff]
    %v83 = vld [vmem:[#allocation3 + $0x80] sm:$0xff]
    %v84 = vld [vmem:[#allocation3 + $0x88] sm:$0xff]
    %v85 = vld [vmem:[#allocation3 + $0x90] sm:$0xff]
    %v86 = vld [vmem:[#allocation3 + $0x98] sm:$0xff]
    %v87 = vld [vmem:[#allocation3 + $0xa0] sm:$0xff]
    %v88 = vld [vmem:[#allocation3 + $0xa8] sm:$0xff]
    %v89 = vld [vmem:[#allocation3 + $0xb0] sm:$0xff]
    %v90 = vld [vmem:[#allocation3 + $0xb8] sm:$0xff]
    %v91 = vld [vmem:[#allocation3 + $0xc0] sm:$0xff]
    %v92 = vld [vmem:[#allocation3 + $0xc8] sm:$0xff]
    %v93 = vld [vmem:[#allocation3 + $0xd0] sm:$0xff]
    %v94 = vld [vmem:[#allocation3 + $0xd8] sm:$0xff]
    %v95 = vld [vmem:[#allocation3 + $0xe0] sm:$0xff]
    %v96 = vld [vmem:[#allocation3 + $0xe8] sm:$0xff]
    %v97 = vld [vmem:[#allocation3 + $0xf0] sm:$0xff]
    %v98 = vld [vmem:[#allocation3 + $0xf8] sm:$0xff]
    %v99 = vld [vmem:[#allocation3 + $0x100] sm:$0xff]
    %v100 = vld [vmem:[#allocation3 + $0x108] sm:$0xff]
    %v101 = vld [vmem:[#allocation3 + $0x110] sm:$0xff]
    %v102 = vld [vmem:[#allocation3 + $0x118] sm:$0xff]
    %v103 = vld [vmem:[#allocation3 + $0x120] sm:$0xff]
    %v104 = vld [vmem:[#allocation3 + $0x128] sm:$0xff]
    %v105 = vld [vmem:[#allocation3 + $0x130] sm:$0xff]
    %v106 = vld [vmem:[#allocation3 + $0x138] sm:$0xff]
    %v107 = vld [vmem:[#allocation3 + $0x140] sm:$0xff]
    %v108 = vld [vmem:[#allocation3 + $0x148] sm:$0xff]
    %v109 = vld [vmem:[#allocation3 + $0x150] sm:$0xff]
    %v110 = vld [vmem:[#allocation3 + $0x158] sm:$0xff]
    %v111 = vld [vmem:[#allocation3 + $0x160] sm:$0xff]
    %v112 = vld [vmem:[#allocation3 + $0x168] sm:$0xff]
    %v113 = vld [vmem:[#allocation3 + $0x170] sm:$0xff]
    %v114 = vld [vmem:[#allocation3 + $0x178] sm:$0xff]
    %v115 = vld [vmem:[#allocation3 + $0x180] sm:$0xff]
    %v116 = vld [vmem:[#allocation3 + $0x188] sm:$0xff]
    %v117 = vld [vmem:[#allocation3 + $0x190] sm:$0xff]
    %v118 = vld [vmem:[#allocation3 + $0x198] sm:$0xff]
    %v119 = vld [vmem:[#allocation3 + $0x1a0] sm:$0xff]
    %v120 = vld [vmem:[#allocation3 + $0x1a8] sm:$0xff]
    %v121 = vld [vmem:[#allocation3 + $0x1b0] sm:$0xff]
    %v122 = vld [vmem:[#allocation3 + $0x1b8] sm:$0xff]
    %v123 = vld [vmem:[#allocation3 + $0x1c0] sm:$0xff]
    %v124 = vld [vmem:[#allocation3 + $0x1c8] sm:$0xff]
    %v125 = vld [vmem:[#allocation3 + $0x1d0] sm:$0xff]
    %v126 = vld [vmem:[#allocation3 + $0x1d8] sm:$0xff]
    %v127 = vld [vmem:[#allocation3 + $0x1e0] sm:$0xff]
    %v128 = vld [vmem:[#allocation3 + $0x1e8] sm:$0xff]
    %v129 = vld [vmem:[#allocation3 + $0x1f0] sm:$0xff]
    %v130 = vld [vmem:[#allocation3 + $0x1f8] sm:$0xff]
    %v131 = vld [vmem:[#allocation3 + $0x200] sm:$0xff]
    %v132 = vld [vmem:[#allocation3 + $0x208] sm:$0xff]
    %v133 = vld [vmem:[#allocation3 + $0x210] sm:$0xff]
    %v134 = vld [vmem:[#allocation3 + $0x218] sm:$0xff]
    %v135 = vld [vmem:[#allocation3 + $0x220] sm:$0xff]
    %v136 = vld [vmem:[#allocation3 + $0x228] sm:$0xff]
    %v137 = vld [vmem:[#allocation3 + $0x230] sm:$0xff]
    %v138 = vld [vmem:[#allocation3 + $0x238] sm:$0xff]
    %v139 = vld [vmem:[#allocation3 + $0x240] sm:$0xff]
    %v140 = vld [vmem:[#allocation3 + $0x248] sm:$0xff]
    %v141 = vld [vmem:[#allocation3 + $0x250] sm:$0xff]
    %v142 = vld [vmem:[#allocation3 + $0x258] sm:$0xff]
    %v143 = vld [vmem:[#allocation3 + $0x260] sm:$0xff]
    %v144 = vld [vmem:[#allocation3 + $0x268] sm:$0xff]
    %v145 = vld [vmem:[#allocation3 + $0x270] sm:$0xff]
    %v146 = vld [vmem:[#allocation3 + $0x278] sm:$0xff]
    %v147 = vld [vmem:[#allocation3 + $0x280] sm:$0xff]
    %v148 = vld [vmem:[#allocation3 + $0x288] sm:$0xff]
    %v149 = vld [vmem:[#allocation3 + $0x290] sm:$0xff]
    %v150 = vld [vmem:[#allocation3 + $0x298] sm:$0xff]
    %v151 = vld [vmem:[#allocation3 + $0x2a0] sm:$0xff]
    %v152 = vld [vmem:[#allocation3 + $0x2a8] sm:$0xff]
    %v153 = vld [vmem:[#allocation3 + $0x2b0] sm:$0xff]
    %v154 = vld [vmem:[#allocation3 + $0x2b8] sm:$0xff]
    %v155 = vld [vmem:[#allocation3 + $0x2c0] sm:$0xff]
    %v156 = vld [vmem:[#allocation3 + $0x2c8] sm:$0xff]
    %v157 = vld [vmem:[#allocation3 + $0x2d0] sm:$0xff]
    %v158 = vld [vmem:[#allocation3 + $0x2d8] sm:$0xff]
    %v159 = vld [vmem:[#allocation3 + $0x2e0] sm:$0xff]
    %v160 = vld [vmem:[#allocation3 + $0x2e8] sm:$0xff]
    %v161 = vld [vmem:[#allocation3 + $0x2f0] sm:$0xff]
    %v162 = vld [vmem:[#allocation3 + $0x2f8] sm:$0xff]
    %v163 = vld [vmem:[#allocation3 + $0x300] sm:$0xff]
    %v164 = vld [vmem:[#allocation3 + $0x308] sm:$0xff]
    %v165 = vld [vmem:[#allocation3 + $0x310] sm:$0xff]
    %v166 = vld [vmem:[#allocation3 + $0x318] sm:$0xff]
    %v167 = vld [vmem:[#allocation3 + $0x320] sm:$0xff]
    %v168 = vld [vmem:[#allocation3 + $0x328] sm:$0xff]
    %v169 = vld [vmem:[#allocation3 + $0x330] sm:$0xff]
    %v170 = vld [vmem:[#allocation3 + $0x338] sm:$0xff]
    %v171 = vld [vmem:[#allocation3 + $0x340] sm:$0xff]
    %v172 = vld [vmem:[#allocation3 + $0x348] sm:$0xff]
    %v173 = vld [vmem:[#allocation3 + $0x350] sm:$0xff]
    %v174 = vld [vmem:[#allocation3 + $0x358] sm:$0xff]
    %v175 = vld [vmem:[#allocation3 + $0x360] sm:$0xff]
    %v176 = vld [vmem:[#allocation3 + $0x368] sm:$0xff]
    %v177 = vld [vmem:[#allocation3 + $0x370] sm:$0xff]
    %v178 = vld [vmem:[#allocation3 + $0x378] sm:$0xff]
    %v179 = vld [vmem:[#allocation3 + $0x380] sm:$0xff]
    %v180 = vld [vmem:[#allocation3 + $0x388] sm:$0xff]
    %v181 = vld [vmem:[#allocation3 + $0x390] sm:$0xff]
    %v182 = vld [vmem:[#allocation3 + $0x398] sm:$0xff]
    %v183 = vld [vmem:[#allocation3 + $0x3a0] sm:$0xff]
    %v184 = vld [vmem:[#allocation3 + $0x3a8] sm:$0xff]
    %v185 = vld [vmem:[#allocation3 + $0x3b0] sm:$0xff]
    %v186 = vld [vmem:[#allocation3 + $0x3b8] sm:$0xff]
    %v187 = vld [vmem:[#allocation3 + $0x3c0] sm:$0xff]
    %v188 = vld [vmem:[#allocation3 + $0x3c8] sm:$0xff]
    %v189 = vld [vmem:[#allocation3 + $0x3d0] sm:$0xff]
    %v190 = vld [vmem:[#allocation3 + $0x3d8] sm:$0xff]
    %v191 = vld [vmem:[#allocation3 + $0x3e0] sm:$0xff]
    %v192 = vld [vmem:[#allocation3 + $0x3e8] sm:$0xff]
    %v193 = vld [vmem:[#allocation3 + $0x3f0] sm:$0xff]
    %v194 = vld [vmem:[#allocation3 + $0x3f8] sm:$0xff]
    %v201 = vunpack.c.l.b16 %v61
    %v202 = vunpack.c.h.b16 %v61
    %v203 = vunpack.c.l.b16 %v62
    %v204 = vunpack.c.h.b16 %v62
    %v205 = vunpack.c.l.b16 %v63
    %v206 = vunpack.c.h.b16 %v63
    %v207 = vunpack.c.l.b16 %v64
    %v208 = vunpack.c.h.b16 %v64
    %v209 = vunpack.c.l.b16 %v65
    %v210 = vunpack.c.h.b16 %v65
    %v211 = vunpack.c.l.b16 %v66
    %v212 = vunpack.c.h.b16 %v66
    %v213 = vpack.c.b16 %v203, %v201
    %v214 = vpack.c.b16 %v204, %v202
    %v215 = vpack.c.b16 %v207, %v205
    %v216 = vpack.c.b16 %v208, %v206
    %v217 = vpack.c.b16 %v211, %v209
    %v218 = vpack.c.b16 %v212, %v210
    %v353 = vunpack.c.l.b16 %v67
    %v354 = vunpack.c.h.b16 %v67
    %v355 = vunpack.c.l.b16 %v68
    %v356 = vunpack.c.h.b16 %v68
    %v357 = vunpack.c.l.b16 %v69
    %v358 = vunpack.c.h.b16 %v69
    %v359 = vunpack.c.l.b16 %v70
    %v360 = vunpack.c.h.b16 %v70
    %v361 = vunpack.c.l.b16 %v71
    %v362 = vunpack.c.h.b16 %v71
    %v363 = vunpack.c.l.b16 %v72
    %v364 = vunpack.c.h.b16 %v72
    %v365 = vunpack.c.l.b16 %v73
    %v366 = vunpack.c.h.b16 %v73
    %v367 = vunpack.c.l.b16 %v74
    %v368 = vunpack.c.h.b16 %v74
    %v369 = vunpack.c.l.b16 %v75
    %v370 = vunpack.c.h.b16 %v75
    %v371 = vunpack.c.l.b16 %v76
    %v372 = vunpack.c.h.b16 %v76
    %v373 = vunpack.c.l.b16 %v77
    %v374 = vunpack.c.h.b16 %v77
    %v375 = vunpack.c.l.b16 %v78
    %v376 = vunpack.c.h.b16 %v78
    %v377 = vunpack.c.l.b16 %v79
    %v378 = vunpack.c.h.b16 %v79
    %v379 = vunpack.c.l.b16 %v80
    %v380 = vunpack.c.h.b16 %v80
    %v381 = vunpack.c.l.b16 %v81
    %v382 = vunpack.c.h.b16 %v81
    %v383 = vunpack.c.l.b16 %v82
    %v384 = vunpack.c.h.b16 %v82
    %v385 = vunpack.c.l.b16 %v83
    %v386 = vunpack.c.h.b16 %v83
    %v387 = vunpack.c.l.b16 %v84
    %v388 = vunpack.c.h.b16 %v84
    %v389 = vunpack.c.l.b16 %v85
    %v390 = vunpack.c.h.b16 %v85
    %v391 = vunpack.c.l.b16 %v86
    %v392 = vunpack.c.h.b16 %v86
    %v393 = vunpack.c.l.b16 %v87
    %v394 = vunpack.c.h.b16 %v87
    %v395 = vunpack.c.l.b16 %v88
    %v396 = vunpack.c.h.b16 %v88
    %v397 = vunpack.c.l.b16 %v89
    %v398 = vunpack.c.h.b16 %v89
    %v399 = vunpack.c.l.b16 %v90
    %v400 = vunpack.c.h.b16 %v90
    %v401 = vunpack.c.l.b16 %v91
    %v402 = vunpack.c.h.b16 %v91
    %v403 = vunpack.c.l.b16 %v92
    %v404 = vunpack.c.h.b16 %v92
    %v405 = vunpack.c.l.b16 %v93
    %v406 = vunpack.c.h.b16 %v93
    %v407 = vunpack.c.l.b16 %v94
    %v408 = vunpack.c.h.b16 %v94
    %v409 = vunpack.c.l.b16 %v95
    %v410 = vunpack.c.h.b16 %v95
    %v411 = vunpack.c.l.b16 %v96
    %v412 = vunpack.c.h.b16 %v96
    %v413 = vunpack.c.l.b16 %v97
    %v414 = vunpack.c.h.b16 %v97
    %v415 = vunpack.c.l.b16 %v98
    %v416 = vunpack.c.h.b16 %v98
    %v417 = vunpack.c.l.b16 %v99
    %v418 = vunpack.c.h.b16 %v99
    %v419 = vunpack.c.l.b16 %v100
    %v420 = vunpack.c.h.b16 %v100
    %v421 = vunpack.c.l.b16 %v101
    %v422 = vunpack.c.h.b16 %v101
    %v423 = vunpack.c.l.b16 %v102
    %v424 = vunpack.c.h.b16 %v102
    %v425 = vunpack.c.l.b16 %v103
    %v426 = vunpack.c.h.b16 %v103
    %v427 = vunpack.c.l.b16 %v104
    %v428 = vunpack.c.h.b16 %v104
    %v429 = vunpack.c.l.b16 %v105
    %v430 = vunpack.c.h.b16 %v105
    %v431 = vunpack.c.l.b16 %v106
    %v432 = vunpack.c.h.b16 %v106
    %v433 = vunpack.c.l.b16 %v107
    %v434 = vunpack.c.h.b16 %v107
    %v435 = vunpack.c.l.b16 %v108
    %v436 = vunpack.c.h.b16 %v108
    %v437 = vunpack.c.l.b16 %v109
    %v438 = vunpack.c.h.b16 %v109
    %v439 = vunpack.c.l.b16 %v110
    %v440 = vunpack.c.h.b16 %v110
    %v441 = vunpack.c.l.b16 %v111
    %v442 = vunpack.c.h.b16 %v111
    %v443 = vunpack.c.l.b16 %v112
    %v444 = vunpack.c.h.b16 %v112
    %v445 = vunpack.c.l.b16 %v113
    %v446 = vunpack.c.h.b16 %v113
    %v447 = vunpack.c.l.b16 %v114
    %v448 = vunpack.c.h.b16 %v114
    %v449 = vunpack.c.l.b16 %v115
    %v450 = vunpack.c.h.b16 %v115
    %v451 = vunpack.c.l.b16 %v116
    %v452 = vunpack.c.h.b16 %v116
    %v453 = vunpack.c.l.b16 %v117
    %v454 = vunpack.c.h.b16 %v117
    %v455 = vunpack.c.l.b16 %v118
    %v456 = vunpack.c.h.b16 %v118
    %v457 = vunpack.c.l.b16 %v119
    %v458 = vunpack.c.h.b16 %v119
    %v459 = vunpack.c.l.b16 %v120
    %v460 = vunpack.c.h.b16 %v120
    %v461 = vunpack.c.l.b16 %v121
    %v462 = vunpack.c.h.b16 %v121
    %v463 = vunpack.c.l.b16 %v122
    %v464 = vunpack.c.h.b16 %v122
    %v465 = vunpack.c.l.b16 %v123
    %v466 = vunpack.c.h.b16 %v123
    %v467 = vunpack.c.l.b16 %v124
    %v468 = vunpack.c.h.b16 %v124
    %v469 = vunpack.c.l.b16 %v125
    %v470 = vunpack.c.h.b16 %v125
    %v471 = vunpack.c.l.b16 %v126
    %v472 = vunpack.c.h.b16 %v126
    %v473 = vunpack.c.l.b16 %v127
    %v474 = vunpack.c.h.b16 %v127
    %v475 = vunpack.c.l.b16 %v128
    %v476 = vunpack.c.h.b16 %v128
    %v477 = vunpack.c.l.b16 %v129
    %v478 = vunpack.c.h.b16 %v129
    %v479 = vunpack.c.l.b16 %v130
    %v480 = vunpack.c.h.b16 %v130
    %v481 = vunpack.c.l.b16 %v131
    %v482 = vunpack.c.h.b16 %v131
    %v483 = vunpack.c.l.b16 %v132
    %v484 = vunpack.c.h.b16 %v132
    %v485 = vunpack.c.l.b16 %v133
    %v486 = vunpack.c.h.b16 %v133
    %v487 = vunpack.c.l.b16 %v134
    %v488 = vunpack.c.h.b16 %v134
    %v489 = vunpack.c.l.b16 %v135
    %v490 = vunpack.c.h.b16 %v135
    %v491 = vunpack.c.l.b16 %v136
    %v492 = vunpack.c.h.b16 %v136
    %v493 = vunpack.c.l.b16 %v137
    %v494 = vunpack.c.h.b16 %v137
    %v495 = vunpack.c.l.b16 %v138
    %v496 = vunpack.c.h.b16 %v138
    %v497 = vunpack.c.l.b16 %v139
    %v498 = vunpack.c.h.b16 %v139
    %v499 = vunpack.c.l.b16 %v140
    %v500 = vunpack.c.h.b16 %v140
    %v501 = vunpack.c.l.b16 %v141
    %v502 = vunpack.c.h.b16 %v141
    %v503 = vunpack.c.l.b16 %v142
    %v504 = vunpack.c.h.b16 %v142
    %v505 = vunpack.c.l.b16 %v143
    %v506 = vunpack.c.h.b16 %v143
    %v507 = vunpack.c.l.b16 %v144
    %v508 = vunpack.c.h.b16 %v144
    %v509 = vunpack.c.l.b16 %v145
    %v510 = vunpack.c.h.b16 %v145
    %v511 = vunpack.c.l.b16 %v146
    %v512 = vunpack.c.h.b16 %v146
    %v513 = vunpack.c.l.b16 %v147
    %v514 = vunpack.c.h.b16 %v147
    %v515 = vunpack.c.l.b16 %v148
    %v516 = vunpack.c.h.b16 %v148
    %v517 = vunpack.c.l.b16 %v149
    %v518 = vunpack.c.h.b16 %v149
    %v519 = vunpack.c.l.b16 %v150
    %v520 = vunpack.c.h.b16 %v150
    %v521 = vunpack.c.l.b16 %v151
    %v522 = vunpack.c.h.b16 %v151
    %v523 = vunpack.c.l.b16 %v152
    %v524 = vunpack.c.h.b16 %v152
    %v525 = vunpack.c.l.b16 %v153
    %v526 = vunpack.c.h.b16 %v153
    %v527 = vunpack.c.l.b16 %v154
    %v528 = vunpack.c.h.b16 %v154
    %v529 = vunpack.c.l.b16 %v155
    %v530 = vunpack.c.h.b16 %v155
    %v531 = vunpack.c.l.b16 %v156
    %v532 = vunpack.c.h.b16 %v156
    %v533 = vunpack.c.l.b16 %v157
    %v534 = vunpack.c.h.b16 %v157
    %v535 = vunpack.c.l.b16 %v158
    %v536 = vunpack.c.h.b16 %v158
    %v537 = vunpack.c.l.b16 %v159
    %v538 = vunpack.c.h.b16 %v159
    %v539 = vunpack.c.l.b16 %v160
    %v540 = vunpack.c.h.b16 %v160
    %v541 = vunpack.c.l.b16 %v161
    %v542 = vunpack.c.h.b16 %v161
    %v543 = vunpack.c.l.b16 %v162
    %v544 = vunpack.c.h.b16 %v162
    %v545 = vunpack.c.l.b16 %v163
    %v546 = vunpack.c.h.b16 %v163
    %v547 = vunpack.c.l.b16 %v164
    %v548 = vunpack.c.h.b16 %v164
    %v549 = vunpack.c.l.b16 %v165
    %v550 = vunpack.c.h.b16 %v165
    %v551 = vunpack.c.l.b16 %v166
    %v552 = vunpack.c.h.b16 %v166
    %v553 = vunpack.c.l.b16 %v167
    %v554 = vunpack.c.h.b16 %v167
    %v555 = vunpack.c.l.b16 %v168
    %v556 = vunpack.c.h.b16 %v168
    %v557 = vunpack.c.l.b16 %v169
    %v558 = vunpack.c.h.b16 %v169
    %v559 = vunpack.c.l.b16 %v170
    %v560 = vunpack.c.h.b16 %v170
    %v561 = vunpack.c.l.b16 %v171
    %v562 = vunpack.c.h.b16 %v171
    %v563 = vunpack.c.l.b16 %v172
    %v564 = vunpack.c.h.b16 %v172
    %v565 = vunpack.c.l.b16 %v173
    %v566 = vunpack.c.h.b16 %v173
    %v567 = vunpack.c.l.b16 %v174
    %v568 = vunpack.c.h.b16 %v174
    %v569 = vunpack.c.l.b16 %v175
    %v570 = vunpack.c.h.b16 %v175
    %v571 = vunpack.c.l.b16 %v176
    %v572 = vunpack.c.h.b16 %v176
    %v573 = vunpack.c.l.b16 %v177
    %v574 = vunpack.c.h.b16 %v177
    %v575 = vunpack.c.l.b16 %v178
    %v576 = vunpack.c.h.b16 %v178
    %v577 = vunpack.c.l.b16 %v179
    %v578 = vunpack.c.h.b16 %v179
    %v579 = vunpack.c.l.b16 %v180
    %v580 = vunpack.c.h.b16 %v180
    %v581 = vunpack.c.l.b16 %v181
    %v582 = vunpack.c.h.b16 %v181
    %v583 = vunpack.c.l.b16 %v182
    %v584 = vunpack.c.h.b16 %v182
    %v585 = vunpack.c.l.b16 %v183
    %v586 = vunpack.c.h.b16 %v183
    %v587 = vunpack.c.l.b16 %v184
    %v588 = vunpack.c.h.b16 %v184
    %v589 = vunpack.c.l.b16 %v185
    %v590 = vunpack.c.h.b16 %v185
    %v591 = vunpack.c.l.b16 %v186
    %v592 = vunpack.c.h.b16 %v186
    %v593 = vunpack.c.l.b16 %v187
    %v594 = vunpack.c.h.b16 %v187
    %v595 = vunpack.c.l.b16 %v188
    %v596 = vunpack.c.h.b16 %v188
    %v597 = vunpack.c.l.b16 %v189
    %v598 = vunpack.c.h.b16 %v189
    %v599 = vunpack.c.l.b16 %v190
    %v600 = vunpack.c.h.b16 %v190
    %v601 = vunpack.c.l.b16 %v191
    %v602 = vunpack.c.h.b16 %v191
    %v603 = vunpack.c.l.b16 %v192
    %v604 = vunpack.c.h.b16 %v192
    %v605 = vunpack.c.l.b16 %v193
    %v606 = vunpack.c.h.b16 %v193
    %v607 = vunpack.c.l.b16 %v194
    %v608 = vunpack.c.h.b16 %v194
    %v609 = vpack.c.b16 %v361, %v353
    %v610 = vpack.c.b16 %v362, %v354
    %v611 = vpack.c.b16 %v363, %v355
    %v612 = vpack.c.b16 %v364, %v356
    %v613 = vpack.c.b16 %v365, %v357
    %v614 = vpack.c.b16 %v366, %v358
    %v615 = vpack.c.b16 %v367, %v359
    %v616 = vpack.c.b16 %v368, %v360
    %v617 = vpack.c.b16 %v377, %v369
    %v618 = vpack.c.b16 %v378, %v370
    %v619 = vpack.c.b16 %v379, %v371
    %v620 = vpack.c.b16 %v380, %v372
    %v621 = vpack.c.b16 %v381, %v373
    %v622 = vpack.c.b16 %v382, %v374
    %v623 = vpack.c.b16 %v383, %v375
    %v624 = vpack.c.b16 %v384, %v376
    %v625 = vpack.c.b16 %v393, %v385
    %v626 = vpack.c.b16 %v394, %v386
    %v627 = vpack.c.b16 %v395, %v387
    %v628 = vpack.c.b16 %v396, %v388
    %v629 = vpack.c.b16 %v397, %v389
    %v630 = vpack.c.b16 %v398, %v390
    %v631 = vpack.c.b16 %v399, %v391
    %v632 = vpack.c.b16 %v400, %v392
    %v633 = vpack.c.b16 %v409, %v401
    %v634 = vpack.c.b16 %v410, %v402
    %v635 = vpack.c.b16 %v411, %v403
    %v636 = vpack.c.b16 %v412, %v404
    %v637 = vpack.c.b16 %v413, %v405
    %v638 = vpack.c.b16 %v414, %v406
    %v639 = vpack.c.b16 %v415, %v407
    %v640 = vpack.c.b16 %v416, %v408
    %v641 = vpack.c.b16 %v425, %v417
    %v642 = vpack.c.b16 %v426, %v418
    %v643 = vpack.c.b16 %v427, %v419
    %v644 = vpack.c.b16 %v428, %v420
    %v645 = vpack.c.b16 %v429, %v421
    %v646 = vpack.c.b16 %v430, %v422
    %v647 = vpack.c.b16 %v431, %v423
    %v648 = vpack.c.b16 %v432, %v424
    %v649 = vpack.c.b16 %v441, %v433
    %v650 = vpack.c.b16 %v442, %v434
    %v651 = vpack.c.b16 %v443, %v435
    %v652 = vpack.c.b16 %v444, %v436
    %v653 = vpack.c.b16 %v445, %v437
    %v654 = vpack.c.b16 %v446, %v438
    %v655 = vpack.c.b16 %v447, %v439
    %v656 = vpack.c.b16 %v448, %v440
    %v657 = vpack.c.b16 %v457, %v449
    %v658 = vpack.c.b16 %v458, %v450
    %v659 = vpack.c.b16 %v459, %v451
    %v660 = vpack.c.b16 %v460, %v452
    %v661 = vpack.c.b16 %v461, %v453
    %v662 = vpack.c.b16 %v462, %v454
    %v663 = vpack.c.b16 %v463, %v455
    %v664 = vpack.c.b16 %v464, %v456
    %v665 = vpack.c.b16 %v473, %v465
    %v666 = vpack.c.b16 %v474, %v466
    %v667 = vpack.c.b16 %v475, %v467
    %v668 = vpack.c.b16 %v476, %v468
    %v669 = vpack.c.b16 %v477, %v469
    %v670 = vpack.c.b16 %v478, %v470
    %v671 = vpack.c.b16 %v479, %v471
    %v672 = vpack.c.b16 %v480, %v472
    %v673 = vpack.c.b16 %v489, %v481
    %v674 = vpack.c.b16 %v490, %v482
    %v675 = vpack.c.b16 %v491, %v483
    %v676 = vpack.c.b16 %v492, %v484
    %v677 = vpack.c.b16 %v493, %v485
    %v678 = vpack.c.b16 %v494, %v486
    %v679 = vpack.c.b16 %v495, %v487
    %v680 = vpack.c.b16 %v496, %v488
    %v681 = vpack.c.b16 %v505, %v497
    %v682 = vpack.c.b16 %v506, %v498
    %v683 = vpack.c.b16 %v507, %v499
    %v684 = vpack.c.b16 %v508, %v500
    %v685 = vpack.c.b16 %v509, %v501
    %v686 = vpack.c.b16 %v510, %v502
    %v687 = vpack.c.b16 %v511, %v503
    %v688 = vpack.c.b16 %v512, %v504
    %v689 = vpack.c.b16 %v521, %v513
    %v690 = vpack.c.b16 %v522, %v514
    %v691 = vpack.c.b16 %v523, %v515
    %v692 = vpack.c.b16 %v524, %v516
    %v693 = vpack.c.b16 %v525, %v517
    %v694 = vpack.c.b16 %v526, %v518
    %v695 = vpack.c.b16 %v527, %v519
    %v696 = vpack.c.b16 %v528, %v520
    %v697 = vpack.c.b16 %v537, %v529
    %v698 = vpack.c.b16 %v538, %v530
    %v699 = vpack.c.b16 %v539, %v531
    %v700 = vpack.c.b16 %v540, %v532
    %v701 = vpack.c.b16 %v541, %v533
    %v702 = vpack.c.b16 %v542, %v534
    %v703 = vpack.c.b16 %v543, %v535
    %v704 = vpack.c.b16 %v544, %v536
    %v705 = vpack.c.b16 %v553, %v545
    %v706 = vpack.c.b16 %v554, %v546
    %v707 = vpack.c.b16 %v555, %v547
    %v708 = vpack.c.b16 %v556, %v548
    %v709 = vpack.c.b16 %v557, %v549
    %v710 = vpack.c.b16 %v558, %v550
    %v711 = vpack.c.b16 %v559, %v551
    %v712 = vpack.c.b16 %v560, %v552
    %v713 = vpack.c.b16 %v569, %v561
    %v714 = vpack.c.b16 %v570, %v562
    %v715 = vpack.c.b16 %v571, %v563
    %v716 = vpack.c.b16 %v572, %v564
    %v717 = vpack.c.b16 %v573, %v565
    %v718 = vpack.c.b16 %v574, %v566
    %v719 = vpack.c.b16 %v575, %v567
    %v720 = vpack.c.b16 %v576, %v568
    %v721 = vpack.c.b16 %v585, %v577
    %v722 = vpack.c.b16 %v586, %v578
    %v723 = vpack.c.b16 %v587, %v579
    %v724 = vpack.c.b16 %v588, %v580
    %v725 = vpack.c.b16 %v589, %v581
    %v726 = vpack.c.b16 %v590, %v582
    %v727 = vpack.c.b16 %v591, %v583
    %v728 = vpack.c.b16 %v592, %v584
    %v729 = vpack.c.b16 %v601, %v593
    %v730 = vpack.c.b16 %v602, %v594
    %v731 = vpack.c.b16 %v603, %v595
    %v732 = vpack.c.b16 %v604, %v596
    %v733 = vpack.c.b16 %v605, %v597
    %v734 = vpack.c.b16 %v606, %v598
    %v735 = vpack.c.b16 %v607, %v599
    %v736 = vpack.c.b16 %v608, %v600
    %865 = vmatprep.subr.bf16.mxu0 %v666
    %866 = vmatpush1.bf16.msra.mxu0 %v665
    %867 = vmatprep.subr.bf16.mxu0 %v658
    %868 = vmatpush1.bf16.msra.mxu0 %v657
    %869 = vmatprep.subr.bf16.mxu0 %v650
    %870 = vmatpush1.bf16.msra.mxu0 %v649
    %871 = vmatprep.subr.bf16.mxu0 %v642
    %872 = vmatpush1.bf16.msra.mxu0 %v641
    %873 = vmatprep.subr.bf16.mxu0 %v634
    %874 = vmatpush1.bf16.msra.mxu0 %v633
    %875 = vmatprep.subr.bf16.mxu0 %v626
    %876 = vmatpush1.bf16.msra.mxu0 %v625
    %877 = vmatprep.subr.bf16.mxu0 %v618
    %878 = vmatpush1.bf16.msra.mxu0 %v617
    %879 = vmatprep.subr.bf16.mxu0 %v610
    %880 = vmatpush1.bf16.msra.mxu0 %v609
    %881 = vmatprep.subr.bf16.mxu0 %v730
    %882 = vmatpush2.bf16.msra.mxu0 %v729
    %883 = vmatprep.subr.bf16.mxu0 %v722
    %884 = vmatpush2.bf16.msra.mxu0 %v721
    %885 = vmatprep.subr.bf16.mxu0 %v714
    %886 = vmatpush2.bf16.msra.mxu0 %v713
    %887 = vmatprep.subr.bf16.mxu0 %v706
    %888 = vmatpush2.bf16.msra.mxu0 %v705
    %889 = vmatprep.subr.bf16.mxu0 %v698
    %890 = vmatpush2.bf16.msra.mxu0 %v697
    %891 = vmatprep.subr.bf16.mxu0 %v690
    %892 = vmatpush2.bf16.msra.mxu0 %v689
    %893 = vmatprep.subr.bf16.mxu0 %v682
    %894 = vmatpush2.bf16.msra.mxu0 %v681
    %895 = vmatprep.subr.bf16.mxu0 %v674
    %896 = vmatpush2.bf16.msra.mxu0 %v673
    %897 = vmatprep.mubr.bf16.mxu0 %v214
    %898 = vmatmul.mubr.bf16.gmra.mxu0 %v213
    %v899 = vpop.f32.mrf.mxu0
    %v900 = vadd.f32 0.0, %v899
    %v901 = vpop.f32.mrf.mxu0
    %v902 = vadd.f32 0.0, %v901
    %v903 = vpop.f32.mrf.mxu0
    %v904 = vadd.f32 0.0, %v903
    %v905 = vpop.f32.mrf.mxu0
    %v906 = vadd.f32 0.0, %v905
    %907 = vmatprep.mubr.bf16.mxu0 %v216
    %908 = vmatmul.mubr.bf16.gmra.mxu0 %v215
    %v909 = vpop.f32.mrf.mxu0
    %v910 = vadd.f32 0.0, %v909
    %v911 = vpop.f32.mrf.mxu0
    %v912 = vadd.f32 0.0, %v911
    %v913 = vpop.f32.mrf.mxu0
    %v914 = vadd.f32 0.0, %v913
    %v915 = vpop.f32.mrf.mxu0
    %v916 = vadd.f32 0.0, %v915
    %917 = vmatprep.mubr.bf16.mxu0 %v218
    %918 = vmatmul.mubr.bf16.gmra.mxu0 %v217
    %v919 = vpop.f32.mrf.mxu0
    %v920 = vadd.f32 0.0, %v919
    %v921 = vpop.f32.mrf.mxu0
    %v922 = vadd.f32 0.0, %v921
    %v923 = vpop.f32.mrf.mxu0
    %v924 = vadd.f32 0.0, %v923
    %v925 = vpop.f32.mrf.mxu0
    %v926 = vadd.f32 0.0, %v925
    %927 = vdwg.mxu0
    %928 = vmatprep.subr.bf16.mxu0 %v668
    %929 = vmatpush1.bf16.msra.mxu0 %v667
    %930 = vmatprep.subr.bf16.mxu0 %v660
    %931 = vmatpush1.bf16.msra.mxu0 %v659
    %932 = vmatprep.subr.bf16.mxu0 %v652
    %933 = vmatpush1.bf16.msra.mxu0 %v651
    %934 = vmatprep.subr.bf16.mxu0 %v644
    %935 = vmatpush1.bf16.msra.mxu0 %v643
    %936 = vmatprep.subr.bf16.mxu0 %v636
    %937 = vmatpush1.bf16.msra.mxu0 %v635
    %938 = vmatprep.subr.bf16.mxu0 %v628
    %939 = vmatpush1.bf16.msra.mxu0 %v627
    %940 = vmatprep.subr.bf16.mxu0 %v620
    %941 = vmatpush1.bf16.msra.mxu0 %v619
    %942 = vmatprep.subr.bf16.mxu0 %v612
    %943 = vmatpush1.bf16.msra.mxu0 %v611
    %944 = vmatprep.subr.bf16.mxu0 %v732
    %945 = vmatpush2.bf16.msra.mxu0 %v731
    %946 = vmatprep.subr.bf16.mxu0 %v724
    %947 = vmatpush2.bf16.msra.mxu0 %v723
    %948 = vmatprep.subr.bf16.mxu0 %v716
    %949 = vmatpush2.bf16.msra.mxu0 %v715
    %950 = vmatprep.subr.bf16.mxu0 %v708
    %951 = vmatpush2.bf16.msra.mxu0 %v707
    %952 = vmatprep.subr.bf16.mxu0 %v700
    %953 = vmatpush2.bf16.msra.mxu0 %v699
    %954 = vmatprep.subr.bf16.mxu0 %v692
    %955 = vmatpush2.bf16.msra.mxu0 %v691
    %956 = vmatprep.subr.bf16.mxu0 %v684
    %957 = vmatpush2.bf16.msra.mxu0 %v683
    %958 = vmatprep.subr.bf16.mxu0 %v676
    %959 = vmatpush2.bf16.msra.mxu0 %v675
    %960 = vmatprep.mubr.bf16.mxu0 %v214
    %961 = vmatmul.mubr.bf16.gmra.mxu0 %v213
    %v962 = vpop.f32.mrf.mxu0
    %v963 = vadd.f32 0.0, %v962
    %v964 = vpop.f32.mrf.mxu0
    %v965 = vadd.f32 0.0, %v964
    %v966 = vpop.f32.mrf.mxu0
    %v967 = vadd.f32 0.0, %v966
    %v968 = vpop.f32.mrf.mxu0
    %v969 = vadd.f32 0.0, %v968
    %970 = vmatprep.mubr.bf16.mxu0 %v216
    %971 = vmatmul.mubr.bf16.gmra.mxu0 %v215
    %v972 = vpop.f32.mrf.mxu0
    %v973 = vadd.f32 0.0, %v972
    %v974 = vpop.f32.mrf.mxu0
    %v975 = vadd.f32 0.0, %v974
    %v976 = vpop.f32.mrf.mxu0
    %v977 = vadd.f32 0.0, %v976
    %v978 = vpop.f32.mrf.mxu0
    %v979 = vadd.f32 0.0, %v978
    %980 = vmatprep.mubr.bf16.mxu0 %v218
    %981 = vmatmul.mubr.bf16.gmra.mxu0 %v217
    %v982 = vpop.f32.mrf.mxu0
    %v983 = vadd.f32 0.0, %v982
    %v984 = vpop.f32.mrf.mxu0
    %v985 = vadd.f32 0.0, %v984
    %v986 = vpop.f32.mrf.mxu0
    %v987 = vadd.f32 0.0, %v986
    %v988 = vpop.f32.mrf.mxu0
    %v989 = vadd.f32 0.0, %v988
    %990 = vdwg.mxu0
    %991 = vmatprep.subr.bf16.mxu0 %v670
    %992 = vmatpush1.bf16.msra.mxu0 %v669
    %993 = vmatprep.subr.bf16.mxu0 %v662
    %994 = vmatpush1.bf16.msra.mxu0 %v661
    %995 = vmatprep.subr.bf16.mxu0 %v654
    %996 = vmatpush1.bf16.msra.mxu0 %v653
    %997 = vmatprep.subr.bf16.mxu0 %v646
    %998 = vmatpush1.bf16.msra.mxu0 %v645
    %999 = vmatprep.subr.bf16.mxu0 %v638
    %1000 = vmatpush1.bf16.msra.mxu0 %v637
    %1001 = vmatprep.subr.bf16.mxu0 %v630
    %1002 = vmatpush1.bf16.msra.mxu0 %v629
    %1003 = vmatprep.subr.bf16.mxu0 %v622
    %1004 = vmatpush1.bf16.msra.mxu0 %v621
    %1005 = vmatprep.subr.bf16.mxu0 %v614
    %1006 = vmatpush1.bf16.msra.mxu0 %v613
    %1007 = vmatprep.subr.bf16.mxu0 %v734
    %1008 = vmatpush2.bf16.msra.mxu0 %v733
    %1009 = vmatprep.subr.bf16.mxu0 %v726
    %1010 = vmatpush2.bf16.msra.mxu0 %v725
    %1011 = vmatprep.subr.bf16.mxu0 %v718
    %1012 = vmatpush2.bf16.msra.mxu0 %v717
    %1013 = vmatprep.subr.bf16.mxu0 %v710
    %1014 = vmatpush2.bf16.msra.mxu0 %v709
    %1015 = vmatprep.subr.bf16.mxu0 %v702
    %1016 = vmatpush2.bf16.msra.mxu0 %v701
    %1017 = vmatprep.subr.bf16.mxu0 %v694
    %1018 = vmatpush2.bf16.msra.mxu0 %v693
    %1019 = vmatprep.subr.bf16.mxu0 %v686
    %1020 = vmatpush2.bf16.msra.mxu0 %v685
    %1021 = vmatprep.subr.bf16.mxu0 %v678
    %1022 = vmatpush2.bf16.msra.mxu0 %v677
    %1023 = vmatprep.mubr.bf16.mxu0 %v214
    %1024 = vmatmul.mubr.bf16.gmra.mxu0 %v213
    %v1025 = vpop.f32.mrf.mxu0
    %v1026 = vadd.f32 0.0, %v1025
    %v1027 = vpop.f32.mrf.mxu0
    %v1028 = vadd.f32 0.0, %v1027
    %v1029 = vpop.f32.mrf.mxu0
    %v1030 = vadd.f32 0.0, %v1029
    %v1031 = vpop.f32.mrf.mxu0
    %v1032 = vadd.f32 0.0, %v1031
    %1033 = vmatprep.mubr.bf16.mxu0 %v216
    %1034 = vmatmul.mubr.bf16.gmra.mxu0 %v215
    %v1035 = vpop.f32.mrf.mxu0
    %v1036 = vadd.f32 0.0, %v1035
    %v1037 = vpop.f32.mrf.mxu0
    %v1038 = vadd.f32 0.0, %v1037
    %v1039 = vpop.f32.mrf.mxu0
    %v1040 = vadd.f32 0.0, %v1039
    %v1041 = vpop.f32.mrf.mxu0
    %v1042 = vadd.f32 0.0, %v1041
    %1043 = vmatprep.mubr.bf16.mxu0 %v218
    %1044 = vmatmul.mubr.bf16.gmra.mxu0 %v217
    %v1045 = vpop.f32.mrf.mxu0
    %v1046 = vadd.f32 0.0, %v1045
    %v1047 = vpop.f32.mrf.mxu0
    %v1048 = vadd.f32 0.0, %v1047
    %v1049 = vpop.f32.mrf.mxu0
    %v1050 = vadd.f32 0.0, %v1049
    %v1051 = vpop.f32.mrf.mxu0
    %v1052 = vadd.f32 0.0, %v1051
    %1053 = vdwg.mxu0
    %1054 = vmatprep.subr.bf16.mxu0 %v672
    %1055 = vmatpush1.bf16.msra.mxu0 %v671
    %1056 = vmatprep.subr.bf16.mxu0 %v664
    %1057 = vmatpush1.bf16.msra.mxu0 %v663
    %1058 = vmatprep.subr.bf16.mxu0 %v656
    %1059 = vmatpush1.bf16.msra.mxu0 %v655
    %1060 = vmatprep.subr.bf16.mxu0 %v648
    %1061 = vmatpush1.bf16.msra.mxu0 %v647
    %1062 = vmatprep.subr.bf16.mxu0 %v640
    %1063 = vmatpush1.bf16.msra.mxu0 %v639
    %1064 = vmatprep.subr.bf16.mxu0 %v632
    %1065 = vmatpush1.bf16.msra.mxu0 %v631
    %1066 = vmatprep.subr.bf16.mxu0 %v624
    %1067 = vmatpush1.bf16.msra.mxu0 %v623
    %1068 = vmatprep.subr.bf16.mxu0 %v616
    %1069 = vmatpush1.bf16.msra.mxu0 %v615
    %1070 = vmatprep.subr.bf16.mxu0 %v736
    %1071 = vmatpush2.bf16.msra.mxu0 %v735
    %1072 = vmatprep.subr.bf16.mxu0 %v728
    %1073 = vmatpush2.bf16.msra.mxu0 %v727
    %1074 = vmatprep.subr.bf16.mxu0 %v720
    %1075 = vmatpush2.bf16.msra.mxu0 %v719
    %1076 = vmatprep.subr.bf16.mxu0 %v712
    %1077 = vmatpush2.bf16.msra.mxu0 %v711
    %1078 = vmatprep.subr.bf16.mxu0 %v704
    %1079 = vmatpush2.bf16.msra.mxu0 %v703
    %1080 = vmatprep.subr.bf16.mxu0 %v696
    %1081 = vmatpush2.bf16.msra.mxu0 %v695
    %1082 = vmatprep.subr.bf16.mxu0 %v688
    %1083 = vmatpush2.bf16.msra.mxu0 %v687
    %1084 = vmatprep.subr.bf16.mxu0 %v680
    %1085 = vmatpush2.bf16.msra.mxu0 %v679
    %1086 = vmatprep.mubr.bf16.mxu0 %v214
    %1087 = vmatmul.mubr.bf16.gmra.mxu0 %v213
    %v1088 = vpop.f32.mrf.mxu0
    %v1089 = vadd.f32 0.0, %v1088
    %v1090 = vpop.f32.mrf.mxu0
    %v1091 = vadd.f32 0.0, %v1090
    %v1092 = vpop.f32.mrf.mxu0
    %v1093 = vadd.f32 0.0, %v1092
    %v1094 = vpop.f32.mrf.mxu0
    %v1095 = vadd.f32 0.0, %v1094
    %1096 = vmatprep.mubr.bf16.mxu0 %v216
    %1097 = vmatmul.mubr.bf16.gmra.mxu0 %v215
    %v1098 = vpop.f32.mrf.mxu0
    %v1099 = vadd.f32 0.0, %v1098
    %v1100 = vpop.f32.mrf.mxu0
    %v1101 = vadd.f32 0.0, %v1100
    %v1102 = vpop.f32.mrf.mxu0
    %v1103 = vadd.f32 0.0, %v1102
    %v1104 = vpop.f32.mrf.mxu0
    %v1105 = vadd.f32 0.0, %v1104
    %1106 = vmatprep.mubr.bf16.mxu0 %v218
    %1107 = vmatmul.mubr.bf16.gmra.mxu0 %v217
    %v1108 = vpop.f32.mrf.mxu0
    %v1109 = vadd.f32 0.0, %v1108
    %v1110 = vpop.f32.mrf.mxu0
    %v1111 = vadd.f32 0.0, %v1110
    %v1112 = vpop.f32.mrf.mxu0
    %v1113 = vadd.f32 0.0, %v1112
    %v1114 = vpop.f32.mrf.mxu0
    %v1115 = vadd.f32 0.0, %v1114
    %1116 = vdwg.mxu0
    %v1117 = vmax.f32 %v900, %v902
    %v1118 = vmax.f32 %v904, %v906
    %v1119 = vmax.f32 %v910, %v912
    %v1120 = vmax.f32 %v914, %v916
    %v1121 = vmax.f32 %v920, %v922
    %v1122 = vmax.f32 %v924, %v926
    %v1123 = vmax.f32 %v963, %v965
    %v1124 = vmax.f32 %v967, %v969
    %v1125 = vmax.f32 %v973, %v975
    %v1126 = vmax.f32 %v977, %v979
    %v1127 = vmax.f32 %v983, %v985
    %v1128 = vmax.f32 %v987, %v989
    %v1129 = vmax.f32 %v1117, %v1123
    %v1130 = vmax.f32 %v1118, %v1124
    %v1131 = vmax.f32 %v1119, %v1125
    %v1132 = vmax.f32 %v1120, %v1126
    %v1133 = vmax.f32 %v1121, %v1127
    %v1134 = vmax.f32 %v1122, %v1128
    %v1135 = vmax.f32 %v1026, %v1028
    %v1136 = vmax.f32 %v1030, %v1032
    %v1137 = vmax.f32 %v1036, %v1038
    %v1138 = vmax.f32 %v1040, %v1042
    %v1139 = vmax.f32 %v1046, %v1048
    %v1140 = vmax.f32 %v1050, %v1052
    %v1141 = vmax.f32 %v1089, %v1091
    %v1142 = vmax.f32 %v1093, %v1095
    %v1143 = vmax.f32 %v1099, %v1101
    %v1144 = vmax.f32 %v1103, %v1105
    %v1145 = vmax.f32 %v1109, %v1111
    %v1146 = vmax.f32 %v1113, %v1115
    %v1147 = vmax.f32 %v1135, %v1141
    %v1148 = vmax.f32 %v1136, %v1142
    %v1149 = vmax.f32 %v1137, %v1143
    %v1150 = vmax.f32 %v1138, %v1144
    %v1151 = vmax.f32 %v1139, %v1145
    %v1152 = vmax.f32 %v1140, %v1146
    %v1153 = vld [vmem:[%s2] sm:$0x1]
    %v1155 = vlaneseq
    %v1156 = vshrl.u32 %v1155, 7
    %v1157 = vsub.s32 0, %v1156
    %v1158 = vrot.slane %v1153, %v1157
    %v1160 = vadd.f32 %v1129, %v1158
    %v1161 = vadd.f32 %v1130, %v1158
    %v1162 = vadd.f32 %v1131, %v1158
    %v1163 = vadd.f32 %v1132, %v1158
    %v1164 = vadd.f32 %v1133, %v1158
    %v1165 = vadd.f32 %v1134, %v1158
    %v1166 = vmax.f32 %v1160, 0.0
    %v1167 = vmax.f32 %v1161, 0.0
    %v1168 = vmax.f32 %v1162, 0.0
    %v1169 = vmax.f32 %v1163, 0.0
    %v1170 = vmax.f32 %v1164, 0.0
    %v1171 = vmax.f32 %v1165, 0.0
    %v1172 = vadd.f32 %v1147, %v1158
    %v1173 = vadd.f32 %v1148, %v1158
    %v1174 = vadd.f32 %v1149, %v1158
    %v1175 = vadd.f32 %v1150, %v1158
    %v1176 = vadd.f32 %v1151, %v1158
    %v1177 = vadd.f32 %v1152, %v1158
    %v1178 = vmax.f32 %v1172, 0.0
    %v1179 = vmax.f32 %v1173, 0.0
    %v1180 = vmax.f32 %v1174, 0.0
    %v1181 = vmax.f32 %v1175, 0.0
    %v1182 = vmax.f32 %v1176, 0.0
    %v1183 = vmax.f32 %v1177, 0.0
    %v1184 = vpack.c.bf16 %v1166, %v1166
    %v1185 = vpack.c.bf16 %v1178, %v1178
    %v1186 = vpack.c.bf16 %v1167, %v1167
    %v1187 = vpack.c.bf16 %v1179, %v1179
    %v1188 = vpack.c.bf16 %v1168, %v1168
    %v1189 = vpack.c.bf16 %v1180, %v1180
    %v1190 = vpack.c.bf16 %v1169, %v1169
    %v1191 = vpack.c.bf16 %v1181, %v1181
    %v1192 = vpack.c.bf16 %v1170, %v1170
    %v1193 = vpack.c.bf16 %v1182, %v1182
    %v1194 = vpack.c.bf16 %v1171, %v1171
    %v1195 = vpack.c.bf16 %v1183, %v1183
    %v1208 = vunpack.c.l.b16 %v1184
    %v1209 = vunpack.c.l.b16 %v1185
    %v1210 = vunpack.c.l.b16 %v1186
    %v1211 = vunpack.c.l.b16 %v1187
    %v1212 = vunpack.c.l.b16 %v1188
    %v1213 = vunpack.c.l.b16 %v1189
    %v1214 = vunpack.c.l.b16 %v1190
    %v1215 = vunpack.c.l.b16 %v1191
    %v1216 = vunpack.c.l.b16 %v1192
    %v1217 = vunpack.c.l.b16 %v1193
    %v1218 = vunpack.c.l.b16 %v1194
    %v1219 = vunpack.c.l.b16 %v1195
    %v1220 = vpack.c.b16 %v1209, %v1208
    %v1221 = vpack.c.b16 %v1211, %v1210
    %v1222 = vpack.c.b16 %v1213, %v1212
    %v1223 = vpack.c.b16 %v1215, %v1214
    %v1224 = vpack.c.b16 %v1217, %v1216
    %v1225 = vpack.c.b16 %v1219, %v1218
    %1232 = vst [vmem:[#allocation2] sm:$0xff] %v1220
    %1233 = vst [vmem:[#allocation2 + $0x8] sm:$0xff] %v1221
    %1234 = vst [vmem:[#allocation2 + $0x10] sm:$0xff] %v1222
    %1235 = vst [vmem:[#allocation2 + $0x18] sm:$0xff] %v1223
    %1236 = vst [vmem:[#allocation2 + $0x20] sm:$0xff] %v1224
    %1237 = vst [vmem:[#allocation2 + $0x28] sm:$0xff] %v1225
    %v1238 = vld [vmem:[#allocation2] sm:$0xff]
    %v1239 = vld [vmem:[#allocation5] sm:$0xff]
    %v1240 = vld [vmem:[#allocation5 + $0x8] sm:$0xff]
    %v1241 = vld [vmem:[#allocation5 + $0x10] sm:$0xff]
    %v1242 = vld [vmem:[#allocation5 + $0x18] sm:$0xff]
    %v1243 = vld [vmem:[#allocation5 + $0x20] sm:$0xff]
    %v1244 = vld [vmem:[#allocation5 + $0x28] sm:$0xff]
    %v1245 = vld [vmem:[#allocation5 + $0x30] sm:$0xff]
    %v1246 = vld [vmem:[#allocation5 + $0x38] sm:$0xff]
    %v1247 = vld [vmem:[#allocation5 + $0x40] sm:$0xff]
    %v1248 = vld [vmem:[#allocation5 + $0x48] sm:$0xff]
    %v1249 = vld [vmem:[#allocation5 + $0x50] sm:$0xff]
    %v1250 = vld [vmem:[#allocation5 + $0x58] sm:$0xff]
    %v1251 = vld [vmem:[#allocation5 + $0x60] sm:$0xff]
    %v1252 = vld [vmem:[#allocation5 + $0x68] sm:$0xff]
    %v1253 = vld [vmem:[#allocation5 + $0x70] sm:$0xff]
    %v1254 = vld [vmem:[#allocation5 + $0x78] sm:$0xff]
    %v1255 = vld [vmem:[#allocation5 + $0x80] sm:$0xff]
    %v1256 = vld [vmem:[#allocation5 + $0x88] sm:$0xff]
    %v1257 = vld [vmem:[#allocation5 + $0x90] sm:$0xff]
    %v1258 = vld [vmem:[#allocation5 + $0x98] sm:$0xff]
    %v1259 = vld [vmem:[#allocation5 + $0xa0] sm:$0xff]
    %v1260 = vld [vmem:[#allocation5 + $0xa8] sm:$0xff]
    %v1261 = vld [vmem:[#allocation5 + $0xb0] sm:$0xff]
    %v1262 = vld [vmem:[#allocation5 + $0xb8] sm:$0xff]
    %v1263 = vld [vmem:[#allocation5 + $0xc0] sm:$0xff]
    %v1264 = vld [vmem:[#allocation5 + $0xc8] sm:$0xff]
    %v1265 = vld [vmem:[#allocation5 + $0xd0] sm:$0xff]
    %v1266 = vld [vmem:[#allocation5 + $0xd8] sm:$0xff]
    %v1267 = vld [vmem:[#allocation5 + $0xe0] sm:$0xff]
    %v1268 = vld [vmem:[#allocation5 + $0xe8] sm:$0xff]
    %v1269 = vld [vmem:[#allocation5 + $0xf0] sm:$0xff]
    %v1270 = vld [vmem:[#allocation5 + $0xf8] sm:$0xff]
    %v1271 = vld [vmem:[#allocation5 + $0x100] sm:$0xff]
    %v1272 = vld [vmem:[#allocation5 + $0x108] sm:$0xff]
    %v1273 = vld [vmem:[#allocation5 + $0x110] sm:$0xff]
    %v1274 = vld [vmem:[#allocation5 + $0x118] sm:$0xff]
    %v1275 = vld [vmem:[#allocation5 + $0x120] sm:$0xff]
    %v1276 = vld [vmem:[#allocation5 + $0x128] sm:$0xff]
    %v1277 = vld [vmem:[#allocation5 + $0x130] sm:$0xff]
    %v1278 = vld [vmem:[#allocation5 + $0x138] sm:$0xff]
    %v1279 = vld [vmem:[#allocation5 + $0x140] sm:$0xff]
    %v1280 = vld [vmem:[#allocation5 + $0x148] sm:$0xff]
    %v1281 = vld [vmem:[#allocation5 + $0x150] sm:$0xff]
    %v1282 = vld [vmem:[#allocation5 + $0x158] sm:$0xff]
    %v1283 = vld [vmem:[#allocation5 + $0x160] sm:$0xff]
    %v1284 = vld [vmem:[#allocation5 + $0x168] sm:$0xff]
    %v1285 = vld [vmem:[#allocation5 + $0x170] sm:$0xff]
    %v1286 = vld [vmem:[#allocation5 + $0x178] sm:$0xff]
    %v1287 = vld [vmem:[#allocation5 + $0x180] sm:$0xff]
    %v1288 = vld [vmem:[#allocation5 + $0x188] sm:$0xff]
    %v1289 = vld [vmem:[#allocation5 + $0x190] sm:$0xff]
    %v1290 = vld [vmem:[#allocation5 + $0x198] sm:$0xff]
    %v1291 = vld [vmem:[#allocation5 + $0x1a0] sm:$0xff]
    %v1292 = vld [vmem:[#allocation5 + $0x1a8] sm:$0xff]
    %v1293 = vld [vmem:[#allocation5 + $0x1b0] sm:$0xff]
    %v1294 = vld [vmem:[#allocation5 + $0x1b8] sm:$0xff]
    %v1295 = vld [vmem:[#allocation5 + $0x1c0] sm:$0xff]
    %v1296 = vld [vmem:[#allocation5 + $0x1c8] sm:$0xff]
    %v1297 = vld [vmem:[#allocation5 + $0x1d0] sm:$0xff]
    %v1298 = vld [vmem:[#allocation5 + $0x1d8] sm:$0xff]
    %v1299 = vld [vmem:[#allocation5 + $0x1e0] sm:$0xff]
    %v1300 = vld [vmem:[#allocation5 + $0x1e8] sm:$0xff]
    %v1301 = vld [vmem:[#allocation5 + $0x1f0] sm:$0xff]
    %v1302 = vld [vmem:[#allocation5 + $0x1f8] sm:$0xff]
    %s1303 = scalar_lea.vmem [#allocation2], 8
    %v1304 = vld [vmem:[%s1303] sm:$0xff]
    %s1305 = scalar_lea.vmem [#allocation5], 512
    %v1306 = vld [vmem:[%s1305] sm:$0xff]
    %v1307 = vld [vmem:[%s1305 + $0x8] sm:$0xff]
    %v1308 = vld [vmem:[%s1305 + $0x10] sm:$0xff]
    %v1309 = vld [vmem:[%s1305 + $0x18] sm:$0xff]
    %v1310 = vld [vmem:[%s1305 + $0x20] sm:$0xff]
    %v1311 = vld [vmem:[%s1305 + $0x28] sm:$0xff]
    %v1312 = vld [vmem:[%s1305 + $0x30] sm:$0xff]
    %v1313 = vld [vmem:[%s1305 + $0x38] sm:$0xff]
    %v1314 = vld [vmem:[%s1305 + $0x40] sm:$0xff]
    %v1315 = vld [vmem:[%s1305 + $0x48] sm:$0xff]
    %v1316 = vld [vmem:[%s1305 + $0x50] sm:$0xff]
    %v1317 = vld [vmem:[%s1305 + $0x58] sm:$0xff]
    %v1318 = vld [vmem:[%s1305 + $0x60] sm:$0xff]
    %v1319 = vld [vmem:[%s1305 + $0x68] sm:$0xff]
    %v1320 = vld [vmem:[%s1305 + $0x70] sm:$0xff]
    %v1321 = vld [vmem:[%s1305 + $0x78] sm:$0xff]
    %v1322 = vld [vmem:[%s1305 + $0x80] sm:$0xff]
    %v1323 = vld [vmem:[%s1305 + $0x88] sm:$0xff]
    %v1324 = vld [vmem:[%s1305 + $0x90] sm:$0xff]
    %v1325 = vld [vmem:[%s1305 + $0x98] sm:$0xff]
    %v1326 = vld [vmem:[%s1305 + $0xa0] sm:$0xff]
    %v1327 = vld [vmem:[%s1305 + $0xa8] sm:$0xff]
    %v1328 = vld [vmem:[%s1305 + $0xb0] sm:$0xff]
    %v1329 = vld [vmem:[%s1305 + $0xb8] sm:$0xff]
    %v1330 = vld [vmem:[%s1305 + $0xc0] sm:$0xff]
    %v1331 = vld [vmem:[%s1305 + $0xc8] sm:$0xff]
    %v1332 = vld [vmem:[%s1305 + $0xd0] sm:$0xff]
    %v1333 = vld [vmem:[%s1305 + $0xd8] sm:$0xff]
    %v1334 = vld [vmem:[%s1305 + $0xe0] sm:$0xff]
    %v1335 = vld [vmem:[%s1305 + $0xe8] sm:$0xff]
    %v1336 = vld [vmem:[%s1305 + $0xf0] sm:$0xff]
    %v1337 = vld [vmem:[%s1305 + $0xf8] sm:$0xff]
    %v1338 = vld [vmem:[%s1305 + $0x100] sm:$0xff]
    %v1339 = vld [vmem:[%s1305 + $0x108] sm:$0xff]
    %v1340 = vld [vmem:[%s1305 + $0x110] sm:$0xff]
    %v1341 = vld [vmem:[%s1305 + $0x118] sm:$0xff]
    %v1342 = vld [vmem:[%s1305 + $0x120] sm:$0xff]
    %v1343 = vld [vmem:[%s1305 + $0x128] sm:$0xff]
    %v1344 = vld [vmem:[%s1305 + $0x130] sm:$0xff]
    %v1345 = vld [vmem:[%s1305 + $0x138] sm:$0xff]
    %v1346 = vld [vmem:[%s1305 + $0x140] sm:$0xff]
    %v1347 = vld [vmem:[%s1305 + $0x148] sm:$0xff]
    %v1348 = vld [vmem:[%s1305 + $0x150] sm:$0xff]
    %v1349 = vld [vmem:[%s1305 + $0x158] sm:$0xff]
    %v1350 = vld [vmem:[%s1305 + $0x160] sm:$0xff]
    %v1351 = vld [vmem:[%s1305 + $0x168] sm:$0xff]
    %v1352 = vld [vmem:[%s1305 + $0x170] sm:$0xff]
    %v1353 = vld [vmem:[%s1305 + $0x178] sm:$0xff]
    %v1354 = vld [vmem:[%s1305 + $0x180] sm:$0xff]
    %v1355 = vld [vmem:[%s1305 + $0x188] sm:$0xff]
    %v1356 = vld [vmem:[%s1305 + $0x190] sm:$0xff]
    %v1357 = vld [vmem:[%s1305 + $0x198] sm:$0xff]
    %v1358 = vld [vmem:[%s1305 + $0x1a0] sm:$0xff]
    %v1359 = vld [vmem:[%s1305 + $0x1a8] sm:$0xff]
    %v1360 = vld [vmem:[%s1305 + $0x1b0] sm:$0xff]
    %v1361 = vld [vmem:[%s1305 + $0x1b8] sm:$0xff]
    %v1362 = vld [vmem:[%s1305 + $0x1c0] sm:$0xff]
    %v1363 = vld [vmem:[%s1305 + $0x1c8] sm:$0xff]
    %v1364 = vld [vmem:[%s1305 + $0x1d0] sm:$0xff]
    %v1365 = vld [vmem:[%s1305 + $0x1d8] sm:$0xff]
    %v1366 = vld [vmem:[%s1305 + $0x1e0] sm:$0xff]
    %v1367 = vld [vmem:[%s1305 + $0x1e8] sm:$0xff]
    %v1368 = vld [vmem:[%s1305 + $0x1f0] sm:$0xff]
    %v1369 = vld [vmem:[%s1305 + $0x1f8] sm:$0xff]
    %v1371 = vunpack.c.l.b16 %v1304
    %v1372 = vunpack.c.h.b16 %v1304
    %v1373 = vpack.c.b16 %v1371, %v1371
    %v1374 = vpack.c.b16 %v1372, %v1372
    %v1441 = vunpack.c.l.b16 %v1306
    %v1442 = vunpack.c.h.b16 %v1306
    %v1443 = vunpack.c.l.b16 %v1307
    %v1444 = vunpack.c.h.b16 %v1307
    %v1445 = vunpack.c.l.b16 %v1308
    %v1446 = vunpack.c.h.b16 %v1308
    %v1447 = vunpack.c.l.b16 %v1309
    %v1448 = vunpack.c.h.b16 %v1309
    %v1449 = vunpack.c.l.b16 %v1310
    %v1450 = vunpack.c.h.b16 %v1310
    %v1451 = vunpack.c.l.b16 %v1311
    %v1452 = vunpack.c.h.b16 %v1311
    %v1453 = vunpack.c.l.b16 %v1312
    %v1454 = vunpack.c.h.b16 %v1312
    %v1455 = vunpack.c.l.b16 %v1313
    %v1456 = vunpack.c.h.b16 %v1313
    %v1457 = vunpack.c.l.b16 %v1314
    %v1458 = vunpack.c.h.b16 %v1314
    %v1459 = vunpack.c.l.b16 %v1315
    %v1460 = vunpack.c.h.b16 %v1315
    %v1461 = vunpack.c.l.b16 %v1316
    %v1462 = vunpack.c.h.b16 %v1316
    %v1463 = vunpack.c.l.b16 %v1317
    %v1464 = vunpack.c.h.b16 %v1317
    %v1465 = vunpack.c.l.b16 %v1318
    %v1466 = vunpack.c.h.b16 %v1318
    %v1467 = vunpack.c.l.b16 %v1319
    %v1468 = vunpack.c.h.b16 %v1319
    %v1469 = vunpack.c.l.b16 %v1320
    %v1470 = vunpack.c.h.b16 %v1320
    %v1471 = vunpack.c.l.b16 %v1321
    %v1472 = vunpack.c.h.b16 %v1321
    %v1473 = vunpack.c.l.b16 %v1322
    %v1474 = vunpack.c.h.b16 %v1322
    %v1475 = vunpack.c.l.b16 %v1323
    %v1476 = vunpack.c.h.b16 %v1323
    %v1477 = vunpack.c.l.b16 %v1324
    %v1478 = vunpack.c.h.b16 %v1324
    %v1479 = vunpack.c.l.b16 %v1325
    %v1480 = vunpack.c.h.b16 %v1325
    %v1481 = vunpack.c.l.b16 %v1326
    %v1482 = vunpack.c.h.b16 %v1326
    %v1483 = vunpack.c.l.b16 %v1327
    %v1484 = vunpack.c.h.b16 %v1327
    %v1485 = vunpack.c.l.b16 %v1328
    %v1486 = vunpack.c.h.b16 %v1328
    %v1487 = vunpack.c.l.b16 %v1329
    %v1488 = vunpack.c.h.b16 %v1329
    %v1489 = vunpack.c.l.b16 %v1330
    %v1490 = vunpack.c.h.b16 %v1330
    %v1491 = vunpack.c.l.b16 %v1331
    %v1492 = vunpack.c.h.b16 %v1331
    %v1493 = vunpack.c.l.b16 %v1332
    %v1494 = vunpack.c.h.b16 %v1332
    %v1495 = vunpack.c.l.b16 %v1333
    %v1496 = vunpack.c.h.b16 %v1333
    %v1497 = vunpack.c.l.b16 %v1334
    %v1498 = vunpack.c.h.b16 %v1334
    %v1499 = vunpack.c.l.b16 %v1335
    %v1500 = vunpack.c.h.b16 %v1335
    %v1501 = vunpack.c.l.b16 %v1336
    %v1502 = vunpack.c.h.b16 %v1336
    %v1503 = vunpack.c.l.b16 %v1337
    %v1504 = vunpack.c.h.b16 %v1337
    %v1505 = vunpack.c.l.b16 %v1338
    %v1506 = vunpack.c.h.b16 %v1338
    %v1507 = vunpack.c.l.b16 %v1339
    %v1508 = vunpack.c.h.b16 %v1339
    %v1509 = vunpack.c.l.b16 %v1340
    %v1510 = vunpack.c.h.b16 %v1340
    %v1511 = vunpack.c.l.b16 %v1341
    %v1512 = vunpack.c.h.b16 %v1341
    %v1513 = vunpack.c.l.b16 %v1342
    %v1514 = vunpack.c.h.b16 %v1342
    %v1515 = vunpack.c.l.b16 %v1343
    %v1516 = vunpack.c.h.b16 %v1343
    %v1517 = vunpack.c.l.b16 %v1344
    %v1518 = vunpack.c.h.b16 %v1344
    %v1519 = vunpack.c.l.b16 %v1345
    %v1520 = vunpack.c.h.b16 %v1345
    %v1521 = vunpack.c.l.b16 %v1346
    %v1522 = vunpack.c.h.b16 %v1346
    %v1523 = vunpack.c.l.b16 %v1347
    %v1524 = vunpack.c.h.b16 %v1347
    %v1525 = vunpack.c.l.b16 %v1348
    %v1526 = vunpack.c.h.b16 %v1348
    %v1527 = vunpack.c.l.b16 %v1349
    %v1528 = vunpack.c.h.b16 %v1349
    %v1529 = vunpack.c.l.b16 %v1350
    %v1530 = vunpack.c.h.b16 %v1350
    %v1531 = vunpack.c.l.b16 %v1351
    %v1532 = vunpack.c.h.b16 %v1351
    %v1533 = vunpack.c.l.b16 %v1352
    %v1534 = vunpack.c.h.b16 %v1352
    %v1535 = vunpack.c.l.b16 %v1353
    %v1536 = vunpack.c.h.b16 %v1353
    %v1537 = vunpack.c.l.b16 %v1354
    %v1538 = vunpack.c.h.b16 %v1354
    %v1539 = vunpack.c.l.b16 %v1355
    %v1540 = vunpack.c.h.b16 %v1355
    %v1541 = vunpack.c.l.b16 %v1356
    %v1542 = vunpack.c.h.b16 %v1356
    %v1543 = vunpack.c.l.b16 %v1357
    %v1544 = vunpack.c.h.b16 %v1357
    %v1545 = vunpack.c.l.b16 %v1358
    %v1546 = vunpack.c.h.b16 %v1358
    %v1547 = vunpack.c.l.b16 %v1359
    %v1548 = vunpack.c.h.b16 %v1359
    %v1549 = vunpack.c.l.b16 %v1360
    %v1550 = vunpack.c.h.b16 %v1360
    %v1551 = vunpack.c.l.b16 %v1361
    %v1552 = vunpack.c.h.b16 %v1361
    %v1553 = vunpack.c.l.b16 %v1362
    %v1554 = vunpack.c.h.b16 %v1362
    %v1555 = vunpack.c.l.b16 %v1363
    %v1556 = vunpack.c.h.b16 %v1363
    %v1557 = vunpack.c.l.b16 %v1364
    %v1558 = vunpack.c.h.b16 %v1364
    %v1559 = vunpack.c.l.b16 %v1365
    %v1560 = vunpack.c.h.b16 %v1365
    %v1561 = vunpack.c.l.b16 %v1366
    %v1562 = vunpack.c.h.b16 %v1366
    %v1563 = vunpack.c.l.b16 %v1367
    %v1564 = vunpack.c.h.b16 %v1367
    %v1565 = vunpack.c.l.b16 %v1368
    %v1566 = vunpack.c.h.b16 %v1368
    %v1567 = vunpack.c.l.b16 %v1369
    %v1568 = vunpack.c.h.b16 %v1369
    %v1569 = vpack.c.b16 %v1445, %v1441
    %v1570 = vpack.c.b16 %v1446, %v1442
    %v1571 = vpack.c.b16 %v1447, %v1443
    %v1572 = vpack.c.b16 %v1448, %v1444
    %v1573 = vpack.c.b16 %v1453, %v1449
    %v1574 = vpack.c.b16 %v1454, %v1450
    %v1575 = vpack.c.b16 %v1455, %v1451
    %v1576 = vpack.c.b16 %v1456, %v1452
    %v1577 = vpack.c.b16 %v1461, %v1457
    %v1578 = vpack.c.b16 %v1462, %v1458
    %v1579 = vpack.c.b16 %v1463, %v1459
    %v1580 = vpack.c.b16 %v1464, %v1460
    %v1581 = vpack.c.b16 %v1469, %v1465
    %v1582 = vpack.c.b16 %v1470, %v1466
    %v1583 = vpack.c.b16 %v1471, %v1467
    %v1584 = vpack.c.b16 %v1472, %v1468
    %v1585 = vpack.c.b16 %v1477, %v1473
    %v1586 = vpack.c.b16 %v1478, %v1474
    %v1587 = vpack.c.b16 %v1479, %v1475
    %v1588 = vpack.c.b16 %v1480, %v1476
    %v1589 = vpack.c.b16 %v1485, %v1481
    %v1590 = vpack.c.b16 %v1486, %v1482
    %v1591 = vpack.c.b16 %v1487, %v1483
    %v1592 = vpack.c.b16 %v1488, %v1484
    %v1593 = vpack.c.b16 %v1493, %v1489
    %v1594 = vpack.c.b16 %v1494, %v1490
    %v1595 = vpack.c.b16 %v1495, %v1491
    %v1596 = vpack.c.b16 %v1496, %v1492
    %v1597 = vpack.c.b16 %v1501, %v1497
    %v1598 = vpack.c.b16 %v1502, %v1498
    %v1599 = vpack.c.b16 %v1503, %v1499
    %v1600 = vpack.c.b16 %v1504, %v1500
    %v1601 = vpack.c.b16 %v1509, %v1505
    %v1602 = vpack.c.b16 %v1510, %v1506
    %v1603 = vpack.c.b16 %v1511, %v1507
    %v1604 = vpack.c.b16 %v1512, %v1508
    %v1605 = vpack.c.b16 %v1517, %v1513
    %v1606 = vpack.c.b16 %v1518, %v1514
    %v1607 = vpack.c.b16 %v1519, %v1515
    %v1608 = vpack.c.b16 %v1520, %v1516
    %v1609 = vpack.c.b16 %v1525, %v1521
    %v1610 = vpack.c.b16 %v1526, %v1522
    %v1611 = vpack.c.b16 %v1527, %v1523
    %v1612 = vpack.c.b16 %v1528, %v1524
    %v1613 = vpack.c.b16 %v1533, %v1529
    %v1614 = vpack.c.b16 %v1534, %v1530
    %v1615 = vpack.c.b16 %v1535, %v1531
    %v1616 = vpack.c.b16 %v1536, %v1532
    %v1617 = vpack.c.b16 %v1541, %v1537
    %v1618 = vpack.c.b16 %v1542, %v1538
    %v1619 = vpack.c.b16 %v1543, %v1539
    %v1620 = vpack.c.b16 %v1544, %v1540
    %v1621 = vpack.c.b16 %v1549, %v1545
    %v1622 = vpack.c.b16 %v1550, %v1546
    %v1623 = vpack.c.b16 %v1551, %v1547
    %v1624 = vpack.c.b16 %v1552, %v1548
    %v1625 = vpack.c.b16 %v1557, %v1553
    %v1626 = vpack.c.b16 %v1558, %v1554
    %v1627 = vpack.c.b16 %v1559, %v1555
    %v1628 = vpack.c.b16 %v1560, %v1556
    %v1629 = vpack.c.b16 %v1565, %v1561
    %v1630 = vpack.c.b16 %v1566, %v1562
    %v1631 = vpack.c.b16 %v1567, %v1563
    %v1632 = vpack.c.b16 %v1568, %v1564
    %1697 = vmatprep.subr.bf16.mxu0 %v1598
    %1698 = vmatpush1.bf16.msra.mxu0 %v1597
    %1699 = vmatprep.subr.bf16.mxu0 %v1594
    %1700 = vmatpush1.bf16.msra.mxu0 %v1593
    %1701 = vmatprep.subr.bf16.mxu0 %v1590
    %1702 = vmatpush1.bf16.msra.mxu0 %v1589
    %1703 = vmatprep.subr.bf16.mxu0 %v1586
    %1704 = vmatpush1.bf16.msra.mxu0 %v1585
    %1705 = vmatprep.subr.bf16.mxu0 %v1582
    %1706 = vmatpush1.bf16.msra.mxu0 %v1581
    %1707 = vmatprep.subr.bf16.mxu0 %v1578
    %1708 = vmatpush1.bf16.msra.mxu0 %v1577
    %1709 = vmatprep.subr.bf16.mxu0 %v1574
    %1710 = vmatpush1.bf16.msra.mxu0 %v1573
    %1711 = vmatprep.subr.bf16.mxu0 %v1570
    %1712 = vmatpush1.bf16.msra.mxu0 %v1569
    %1713 = vmatprep.subr.bf16.mxu0 %v1630
    %1714 = vmatpush2.bf16.msra.mxu0 %v1629
    %1715 = vmatprep.subr.bf16.mxu0 %v1626
    %1716 = vmatpush2.bf16.msra.mxu0 %v1625
    %1717 = vmatprep.subr.bf16.mxu0 %v1622
    %1718 = vmatpush2.bf16.msra.mxu0 %v1621
    %1719 = vmatprep.subr.bf16.mxu0 %v1618
    %1720 = vmatpush2.bf16.msra.mxu0 %v1617
    %1721 = vmatprep.subr.bf16.mxu0 %v1614
    %1722 = vmatpush2.bf16.msra.mxu0 %v1613
    %1723 = vmatprep.subr.bf16.mxu0 %v1610
    %1724 = vmatpush2.bf16.msra.mxu0 %v1609
    %1725 = vmatprep.subr.bf16.mxu0 %v1606
    %1726 = vmatpush2.bf16.msra.mxu0 %v1605
    %1727 = vmatprep.subr.bf16.mxu0 %v1602
    %1728 = vmatpush2.bf16.msra.mxu0 %v1601
    %1729 = vmatprep.mubr.bf16.mxu0 %v1374
    %1730 = vmatmul.mubr.bf16.gmra.mxu0 %v1373
    %v1731 = vpop.f32.mrf.mxu0
    %v1732 = vadd.f32 0.0, %v1731
    %v1733 = vpop.f32.mrf.mxu0
    %v1734 = vadd.f32 0.0, %v1733
    %v1735 = vpop.f32.mrf.mxu0
    %v1736 = vpop.f32.mrf.mxu0
    %1737 = vdwg.mxu0
    %1738 = vmatprep.subr.bf16.mxu0 %v1600
    %1739 = vmatpush1.bf16.msra.mxu0 %v1599
    %1740 = vmatprep.subr.bf16.mxu0 %v1596
    %1741 = vmatpush1.bf16.msra.mxu0 %v1595
    %1742 = vmatprep.subr.bf16.mxu0 %v1592
    %1743 = vmatpush1.bf16.msra.mxu0 %v1591
    %1744 = vmatprep.subr.bf16.mxu0 %v1588
    %1745 = vmatpush1.bf16.msra.mxu0 %v1587
    %1746 = vmatprep.subr.bf16.mxu0 %v1584
    %1747 = vmatpush1.bf16.msra.mxu0 %v1583
    %1748 = vmatprep.subr.bf16.mxu0 %v1580
    %1749 = vmatpush1.bf16.msra.mxu0 %v1579
    %1750 = vmatprep.subr.bf16.mxu0 %v1576
    %1751 = vmatpush1.bf16.msra.mxu0 %v1575
    %1752 = vmatprep.subr.bf16.mxu0 %v1572
    %1753 = vmatpush1.bf16.msra.mxu0 %v1571
    %1754 = vmatprep.subr.bf16.mxu0 %v1632
    %1755 = vmatpush2.bf16.msra.mxu0 %v1631
    %1756 = vmatprep.subr.bf16.mxu0 %v1628
    %1757 = vmatpush2.bf16.msra.mxu0 %v1627
    %1758 = vmatprep.subr.bf16.mxu0 %v1624
    %1759 = vmatpush2.bf16.msra.mxu0 %v1623
    %1760 = vmatprep.subr.bf16.mxu0 %v1620
    %1761 = vmatpush2.bf16.msra.mxu0 %v1619
    %1762 = vmatprep.subr.bf16.mxu0 %v1616
    %1763 = vmatpush2.bf16.msra.mxu0 %v1615
    %1764 = vmatprep.subr.bf16.mxu0 %v1612
    %1765 = vmatpush2.bf16.msra.mxu0 %v1611
    %1766 = vmatprep.subr.bf16.mxu0 %v1608
    %1767 = vmatpush2.bf16.msra.mxu0 %v1607
    %1768 = vmatprep.subr.bf16.mxu0 %v1604
    %1769 = vmatpush2.bf16.msra.mxu0 %v1603
    %1770 = vmatprep.mubr.bf16.mxu0 %v1374
    %1771 = vmatmul.mubr.bf16.gmra.mxu0 %v1373
    %v1772 = vpop.f32.mrf.mxu0
    %v1773 = vadd.f32 0.0, %v1772
    %v1774 = vpop.f32.mrf.mxu0
    %v1775 = vadd.f32 0.0, %v1774
    %v1776 = vpop.f32.mrf.mxu0
    %v1777 = vpop.f32.mrf.mxu0
    %1778 = vdwg.mxu0
    %v1780 = vunpack.c.l.b16 %v1238
    %v1781 = vunpack.c.h.b16 %v1238
    %v1782 = vpack.c.b16 %v1780, %v1780
    %v1783 = vpack.c.b16 %v1781, %v1781
    %v1850 = vunpack.c.l.b16 %v1239
    %v1851 = vunpack.c.h.b16 %v1239
    %v1852 = vunpack.c.l.b16 %v1240
    %v1853 = vunpack.c.h.b16 %v1240
    %v1854 = vunpack.c.l.b16 %v1241
    %v1855 = vunpack.c.h.b16 %v1241
    %v1856 = vunpack.c.l.b16 %v1242
    %v1857 = vunpack.c.h.b16 %v1242
    %v1858 = vunpack.c.l.b16 %v1243
    %v1859 = vunpack.c.h.b16 %v1243
    %v1860 = vunpack.c.l.b16 %v1244
    %v1861 = vunpack.c.h.b16 %v1244
    %v1862 = vunpack.c.l.b16 %v1245
    %v1863 = vunpack.c.h.b16 %v1245
    %v1864 = vunpack.c.l.b16 %v1246
    %v1865 = vunpack.c.h.b16 %v1246
    %v1866 = vunpack.c.l.b16 %v1247
    %v1867 = vunpack.c.h.b16 %v1247
    %v1868 = vunpack.c.l.b16 %v1248
    %v1869 = vunpack.c.h.b16 %v1248
    %v1870 = vunpack.c.l.b16 %v1249
    %v1871 = vunpack.c.h.b16 %v1249
    %v1872 = vunpack.c.l.b16 %v1250
    %v1873 = vunpack.c.h.b16 %v1250
    %v1874 = vunpack.c.l.b16 %v1251
    %v1875 = vunpack.c.h.b16 %v1251
    %v1876 = vunpack.c.l.b16 %v1252
    %v1877 = vunpack.c.h.b16 %v1252
    %v1878 = vunpack.c.l.b16 %v1253
    %v1879 = vunpack.c.h.b16 %v1253
    %v1880 = vunpack.c.l.b16 %v1254
    %v1881 = vunpack.c.h.b16 %v1254
    %v1882 = vunpack.c.l.b16 %v1255
    %v1883 = vunpack.c.h.b16 %v1255
    %v1884 = vunpack.c.l.b16 %v1256
    %v1885 = vunpack.c.h.b16 %v1256
    %v1886 = vunpack.c.l.b16 %v1257
    %v1887 = vunpack.c.h.b16 %v1257
    %v1888 = vunpack.c.l.b16 %v1258
    %v1889 = vunpack.c.h.b16 %v1258
    %v1890 = vunpack.c.l.b16 %v1259
    %v1891 = vunpack.c.h.b16 %v1259
    %v1892 = vunpack.c.l.b16 %v1260
    %v1893 = vunpack.c.h.b16 %v1260
    %v1894 = vunpack.c.l.b16 %v1261
    %v1895 = vunpack.c.h.b16 %v1261
    %v1896 = vunpack.c.l.b16 %v1262
    %v1897 = vunpack.c.h.b16 %v1262
    %v1898 = vunpack.c.l.b16 %v1263
    %v1899 = vunpack.c.h.b16 %v1263
    %v1900 = vunpack.c.l.b16 %v1264
    %v1901 = vunpack.c.h.b16 %v1264
    %v1902 = vunpack.c.l.b16 %v1265
    %v1903 = vunpack.c.h.b16 %v1265
    %v1904 = vunpack.c.l.b16 %v1266
    %v1905 = vunpack.c.h.b16 %v1266
    %v1906 = vunpack.c.l.b16 %v1267
    %v1907 = vunpack.c.h.b16 %v1267
    %v1908 = vunpack.c.l.b16 %v1268
    %v1909 = vunpack.c.h.b16 %v1268
    %v1910 = vunpack.c.l.b16 %v1269
    %v1911 = vunpack.c.h.b16 %v1269
    %v1912 = vunpack.c.l.b16 %v1270
    %v1913 = vunpack.c.h.b16 %v1270
    %v1914 = vunpack.c.l.b16 %v1271
    %v1915 = vunpack.c.h.b16 %v1271
    %v1916 = vunpack.c.l.b16 %v1272
    %v1917 = vunpack.c.h.b16 %v1272
    %v1918 = vunpack.c.l.b16 %v1273
    %v1919 = vunpack.c.h.b16 %v1273
    %v1920 = vunpack.c.l.b16 %v1274
    %v1921 = vunpack.c.h.b16 %v1274
    %v1922 = vunpack.c.l.b16 %v1275
    %v1923 = vunpack.c.h.b16 %v1275
    %v1924 = vunpack.c.l.b16 %v1276
    %v1925 = vunpack.c.h.b16 %v1276
    %v1926 = vunpack.c.l.b16 %v1277
    %v1927 = vunpack.c.h.b16 %v1277
    %v1928 = vunpack.c.l.b16 %v1278
    %v1929 = vunpack.c.h.b16 %v1278
    %v1930 = vunpack.c.l.b16 %v1279
    %v1931 = vunpack.c.h.b16 %v1279
    %v1932 = vunpack.c.l.b16 %v1280
    %v1933 = vunpack.c.h.b16 %v1280
    %v1934 = vunpack.c.l.b16 %v1281
    %v1935 = vunpack.c.h.b16 %v1281
    %v1936 = vunpack.c.l.b16 %v1282
    %v1937 = vunpack.c.h.b16 %v1282
    %v1938 = vunpack.c.l.b16 %v1283
    %v1939 = vunpack.c.h.b16 %v1283
    %v1940 = vunpack.c.l.b16 %v1284
    %v1941 = vunpack.c.h.b16 %v1284
    %v1942 = vunpack.c.l.b16 %v1285
    %v1943 = vunpack.c.h.b16 %v1285
    %v1944 = vunpack.c.l.b16 %v1286
    %v1945 = vunpack.c.h.b16 %v1286
    %v1946 = vunpack.c.l.b16 %v1287
    %v1947 = vunpack.c.h.b16 %v1287
    %v1948 = vunpack.c.l.b16 %v1288
    %v1949 = vunpack.c.h.b16 %v1288
    %v1950 = vunpack.c.l.b16 %v1289
    %v1951 = vunpack.c.h.b16 %v1289
    %v1952 = vunpack.c.l.b16 %v1290
    %v1953 = vunpack.c.h.b16 %v1290
    %v1954 = vunpack.c.l.b16 %v1291
    %v1955 = vunpack.c.h.b16 %v1291
    %v1956 = vunpack.c.l.b16 %v1292
    %v1957 = vunpack.c.h.b16 %v1292
    %v1958 = vunpack.c.l.b16 %v1293
    %v1959 = vunpack.c.h.b16 %v1293
    %v1960 = vunpack.c.l.b16 %v1294
    %v1961 = vunpack.c.h.b16 %v1294
    %v1962 = vunpack.c.l.b16 %v1295
    %v1963 = vunpack.c.h.b16 %v1295
    %v1964 = vunpack.c.l.b16 %v1296
    %v1965 = vunpack.c.h.b16 %v1296
    %v1966 = vunpack.c.l.b16 %v1297
    %v1967 = vunpack.c.h.b16 %v1297
    %v1968 = vunpack.c.l.b16 %v1298
    %v1969 = vunpack.c.h.b16 %v1298
    %v1970 = vunpack.c.l.b16 %v1299
    %v1971 = vunpack.c.h.b16 %v1299
    %v1972 = vunpack.c.l.b16 %v1300
    %v1973 = vunpack.c.h.b16 %v1300
    %v1974 = vunpack.c.l.b16 %v1301
    %v1975 = vunpack.c.h.b16 %v1301
    %v1976 = vunpack.c.l.b16 %v1302
    %v1977 = vunpack.c.h.b16 %v1302
    %v1978 = vpack.c.b16 %v1854, %v1850
    %v1979 = vpack.c.b16 %v1855, %v1851
    %v1980 = vpack.c.b16 %v1856, %v1852
    %v1981 = vpack.c.b16 %v1857, %v1853
    %v1982 = vpack.c.b16 %v1862, %v1858
    %v1983 = vpack.c.b16 %v1863, %v1859
    %v1984 = vpack.c.b16 %v1864, %v1860
    %v1985 = vpack.c.b16 %v1865, %v1861
    %v1986 = vpack.c.b16 %v1870, %v1866
    %v1987 = vpack.c.b16 %v1871, %v1867
    %v1988 = vpack.c.b16 %v1872, %v1868
    %v1989 = vpack.c.b16 %v1873, %v1869
    %v1990 = vpack.c.b16 %v1878, %v1874
    %v1991 = vpack.c.b16 %v1879, %v1875
    %v1992 = vpack.c.b16 %v1880, %v1876
    %v1993 = vpack.c.b16 %v1881, %v1877
    %v1994 = vpack.c.b16 %v1886, %v1882
    %v1995 = vpack.c.b16 %v1887, %v1883
    %v1996 = vpack.c.b16 %v1888, %v1884
    %v1997 = vpack.c.b16 %v1889, %v1885
    %v1998 = vpack.c.b16 %v1894, %v1890
    %v1999 = vpack.c.b16 %v1895, %v1891
    %v2000 = vpack.c.b16 %v1896, %v1892
    %v2001 = vpack.c.b16 %v1897, %v1893
    %v2002 = vpack.c.b16 %v1902, %v1898
    %v2003 = vpack.c.b16 %v1903, %v1899
    %v2004 = vpack.c.b16 %v1904, %v1900
    %v2005 = vpack.c.b16 %v1905, %v1901
    %v2006 = vpack.c.b16 %v1910, %v1906
    %v2007 = vpack.c.b16 %v1911, %v1907
    %v2008 = vpack.c.b16 %v1912, %v1908
    %v2009 = vpack.c.b16 %v1913, %v1909
    %v2010 = vpack.c.b16 %v1918, %v1914
    %v2011 = vpack.c.b16 %v1919, %v1915
    %v2012 = vpack.c.b16 %v1920, %v1916
    %v2013 = vpack.c.b16 %v1921, %v1917
    %v2014 = vpack.c.b16 %v1926, %v1922
    %v2015 = vpack.c.b16 %v1927, %v1923
    %v2016 = vpack.c.b16 %v1928, %v1924
    %v2017 = vpack.c.b16 %v1929, %v1925
    %v2018 = vpack.c.b16 %v1934, %v1930
    %v2019 = vpack.c.b16 %v1935, %v1931
    %v2020 = vpack.c.b16 %v1936, %v1932
    %v2021 = vpack.c.b16 %v1937, %v1933
    %v2022 = vpack.c.b16 %v1942, %v1938
    %v2023 = vpack.c.b16 %v1943, %v1939
    %v2024 = vpack.c.b16 %v1944, %v1940
    %v2025 = vpack.c.b16 %v1945, %v1941
    %v2026 = vpack.c.b16 %v1950, %v1946
    %v2027 = vpack.c.b16 %v1951, %v1947
    %v2028 = vpack.c.b16 %v1952, %v1948
    %v2029 = vpack.c.b16 %v1953, %v1949
    %v2030 = vpack.c.b16 %v1958, %v1954
    %v2031 = vpack.c.b16 %v1959, %v1955
    %v2032 = vpack.c.b16 %v1960, %v1956
    %v2033 = vpack.c.b16 %v1961, %v1957
    %v2034 = vpack.c.b16 %v1966, %v1962
    %v2035 = vpack.c.b16 %v1967, %v1963
    %v2036 = vpack.c.b16 %v1968, %v1964
    %v2037 = vpack.c.b16 %v1969, %v1965
    %v2038 = vpack.c.b16 %v1974, %v1970
    %v2039 = vpack.c.b16 %v1975, %v1971
    %v2040 = vpack.c.b16 %v1976, %v1972
    %v2041 = vpack.c.b16 %v1977, %v1973
    %2106 = vmatprep.subr.bf16.mxu0 %v2007
    %2107 = vmatpush1.bf16.msra.mxu0 %v2006
    %2108 = vmatprep.subr.bf16.mxu0 %v2003
    %2109 = vmatpush1.bf16.msra.mxu0 %v2002
    %2110 = vmatprep.subr.bf16.mxu0 %v1999
    %2111 = vmatpush1.bf16.msra.mxu0 %v1998
    %2112 = vmatprep.subr.bf16.mxu0 %v1995
    %2113 = vmatpush1.bf16.msra.mxu0 %v1994
    %2114 = vmatprep.subr.bf16.mxu0 %v1991
    %2115 = vmatpush1.bf16.msra.mxu0 %v1990
    %2116 = vmatprep.subr.bf16.mxu0 %v1987
    %2117 = vmatpush1.bf16.msra.mxu0 %v1986
    %2118 = vmatprep.subr.bf16.mxu0 %v1983
    %2119 = vmatpush1.bf16.msra.mxu0 %v1982
    %2120 = vmatprep.subr.bf16.mxu0 %v1979
    %2121 = vmatpush1.bf16.msra.mxu0 %v1978
    %2122 = vmatprep.subr.bf16.mxu0 %v2039
    %2123 = vmatpush2.bf16.msra.mxu0 %v2038
    %2124 = vmatprep.subr.bf16.mxu0 %v2035
    %2125 = vmatpush2.bf16.msra.mxu0 %v2034
    %2126 = vmatprep.subr.bf16.mxu0 %v2031
    %2127 = vmatpush2.bf16.msra.mxu0 %v2030
    %2128 = vmatprep.subr.bf16.mxu0 %v2027
    %2129 = vmatpush2.bf16.msra.mxu0 %v2026
    %2130 = vmatprep.subr.bf16.mxu0 %v2023
    %2131 = vmatpush2.bf16.msra.mxu0 %v2022
    %2132 = vmatprep.subr.bf16.mxu0 %v2019
    %2133 = vmatpush2.bf16.msra.mxu0 %v2018
    %2134 = vmatprep.subr.bf16.mxu0 %v2015
    %2135 = vmatpush2.bf16.msra.mxu0 %v2014
    %2136 = vmatprep.subr.bf16.mxu0 %v2011
    %2137 = vmatpush2.bf16.msra.mxu0 %v2010
    %2138 = vmatprep.mubr.bf16.mxu0 %v1783
    %2139 = vmatmul.mubr.bf16.gmra.mxu0 %v1782
    %v2140 = vpop.f32.mrf.mxu0
    %v2141 = vadd.f32 %v1732, %v2140
    %v2142 = vpop.f32.mrf.mxu0
    %v2143 = vadd.f32 %v1734, %v2142
    %v2144 = vpop.f32.mrf.mxu0
    %v2145 = vpop.f32.mrf.mxu0
    %2146 = vdwg.mxu0
    %2147 = vmatprep.subr.bf16.mxu0 %v2009
    %2148 = vmatpush1.bf16.msra.mxu0 %v2008
    %2149 = vmatprep.subr.bf16.mxu0 %v2005
    %2150 = vmatpush1.bf16.msra.mxu0 %v2004
    %2151 = vmatprep.subr.bf16.mxu0 %v2001
    %2152 = vmatpush1.bf16.msra.mxu0 %v2000
    %2153 = vmatprep.subr.bf16.mxu0 %v1997
    %2154 = vmatpush1.bf16.msra.mxu0 %v1996
    %2155 = vmatprep.subr.bf16.mxu0 %v1993
    %2156 = vmatpush1.bf16.msra.mxu0 %v1992
    %2157 = vmatprep.subr.bf16.mxu0 %v1989
    %2158 = vmatpush1.bf16.msra.mxu0 %v1988
    %2159 = vmatprep.subr.bf16.mxu0 %v1985
    %2160 = vmatpush1.bf16.msra.mxu0 %v1984
    %2161 = vmatprep.subr.bf16.mxu0 %v1981
    %2162 = vmatpush1.bf16.msra.mxu0 %v1980
    %2163 = vmatprep.subr.bf16.mxu0 %v2041
    %2164 = vmatpush2.bf16.msra.mxu0 %v2040
    %2165 = vmatprep.subr.bf16.mxu0 %v2037
    %2166 = vmatpush2.bf16.msra.mxu0 %v2036
    %2167 = vmatprep.subr.bf16.mxu0 %v2033
    %2168 = vmatpush2.bf16.msra.mxu0 %v2032
    %2169 = vmatprep.subr.bf16.mxu0 %v2029
    %2170 = vmatpush2.bf16.msra.mxu0 %v2028
    %2171 = vmatprep.subr.bf16.mxu0 %v2025
    %2172 = vmatpush2.bf16.msra.mxu0 %v2024
    %2173 = vmatprep.subr.bf16.mxu0 %v2021
    %2174 = vmatpush2.bf16.msra.mxu0 %v2020
    %2175 = vmatprep.subr.bf16.mxu0 %v2017
    %2176 = vmatpush2.bf16.msra.mxu0 %v2016
    %2177 = vmatprep.subr.bf16.mxu0 %v2013
    %2178 = vmatpush2.bf16.msra.mxu0 %v2012
    %2179 = vmatprep.mubr.bf16.mxu0 %v1783
    %2180 = vmatmul.mubr.bf16.gmra.mxu0 %v1782
    %v2181 = vpop.f32.mrf.mxu0
    %v2182 = vadd.f32 %v1773, %v2181
    %v2183 = vpop.f32.mrf.mxu0
    %v2184 = vadd.f32 %v1775, %v2183
    %v2185 = vpop.f32.mrf.mxu0
    %v2186 = vpop.f32.mrf.mxu0
    %2187 = vdwg.mxu0
    %s2188 = scalar_lea.vmem [#allocation2], 16
    %v2189 = vld [vmem:[%s2188] sm:$0xff]
    %s2190 = scalar_lea.vmem [#allocation5], 1024
    %v2191 = vld [vmem:[%s2190] sm:$0xff]
    %v2192 = vld [vmem:[%s2190 + $0x8] sm:$0xff]
    %v2193 = vld [vmem:[%s2190 + $0x10] sm:$0xff]
    %v2194 = vld [vmem:[%s2190 + $0x18] sm:$0xff]
    %v2195 = vld [vmem:[%s2190 + $0x20] sm:$0xff]
    %v2196 = vld [vmem:[%s2190 + $0x28] sm:$0xff]
    %v2197 = vld [vmem:[%s2190 + $0x30] sm:$0xff]
    %v2198 = vld [vmem:[%s2190 + $0x38] sm:$0xff]
    %v2199 = vld [vmem:[%s2190 + $0x40] sm:$0xff]
    %v2200 = vld [vmem:[%s2190 + $0x48] sm:$0xff]
    %v2201 = vld [vmem:[%s2190 + $0x50] sm:$0xff]
    %v2202 = vld [vmem:[%s2190 + $0x58] sm:$0xff]
    %v2203 = vld [vmem:[%s2190 + $0x60] sm:$0xff]
    %v2204 = vld [vmem:[%s2190 + $0x68] sm:$0xff]
    %v2205 = vld [vmem:[%s2190 + $0x70] sm:$0xff]
    %v2206 = vld [vmem:[%s2190 + $0x78] sm:$0xff]
    %v2207 = vld [vmem:[%s2190 + $0x80] sm:$0xff]
    %v2208 = vld [vmem:[%s2190 + $0x88] sm:$0xff]
    %v2209 = vld [vmem:[%s2190 + $0x90] sm:$0xff]
    %v2210 = vld [vmem:[%s2190 + $0x98] sm:$0xff]
    %v2211 = vld [vmem:[%s2190 + $0xa0] sm:$0xff]
    %v2212 = vld [vmem:[%s2190 + $0xa8] sm:$0xff]
    %v2213 = vld [vmem:[%s2190 + $0xb0] sm:$0xff]
    %v2214 = vld [vmem:[%s2190 + $0xb8] sm:$0xff]
    %v2215 = vld [vmem:[%s2190 + $0xc0] sm:$0xff]
    %v2216 = vld [vmem:[%s2190 + $0xc8] sm:$0xff]
    %v2217 = vld [vmem:[%s2190 + $0xd0] sm:$0xff]
    %v2218 = vld [vmem:[%s2190 + $0xd8] sm:$0xff]
    %v2219 = vld [vmem:[%s2190 + $0xe0] sm:$0xff]
    %v2220 = vld [vmem:[%s2190 + $0xe8] sm:$0xff]
    %v2221 = vld [vmem:[%s2190 + $0xf0] sm:$0xff]
    %v2222 = vld [vmem:[%s2190 + $0xf8] sm:$0xff]
    %v2223 = vld [vmem:[%s2190 + $0x100] sm:$0xff]
    %v2224 = vld [vmem:[%s2190 + $0x108] sm:$0xff]
    %v2225 = vld [vmem:[%s2190 + $0x110] sm:$0xff]
    %v2226 = vld [vmem:[%s2190 + $0x118] sm:$0xff]
    %v2227 = vld [vmem:[%s2190 + $0x120] sm:$0xff]
    %v2228 = vld [vmem:[%s2190 + $0x128] sm:$0xff]
    %v2229 = vld [vmem:[%s2190 + $0x130] sm:$0xff]
    %v2230 = vld [vmem:[%s2190 + $0x138] sm:$0xff]
    %v2231 = vld [vmem:[%s2190 + $0x140] sm:$0xff]
    %v2232 = vld [vmem:[%s2190 + $0x148] sm:$0xff]
    %v2233 = vld [vmem:[%s2190 + $0x150] sm:$0xff]
    %v2234 = vld [vmem:[%s2190 + $0x158] sm:$0xff]
    %v2235 = vld [vmem:[%s2190 + $0x160] sm:$0xff]
    %v2236 = vld [vmem:[%s2190 + $0x168] sm:$0xff]
    %v2237 = vld [vmem:[%s2190 + $0x170] sm:$0xff]
    %v2238 = vld [vmem:[%s2190 + $0x178] sm:$0xff]
    %v2239 = vld [vmem:[%s2190 + $0x180] sm:$0xff]
    %v2240 = vld [vmem:[%s2190 + $0x188] sm:$0xff]
    %v2241 = vld [vmem:[%s2190 + $0x190] sm:$0xff]
    %v2242 = vld [vmem:[%s2190 + $0x198] sm:$0xff]
    %v2243 = vld [vmem:[%s2190 + $0x1a0] sm:$0xff]
    %v2244 = vld [vmem:[%s2190 + $0x1a8] sm:$0xff]
    %v2245 = vld [vmem:[%s2190 + $0x1b0] sm:$0xff]
    %v2246 = vld [vmem:[%s2190 + $0x1b8] sm:$0xff]
    %v2247 = vld [vmem:[%s2190 + $0x1c0] sm:$0xff]
    %v2248 = vld [vmem:[%s2190 + $0x1c8] sm:$0xff]
    %v2249 = vld [vmem:[%s2190 + $0x1d0] sm:$0xff]
    %v2250 = vld [vmem:[%s2190 + $0x1d8] sm:$0xff]
    %v2251 = vld [vmem:[%s2190 + $0x1e0] sm:$0xff]
    %v2252 = vld [vmem:[%s2190 + $0x1e8] sm:$0xff]
    %v2253 = vld [vmem:[%s2190 + $0x1f0] sm:$0xff]
    %v2254 = vld [vmem:[%s2190 + $0x1f8] sm:$0xff]
    %v2256 = vunpack.c.l.b16 %v2189
    %v2257 = vunpack.c.h.b16 %v2189
    %v2258 = vpack.c.b16 %v2256, %v2256
    %v2259 = vpack.c.b16 %v2257, %v2257
    %v2326 = vunpack.c.l.b16 %v2191
    %v2327 = vunpack.c.h.b16 %v2191
    %v2328 = vunpack.c.l.b16 %v2192
    %v2329 = vunpack.c.h.b16 %v2192
    %v2330 = vunpack.c.l.b16 %v2193
    %v2331 = vunpack.c.h.b16 %v2193
    %v2332 = vunpack.c.l.b16 %v2194
    %v2333 = vunpack.c.h.b16 %v2194
    %v2334 = vunpack.c.l.b16 %v2195
    %v2335 = vunpack.c.h.b16 %v2195
    %v2336 = vunpack.c.l.b16 %v2196
    %v2337 = vunpack.c.h.b16 %v2196
    %v2338 = vunpack.c.l.b16 %v2197
    %v2339 = vunpack.c.h.b16 %v2197
    %v2340 = vunpack.c.l.b16 %v2198
    %v2341 = vunpack.c.h.b16 %v2198
    %v2342 = vunpack.c.l.b16 %v2199
    %v2343 = vunpack.c.h.b16 %v2199
    %v2344 = vunpack.c.l.b16 %v2200
    %v2345 = vunpack.c.h.b16 %v2200
    %v2346 = vunpack.c.l.b16 %v2201
    %v2347 = vunpack.c.h.b16 %v2201
    %v2348 = vunpack.c.l.b16 %v2202
    %v2349 = vunpack.c.h.b16 %v2202
    %v2350 = vunpack.c.l.b16 %v2203
    %v2351 = vunpack.c.h.b16 %v2203
    %v2352 = vunpack.c.l.b16 %v2204
    %v2353 = vunpack.c.h.b16 %v2204
    %v2354 = vunpack.c.l.b16 %v2205
    %v2355 = vunpack.c.h.b16 %v2205
    %v2356 = vunpack.c.l.b16 %v2206
    %v2357 = vunpack.c.h.b16 %v2206
    %v2358 = vunpack.c.l.b16 %v2207
    %v2359 = vunpack.c.h.b16 %v2207
    %v2360 = vunpack.c.l.b16 %v2208
    %v2361 = vunpack.c.h.b16 %v2208
    %v2362 = vunpack.c.l.b16 %v2209
    %v2363 = vunpack.c.h.b16 %v2209
    %v2364 = vunpack.c.l.b16 %v2210
    %v2365 = vunpack.c.h.b16 %v2210
    %v2366 = vunpack.c.l.b16 %v2211
    %v2367 = vunpack.c.h.b16 %v2211
    %v2368 = vunpack.c.l.b16 %v2212
    %v2369 = vunpack.c.h.b16 %v2212
    %v2370 = vunpack.c.l.b16 %v2213
    %v2371 = vunpack.c.h.b16 %v2213
    %v2372 = vunpack.c.l.b16 %v2214
    %v2373 = vunpack.c.h.b16 %v2214
    %v2374 = vunpack.c.l.b16 %v2215
    %v2375 = vunpack.c.h.b16 %v2215
    %v2376 = vunpack.c.l.b16 %v2216
    %v2377 = vunpack.c.h.b16 %v2216
    %v2378 = vunpack.c.l.b16 %v2217
    %v2379 = vunpack.c.h.b16 %v2217
    %v2380 = vunpack.c.l.b16 %v2218
    %v2381 = vunpack.c.h.b16 %v2218
    %v2382 = vunpack.c.l.b16 %v2219
    %v2383 = vunpack.c.h.b16 %v2219
    %v2384 = vunpack.c.l.b16 %v2220
    %v2385 = vunpack.c.h.b16 %v2220
    %v2386 = vunpack.c.l.b16 %v2221
    %v2387 = vunpack.c.h.b16 %v2221
    %v2388 = vunpack.c.l.b16 %v2222
    %v2389 = vunpack.c.h.b16 %v2222
    %v2390 = vunpack.c.l.b16 %v2223
    %v2391 = vunpack.c.h.b16 %v2223
    %v2392 = vunpack.c.l.b16 %v2224
    %v2393 = vunpack.c.h.b16 %v2224
    %v2394 = vunpack.c.l.b16 %v2225
    %v2395 = vunpack.c.h.b16 %v2225
    %v2396 = vunpack.c.l.b16 %v2226
    %v2397 = vunpack.c.h.b16 %v2226
    %v2398 = vunpack.c.l.b16 %v2227
    %v2399 = vunpack.c.h.b16 %v2227
    %v2400 = vunpack.c.l.b16 %v2228
    %v2401 = vunpack.c.h.b16 %v2228
    %v2402 = vunpack.c.l.b16 %v2229
    %v2403 = vunpack.c.h.b16 %v2229
    %v2404 = vunpack.c.l.b16 %v2230
    %v2405 = vunpack.c.h.b16 %v2230
    %v2406 = vunpack.c.l.b16 %v2231
    %v2407 = vunpack.c.h.b16 %v2231
    %v2408 = vunpack.c.l.b16 %v2232
    %v2409 = vunpack.c.h.b16 %v2232
    %v2410 = vunpack.c.l.b16 %v2233
    %v2411 = vunpack.c.h.b16 %v2233
    %v2412 = vunpack.c.l.b16 %v2234
    %v2413 = vunpack.c.h.b16 %v2234
    %v2414 = vunpack.c.l.b16 %v2235
    %v2415 = vunpack.c.h.b16 %v2235
    %v2416 = vunpack.c.l.b16 %v2236
    %v2417 = vunpack.c.h.b16 %v2236
    %v2418 = vunpack.c.l.b16 %v2237
    %v2419 = vunpack.c.h.b16 %v2237
    %v2420 = vunpack.c.l.b16 %v2238
    %v2421 = vunpack.c.h.b16 %v2238
    %v2422 = vunpack.c.l.b16 %v2239
    %v2423 = vunpack.c.h.b16 %v2239
    %v2424 = vunpack.c.l.b16 %v2240
    %v2425 = vunpack.c.h.b16 %v2240
    %v2426 = vunpack.c.l.b16 %v2241
    %v2427 = vunpack.c.h.b16 %v2241
    %v2428 = vunpack.c.l.b16 %v2242
    %v2429 = vunpack.c.h.b16 %v2242
    %v2430 = vunpack.c.l.b16 %v2243
    %v2431 = vunpack.c.h.b16 %v2243
    %v2432 = vunpack.c.l.b16 %v2244
    %v2433 = vunpack.c.h.b16 %v2244
    %v2434 = vunpack.c.l.b16 %v2245
    %v2435 = vunpack.c.h.b16 %v2245
    %v2436 = vunpack.c.l.b16 %v2246
    %v2437 = vunpack.c.h.b16 %v2246
    %v2438 = vunpack.c.l.b16 %v2247
    %v2439 = vunpack.c.h.b16 %v2247
    %v2440 = vunpack.c.l.b16 %v2248
    %v2441 = vunpack.c.h.b16 %v2248
    %v2442 = vunpack.c.l.b16 %v2249
    %v2443 = vunpack.c.h.b16 %v2249
    %v2444 = vunpack.c.l.b16 %v2250
    %v2445 = vunpack.c.h.b16 %v2250
    %v2446 = vunpack.c.l.b16 %v2251
    %v2447 = vunpack.c.h.b16 %v2251
    %v2448 = vunpack.c.l.b16 %v2252
    %v2449 = vunpack.c.h.b16 %v2252
    %v2450 = vunpack.c.l.b16 %v2253
    %v2451 = vunpack.c.h.b16 %v2253
    %v2452 = vunpack.c.l.b16 %v2254
    %v2453 = vunpack.c.h.b16 %v2254
    %v2454 = vpack.c.b16 %v2330, %v2326
    %v2455 = vpack.c.b16 %v2331, %v2327
    %v2456 = vpack.c.b16 %v2332, %v2328
    %v2457 = vpack.c.b16 %v2333, %v2329
    %v2458 = vpack.c.b16 %v2338, %v2334
    %v2459 = vpack.c.b16 %v2339, %v2335
    %v2460 = vpack.c.b16 %v2340, %v2336
    %v2461 = vpack.c.b16 %v2341, %v2337
    %v2462 = vpack.c.b16 %v2346, %v2342
    %v2463 = vpack.c.b16 %v2347, %v2343
    %v2464 = vpack.c.b16 %v2348, %v2344
    %v2465 = vpack.c.b16 %v2349, %v2345
    %v2466 = vpack.c.b16 %v2354, %v2350
    %v2467 = vpack.c.b16 %v2355, %v2351
    %v2468 = vpack.c.b16 %v2356, %v2352
    %v2469 = vpack.c.b16 %v2357, %v2353
    %v2470 = vpack.c.b16 %v2362, %v2358
    %v2471 = vpack.c.b16 %v2363, %v2359
    %v2472 = vpack.c.b16 %v2364, %v2360
    %v2473 = vpack.c.b16 %v2365, %v2361
    %v2474 = vpack.c.b16 %v2370, %v2366
    %v2475 = vpack.c.b16 %v2371, %v2367
    %v2476 = vpack.c.b16 %v2372, %v2368
    %v2477 = vpack.c.b16 %v2373, %v2369
    %v2478 = vpack.c.b16 %v2378, %v2374
    %v2479 = vpack.c.b16 %v2379, %v2375
    %v2480 = vpack.c.b16 %v2380, %v2376
    %v2481 = vpack.c.b16 %v2381, %v2377
    %v2482 = vpack.c.b16 %v2386, %v2382
    %v2483 = vpack.c.b16 %v2387, %v2383
    %v2484 = vpack.c.b16 %v2388, %v2384
    %v2485 = vpack.c.b16 %v2389, %v2385
    %v2486 = vpack.c.b16 %v2394, %v2390
    %v2487 = vpack.c.b16 %v2395, %v2391
    %v2488 = vpack.c.b16 %v2396, %v2392
    %v2489 = vpack.c.b16 %v2397, %v2393
    %v2490 = vpack.c.b16 %v2402, %v2398
    %v2491 = vpack.c.b16 %v2403, %v2399
    %v2492 = vpack.c.b16 %v2404, %v2400
    %v2493 = vpack.c.b16 %v2405, %v2401
    %v2494 = vpack.c.b16 %v2410, %v2406
    %v2495 = vpack.c.b16 %v2411, %v2407
    %v2496 = vpack.c.b16 %v2412, %v2408
    %v2497 = vpack.c.b16 %v2413, %v2409
    %v2498 = vpack.c.b16 %v2418, %v2414
    %v2499 = vpack.c.b16 %v2419, %v2415
    %v2500 = vpack.c.b16 %v2420, %v2416
    %v2501 = vpack.c.b16 %v2421, %v2417
    %v2502 = vpack.c.b16 %v2426, %v2422
    %v2503 = vpack.c.b16 %v2427, %v2423
    %v2504 = vpack.c.b16 %v2428, %v2424
    %v2505 = vpack.c.b16 %v2429, %v2425
    %v2506 = vpack.c.b16 %v2434, %v2430
    %v2507 = vpack.c.b16 %v2435, %v2431
    %v2508 = vpack.c.b16 %v2436, %v2432
    %v2509 = vpack.c.b16 %v2437, %v2433
    %v2510 = vpack.c.b16 %v2442, %v2438
    %v2511 = vpack.c.b16 %v2443, %v2439
    %v2512 = vpack.c.b16 %v2444, %v2440
    %v2513 = vpack.c.b16 %v2445, %v2441
    %v2514 = vpack.c.b16 %v2450, %v2446
    %v2515 = vpack.c.b16 %v2451, %v2447
    %v2516 = vpack.c.b16 %v2452, %v2448
    %v2517 = vpack.c.b16 %v2453, %v2449
    %2582 = vmatprep.subr.bf16.mxu0 %v2483
    %2583 = vmatpush1.bf16.msra.mxu0 %v2482
    %2584 = vmatprep.subr.bf16.mxu0 %v2479
    %2585 = vmatpush1.bf16.msra.mxu0 %v2478
    %2586 = vmatprep.subr.bf16.mxu0 %v2475
    %2587 = vmatpush1.bf16.msra.mxu0 %v2474
    %2588 = vmatprep.subr.bf16.mxu0 %v2471
    %2589 = vmatpush1.bf16.msra.mxu0 %v2470
    %2590 = vmatprep.subr.bf16.mxu0 %v2467
    %2591 = vmatpush1.bf16.msra.mxu0 %v2466
    %2592 = vmatprep.subr.bf16.mxu0 %v2463
    %2593 = vmatpush1.bf16.msra.mxu0 %v2462
    %2594 = vmatprep.subr.bf16.mxu0 %v2459
    %2595 = vmatpush1.bf16.msra.mxu0 %v2458
    %2596 = vmatprep.subr.bf16.mxu0 %v2455
    %2597 = vmatpush1.bf16.msra.mxu0 %v2454
    %2598 = vmatprep.subr.bf16.mxu0 %v2515
    %2599 = vmatpush2.bf16.msra.mxu0 %v2514
    %2600 = vmatprep.subr.bf16.mxu0 %v2511
    %2601 = vmatpush2.bf16.msra.mxu0 %v2510
    %2602 = vmatprep.subr.bf16.mxu0 %v2507
    %2603 = vmatpush2.bf16.msra.mxu0 %v2506
    %2604 = vmatprep.subr.bf16.mxu0 %v2503
    %2605 = vmatpush2.bf16.msra.mxu0 %v2502
    %2606 = vmatprep.subr.bf16.mxu0 %v2499
    %2607 = vmatpush2.bf16.msra.mxu0 %v2498
    %2608 = vmatprep.subr.bf16.mxu0 %v2495
    %2609 = vmatpush2.bf16.msra.mxu0 %v2494
    %2610 = vmatprep.subr.bf16.mxu0 %v2491
    %2611 = vmatpush2.bf16.msra.mxu0 %v2490
    %2612 = vmatprep.subr.bf16.mxu0 %v2487
    %2613 = vmatpush2.bf16.msra.mxu0 %v2486
    %2614 = vmatprep.mubr.bf16.mxu0 %v2259
    %2615 = vmatmul.mubr.bf16.gmra.mxu0 %v2258
    %v2616 = vpop.f32.mrf.mxu0
    %v2617 = vadd.f32 0.0, %v2616
    %v2618 = vpop.f32.mrf.mxu0
    %v2619 = vadd.f32 0.0, %v2618
    %v2620 = vpop.f32.mrf.mxu0
    %v2621 = vpop.f32.mrf.mxu0
    %2622 = vdwg.mxu0
    %2623 = vmatprep.subr.bf16.mxu0 %v2485
    %2624 = vmatpush1.bf16.msra.mxu0 %v2484
    %2625 = vmatprep.subr.bf16.mxu0 %v2481
    %2626 = vmatpush1.bf16.msra.mxu0 %v2480
    %2627 = vmatprep.subr.bf16.mxu0 %v2477
    %2628 = vmatpush1.bf16.msra.mxu0 %v2476
    %2629 = vmatprep.subr.bf16.mxu0 %v2473
    %2630 = vmatpush1.bf16.msra.mxu0 %v2472
    %2631 = vmatprep.subr.bf16.mxu0 %v2469
    %2632 = vmatpush1.bf16.msra.mxu0 %v2468
    %2633 = vmatprep.subr.bf16.mxu0 %v2465
    %2634 = vmatpush1.bf16.msra.mxu0 %v2464
    %2635 = vmatprep.subr.bf16.mxu0 %v2461
    %2636 = vmatpush1.bf16.msra.mxu0 %v2460
    %2637 = vmatprep.subr.bf16.mxu0 %v2457
    %2638 = vmatpush1.bf16.msra.mxu0 %v2456
    %2639 = vmatprep.subr.bf16.mxu0 %v2517
    %2640 = vmatpush2.bf16.msra.mxu0 %v2516
    %2641 = vmatprep.subr.bf16.mxu0 %v2513
    %2642 = vmatpush2.bf16.msra.mxu0 %v2512
    %2643 = vmatprep.subr.bf16.mxu0 %v2509
    %2644 = vmatpush2.bf16.msra.mxu0 %v2508
    %2645 = vmatprep.subr.bf16.mxu0 %v2505
    %2646 = vmatpush2.bf16.msra.mxu0 %v2504
    %2647 = vmatprep.subr.bf16.mxu0 %v2501
    %2648 = vmatpush2.bf16.msra.mxu0 %v2500
    %2649 = vmatprep.subr.bf16.mxu0 %v2497
    %2650 = vmatpush2.bf16.msra.mxu0 %v2496
    %2651 = vmatprep.subr.bf16.mxu0 %v2493
    %2652 = vmatpush2.bf16.msra.mxu0 %v2492
    %2653 = vmatprep.subr.bf16.mxu0 %v2489
    %2654 = vmatpush2.bf16.msra.mxu0 %v2488
    %2655 = vmatprep.mubr.bf16.mxu0 %v2259
    %2656 = vmatmul.mubr.bf16.gmra.mxu0 %v2258
    %v2657 = vpop.f32.mrf.mxu0
    %v2658 = vadd.f32 0.0, %v2657
    %v2659 = vpop.f32.mrf.mxu0
    %v2660 = vadd.f32 0.0, %v2659
    %v2661 = vpop.f32.mrf.mxu0
    %v2662 = vpop.f32.mrf.mxu0
    %2663 = vdwg.mxu0
    %v2664 = vadd.f32 %v2141, %v2617
    %v2665 = vadd.f32 %v2143, %v2619
    %v2666 = vadd.f32 %v2182, %v2658
    %v2667 = vadd.f32 %v2184, %v2660
    %v2668 = vmax.f32 %v2664, %v2665
    %v2669 = vmax.f32 %v2666, %v2667
    %v2670 = vmax.f32 %v2668, %v2669
    %v2671 = vld [vmem:[%s4] sm:$0x1]
    %v2673 = vlaneseq
    %v2674 = vshrl.u32 %v2673, 7
    %v2675 = vsub.s32 0, %v2674
    %v2676 = vrot.slane %v2671, %v2675
    %v2678 = vadd.f32 %v2670, %v2676
    %v2679 = vmax.f32 %v2678, 0.0
    %v2680 = vpack.c.bf16 %v2679, %v2679
    %2681 = vmatprep.subr.bf16.mxu0 %v1598
    %2682 = vmatpush1.bf16.msra.mxu0 %v1597
    %2683 = vmatprep.subr.bf16.mxu0 %v1594
    %2684 = vmatpush1.bf16.msra.mxu0 %v1593
    %2685 = vmatprep.subr.bf16.mxu0 %v1590
    %2686 = vmatpush1.bf16.msra.mxu0 %v1589
    %2687 = vmatprep.subr.bf16.mxu0 %v1586
    %2688 = vmatpush1.bf16.msra.mxu0 %v1585
    %2689 = vmatprep.subr.bf16.mxu0 %v1582
    %2690 = vmatpush1.bf16.msra.mxu0 %v1581
    %2691 = vmatprep.subr.bf16.mxu0 %v1578
    %2692 = vmatpush1.bf16.msra.mxu0 %v1577
    %2693 = vmatprep.subr.bf16.mxu0 %v1574
    %2694 = vmatpush1.bf16.msra.mxu0 %v1573
    %2695 = vmatprep.subr.bf16.mxu0 %v1570
    %2696 = vmatpush1.bf16.msra.mxu0 %v1569
    %2697 = vmatprep.subr.bf16.mxu0 %v1630
    %2698 = vmatpush2.bf16.msra.mxu0 %v1629
    %2699 = vmatprep.subr.bf16.mxu0 %v1626
    %2700 = vmatpush2.bf16.msra.mxu0 %v1625
    %2701 = vmatprep.subr.bf16.mxu0 %v1622
    %2702 = vmatpush2.bf16.msra.mxu0 %v1621
    %2703 = vmatprep.subr.bf16.mxu0 %v1618
    %2704 = vmatpush2.bf16.msra.mxu0 %v1617
    %2705 = vmatprep.subr.bf16.mxu0 %v1614
    %2706 = vmatpush2.bf16.msra.mxu0 %v1613
    %2707 = vmatprep.subr.bf16.mxu0 %v1610
    %2708 = vmatpush2.bf16.msra.mxu0 %v1609
    %2709 = vmatprep.subr.bf16.mxu0 %v1606
    %2710 = vmatpush2.bf16.msra.mxu0 %v1605
    %2711 = vmatprep.subr.bf16.mxu0 %v1602
    %2712 = vmatpush2.bf16.msra.mxu0 %v1601
    %2713 = vmatprep.mubr.bf16.mxu0 %v2259
    %2714 = vmatmul.mubr.bf16.gmra.mxu0 %v2258
    %v2715 = vpop.f32.mrf.mxu0
    %v2716 = vadd.f32 0.0, %v2715
    %v2717 = vpop.f32.mrf.mxu0
    %v2718 = vadd.f32 0.0, %v2717
    %v2719 = vpop.f32.mrf.mxu0
    %v2720 = vpop.f32.mrf.mxu0
    %2721 = vdwg.mxu0
    %2722 = vmatprep.subr.bf16.mxu0 %v1600
    %2723 = vmatpush1.bf16.msra.mxu0 %v1599
    %2724 = vmatprep.subr.bf16.mxu0 %v1596
    %2725 = vmatpush1.bf16.msra.mxu0 %v1595
    %2726 = vmatprep.subr.bf16.mxu0 %v1592
    %2727 = vmatpush1.bf16.msra.mxu0 %v1591
    %2728 = vmatprep.subr.bf16.mxu0 %v1588
    %2729 = vmatpush1.bf16.msra.mxu0 %v1587
    %2730 = vmatprep.subr.bf16.mxu0 %v1584
    %2731 = vmatpush1.bf16.msra.mxu0 %v1583
    %2732 = vmatprep.subr.bf16.mxu0 %v1580
    %2733 = vmatpush1.bf16.msra.mxu0 %v1579
    %2734 = vmatprep.subr.bf16.mxu0 %v1576
    %2735 = vmatpush1.bf16.msra.mxu0 %v1575
    %2736 = vmatprep.subr.bf16.mxu0 %v1572
    %2737 = vmatpush1.bf16.msra.mxu0 %v1571
    %2738 = vmatprep.subr.bf16.mxu0 %v1632
    %2739 = vmatpush2.bf16.msra.mxu0 %v1631
    %2740 = vmatprep.subr.bf16.mxu0 %v1628
    %2741 = vmatpush2.bf16.msra.mxu0 %v1627
    %2742 = vmatprep.subr.bf16.mxu0 %v1624
    %2743 = vmatpush2.bf16.msra.mxu0 %v1623
    %2744 = vmatprep.subr.bf16.mxu0 %v1620
    %2745 = vmatpush2.bf16.msra.mxu0 %v1619
    %2746 = vmatprep.subr.bf16.mxu0 %v1616
    %2747 = vmatpush2.bf16.msra.mxu0 %v1615
    %2748 = vmatprep.subr.bf16.mxu0 %v1612
    %2749 = vmatpush2.bf16.msra.mxu0 %v1611
    %2750 = vmatprep.subr.bf16.mxu0 %v1608
    %2751 = vmatpush2.bf16.msra.mxu0 %v1607
    %2752 = vmatprep.subr.bf16.mxu0 %v1604
    %2753 = vmatpush2.bf16.msra.mxu0 %v1603
    %2754 = vmatprep.mubr.bf16.mxu0 %v2259
    %2755 = vmatmul.mubr.bf16.gmra.mxu0 %v2258
    %v2756 = vpop.f32.mrf.mxu0
    %v2757 = vadd.f32 0.0, %v2756
    %v2758 = vpop.f32.mrf.mxu0
    %v2759 = vadd.f32 0.0, %v2758
    %v2760 = vpop.f32.mrf.mxu0
    %v2761 = vpop.f32.mrf.mxu0
    %2762 = vdwg.mxu0
    %2763 = vmatprep.subr.bf16.mxu0 %v2007
    %2764 = vmatpush1.bf16.msra.mxu0 %v2006
    %2765 = vmatprep.subr.bf16.mxu0 %v2003
    %2766 = vmatpush1.bf16.msra.mxu0 %v2002
    %2767 = vmatprep.subr.bf16.mxu0 %v1999
    %2768 = vmatpush1.bf16.msra.mxu0 %v1998
    %2769 = vmatprep.subr.bf16.mxu0 %v1995
    %2770 = vmatpush1.bf16.msra.mxu0 %v1994
    %2771 = vmatprep.subr.bf16.mxu0 %v1991
    %2772 = vmatpush1.bf16.msra.mxu0 %v1990
    %2773 = vmatprep.subr.bf16.mxu0 %v1987
    %2774 = vmatpush1.bf16.msra.mxu0 %v1986
    %2775 = vmatprep.subr.bf16.mxu0 %v1983
    %2776 = vmatpush1.bf16.msra.mxu0 %v1982
    %2777 = vmatprep.subr.bf16.mxu0 %v1979
    %2778 = vmatpush1.bf16.msra.mxu0 %v1978
    %2779 = vmatprep.subr.bf16.mxu0 %v2039
    %2780 = vmatpush2.bf16.msra.mxu0 %v2038
    %2781 = vmatprep.subr.bf16.mxu0 %v2035
    %2782 = vmatpush2.bf16.msra.mxu0 %v2034
    %2783 = vmatprep.subr.bf16.mxu0 %v2031
    %2784 = vmatpush2.bf16.msra.mxu0 %v2030
    %2785 = vmatprep.subr.bf16.mxu0 %v2027
    %2786 = vmatpush2.bf16.msra.mxu0 %v2026
    %2787 = vmatprep.subr.bf16.mxu0 %v2023
    %2788 = vmatpush2.bf16.msra.mxu0 %v2022
    %2789 = vmatprep.subr.bf16.mxu0 %v2019
    %2790 = vmatpush2.bf16.msra.mxu0 %v2018
    %2791 = vmatprep.subr.bf16.mxu0 %v2015
    %2792 = vmatpush2.bf16.msra.mxu0 %v2014
    %2793 = vmatprep.subr.bf16.mxu0 %v2011
    %2794 = vmatpush2.bf16.msra.mxu0 %v2010
    %2795 = vmatprep.mubr.bf16.mxu0 %v1374
    %2796 = vmatmul.mubr.bf16.gmra.mxu0 %v1373
    %v2797 = vpop.f32.mrf.mxu0
    %v2798 = vadd.f32 %v2716, %v2797
    %v2799 = vpop.f32.mrf.mxu0
    %v2800 = vadd.f32 %v2718, %v2799
    %v2801 = vpop.f32.mrf.mxu0
    %v2802 = vpop.f32.mrf.mxu0
    %2803 = vdwg.mxu0
    %2804 = vmatprep.subr.bf16.mxu0 %v2009
    %2805 = vmatpush1.bf16.msra.mxu0 %v2008
    %2806 = vmatprep.subr.bf16.mxu0 %v2005
    %2807 = vmatpush1.bf16.msra.mxu0 %v2004
    %2808 = vmatprep.subr.bf16.mxu0 %v2001
    %2809 = vmatpush1.bf16.msra.mxu0 %v2000
    %2810 = vmatprep.subr.bf16.mxu0 %v1997
    %2811 = vmatpush1.bf16.msra.mxu0 %v1996
    %2812 = vmatprep.subr.bf16.mxu0 %v1993
    %2813 = vmatpush1.bf16.msra.mxu0 %v1992
    %2814 = vmatprep.subr.bf16.mxu0 %v1989
    %2815 = vmatpush1.bf16.msra.mxu0 %v1988
    %2816 = vmatprep.subr.bf16.mxu0 %v1985
    %2817 = vmatpush1.bf16.msra.mxu0 %v1984
    %2818 = vmatprep.subr.bf16.mxu0 %v1981
    %2819 = vmatpush1.bf16.msra.mxu0 %v1980
    %2820 = vmatprep.subr.bf16.mxu0 %v2041
    %2821 = vmatpush2.bf16.msra.mxu0 %v2040
    %2822 = vmatprep.subr.bf16.mxu0 %v2037
    %2823 = vmatpush2.bf16.msra.mxu0 %v2036
    %2824 = vmatprep.subr.bf16.mxu0 %v2033
    %2825 = vmatpush2.bf16.msra.mxu0 %v2032
    %2826 = vmatprep.subr.bf16.mxu0 %v2029
    %2827 = vmatpush2.bf16.msra.mxu0 %v2028
    %2828 = vmatprep.subr.bf16.mxu0 %v2025
    %2829 = vmatpush2.bf16.msra.mxu0 %v2024
    %2830 = vmatprep.subr.bf16.mxu0 %v2021
    %2831 = vmatpush2.bf16.msra.mxu0 %v2020
    %2832 = vmatprep.subr.bf16.mxu0 %v2017
    %2833 = vmatpush2.bf16.msra.mxu0 %v2016
    %2834 = vmatprep.subr.bf16.mxu0 %v2013
    %2835 = vmatpush2.bf16.msra.mxu0 %v2012
    %2836 = vmatprep.mubr.bf16.mxu0 %v1374
    %2837 = vmatmul.mubr.bf16.gmra.mxu0 %v1373
    %v2838 = vpop.f32.mrf.mxu0
    %v2839 = vadd.f32 %v2757, %v2838
    %v2840 = vpop.f32.mrf.mxu0
    %v2841 = vadd.f32 %v2759, %v2840
    %v2842 = vpop.f32.mrf.mxu0
    %v2843 = vpop.f32.mrf.mxu0
    %2844 = vdwg.mxu0
    %s2845 = scalar_lea.vmem [#allocation2], 24
    %v2846 = vld [vmem:[%s2845] sm:$0xff]
    %v2848 = vunpack.c.l.b16 %v2846
    %v2849 = vunpack.c.h.b16 %v2846
    %v2850 = vpack.c.b16 %v2848, %v2848
    %v2851 = vpack.c.b16 %v2849, %v2849
    %2854 = vmatprep.subr.bf16.mxu0 %v2483
    %2855 = vmatpush1.bf16.msra.mxu0 %v2482
    %2856 = vmatprep.subr.bf16.mxu0 %v2479
    %2857 = vmatpush1.bf16.msra.mxu0 %v2478
    %2858 = vmatprep.subr.bf16.mxu0 %v2475
    %2859 = vmatpush1.bf16.msra.mxu0 %v2474
    %2860 = vmatprep.subr.bf16.mxu0 %v2471
    %2861 = vmatpush1.bf16.msra.mxu0 %v2470
    %2862 = vmatprep.subr.bf16.mxu0 %v2467
    %2863 = vmatpush1.bf16.msra.mxu0 %v2466
    %2864 = vmatprep.subr.bf16.mxu0 %v2463
    %2865 = vmatpush1.bf16.msra.mxu0 %v2462
    %2866 = vmatprep.subr.bf16.mxu0 %v2459
    %2867 = vmatpush1.bf16.msra.mxu0 %v2458
    %2868 = vmatprep.subr.bf16.mxu0 %v2455
    %2869 = vmatpush1.bf16.msra.mxu0 %v2454
    %2870 = vmatprep.subr.bf16.mxu0 %v2515
    %2871 = vmatpush2.bf16.msra.mxu0 %v2514
    %2872 = vmatprep.subr.bf16.mxu0 %v2511
    %2873 = vmatpush2.bf16.msra.mxu0 %v2510
    %2874 = vmatprep.subr.bf16.mxu0 %v2507
    %2875 = vmatpush2.bf16.msra.mxu0 %v2506
    %2876 = vmatprep.subr.bf16.mxu0 %v2503
    %2877 = vmatpush2.bf16.msra.mxu0 %v2502
    %2878 = vmatprep.subr.bf16.mxu0 %v2499
    %2879 = vmatpush2.bf16.msra.mxu0 %v2498
    %2880 = vmatprep.subr.bf16.mxu0 %v2495
    %2881 = vmatpush2.bf16.msra.mxu0 %v2494
    %2882 = vmatprep.subr.bf16.mxu0 %v2491
    %2883 = vmatpush2.bf16.msra.mxu0 %v2490
    %2884 = vmatprep.subr.bf16.mxu0 %v2487
    %2885 = vmatpush2.bf16.msra.mxu0 %v2486
    %2886 = vmatprep.mubr.bf16.mxu0 %v2851
    %2887 = vmatmul.mubr.bf16.gmra.mxu0 %v2850
    %v2888 = vpop.f32.mrf.mxu0
    %v2889 = vadd.f32 0.0, %v2888
    %v2890 = vpop.f32.mrf.mxu0
    %v2891 = vadd.f32 0.0, %v2890
    %v2892 = vpop.f32.mrf.mxu0
    %v2893 = vpop.f32.mrf.mxu0
    %2894 = vdwg.mxu0
    %2895 = vmatprep.subr.bf16.mxu0 %v2485
    %2896 = vmatpush1.bf16.msra.mxu0 %v2484
    %2897 = vmatprep.subr.bf16.mxu0 %v2481
    %2898 = vmatpush1.bf16.msra.mxu0 %v2480
    %2899 = vmatprep.subr.bf16.mxu0 %v2477
    %2900 = vmatpush1.bf16.msra.mxu0 %v2476
    %2901 = vmatprep.subr.bf16.mxu0 %v2473
    %2902 = vmatpush1.bf16.msra.mxu0 %v2472
    %2903 = vmatprep.subr.bf16.mxu0 %v2469
    %2904 = vmatpush1.bf16.msra.mxu0 %v2468
    %2905 = vmatprep.subr.bf16.mxu0 %v2465
    %2906 = vmatpush1.bf16.msra.mxu0 %v2464
    %2907 = vmatprep.subr.bf16.mxu0 %v2461
    %2908 = vmatpush1.bf16.msra.mxu0 %v2460
    %2909 = vmatprep.subr.bf16.mxu0 %v2457
    %2910 = vmatpush1.bf16.msra.mxu0 %v2456
    %2911 = vmatprep.subr.bf16.mxu0 %v2517
    %2912 = vmatpush2.bf16.msra.mxu0 %v2516
    %2913 = vmatprep.subr.bf16.mxu0 %v2513
    %2914 = vmatpush2.bf16.msra.mxu0 %v2512
    %2915 = vmatprep.subr.bf16.mxu0 %v2509
    %2916 = vmatpush2.bf16.msra.mxu0 %v2508
    %2917 = vmatprep.subr.bf16.mxu0 %v2505
    %2918 = vmatpush2.bf16.msra.mxu0 %v2504
    %2919 = vmatprep.subr.bf16.mxu0 %v2501
    %2920 = vmatpush2.bf16.msra.mxu0 %v2500
    %2921 = vmatprep.subr.bf16.mxu0 %v2497
    %2922 = vmatpush2.bf16.msra.mxu0 %v2496
    %2923 = vmatprep.subr.bf16.mxu0 %v2493
    %2924 = vmatpush2.bf16.msra.mxu0 %v2492
    %2925 = vmatprep.subr.bf16.mxu0 %v2489
    %2926 = vmatpush2.bf16.msra.mxu0 %v2488
    %2927 = vmatprep.mubr.bf16.mxu0 %v2851
    %2928 = vmatmul.mubr.bf16.gmra.mxu0 %v2850
    %v2929 = vpop.f32.mrf.mxu0
    %v2930 = vadd.f32 0.0, %v2929
    %v2931 = vpop.f32.mrf.mxu0
    %v2932 = vadd.f32 0.0, %v2931
    %v2933 = vpop.f32.mrf.mxu0
    %v2934 = vpop.f32.mrf.mxu0
    %2935 = vdwg.mxu0
    %v2936 = vadd.f32 %v2798, %v2889
    %v2937 = vadd.f32 %v2800, %v2891
    %v2938 = vadd.f32 %v2839, %v2930
    %v2939 = vadd.f32 %v2841, %v2932
    %v2940 = vmax.f32 %v2936, %v2937
    %v2941 = vmax.f32 %v2938, %v2939
    %v2942 = vmax.f32 %v2940, %v2941
    %v2943 = vadd.f32 %v2942, %v2676
    %v2944 = vmax.f32 %v2943, 0.0
    %v2945 = vpack.c.bf16 %v2944, %v2944
    %2946 = vmatprep.subr.bf16.mxu0 %v1598
    %2947 = vmatpush1.bf16.msra.mxu0 %v1597
    %2948 = vmatprep.subr.bf16.mxu0 %v1594
    %2949 = vmatpush1.bf16.msra.mxu0 %v1593
    %2950 = vmatprep.subr.bf16.mxu0 %v1590
    %2951 = vmatpush1.bf16.msra.mxu0 %v1589
    %2952 = vmatprep.subr.bf16.mxu0 %v1586
    %2953 = vmatpush1.bf16.msra.mxu0 %v1585
    %2954 = vmatprep.subr.bf16.mxu0 %v1582
    %2955 = vmatpush1.bf16.msra.mxu0 %v1581
    %2956 = vmatprep.subr.bf16.mxu0 %v1578
    %2957 = vmatpush1.bf16.msra.mxu0 %v1577
    %2958 = vmatprep.subr.bf16.mxu0 %v1574
    %2959 = vmatpush1.bf16.msra.mxu0 %v1573
    %2960 = vmatprep.subr.bf16.mxu0 %v1570
    %2961 = vmatpush1.bf16.msra.mxu0 %v1569
    %2962 = vmatprep.subr.bf16.mxu0 %v1630
    %2963 = vmatpush2.bf16.msra.mxu0 %v1629
    %2964 = vmatprep.subr.bf16.mxu0 %v1626
    %2965 = vmatpush2.bf16.msra.mxu0 %v1625
    %2966 = vmatprep.subr.bf16.mxu0 %v1622
    %2967 = vmatpush2.bf16.msra.mxu0 %v1621
    %2968 = vmatprep.subr.bf16.mxu0 %v1618
    %2969 = vmatpush2.bf16.msra.mxu0 %v1617
    %2970 = vmatprep.subr.bf16.mxu0 %v1614
    %2971 = vmatpush2.bf16.msra.mxu0 %v1613
    %2972 = vmatprep.subr.bf16.mxu0 %v1610
    %2973 = vmatpush2.bf16.msra.mxu0 %v1609
    %2974 = vmatprep.subr.bf16.mxu0 %v1606
    %2975 = vmatpush2.bf16.msra.mxu0 %v1605
    %2976 = vmatprep.subr.bf16.mxu0 %v1602
    %2977 = vmatpush2.bf16.msra.mxu0 %v1601
    %2978 = vmatprep.mubr.bf16.mxu0 %v2851
    %2979 = vmatmul.mubr.bf16.gmra.mxu0 %v2850
    %v2980 = vpop.f32.mrf.mxu0
    %v2981 = vadd.f32 0.0, %v2980
    %v2982 = vpop.f32.mrf.mxu0
    %v2983 = vadd.f32 0.0, %v2982
    %v2984 = vpop.f32.mrf.mxu0
    %v2985 = vpop.f32.mrf.mxu0
    %2986 = vdwg.mxu0
    %2987 = vmatprep.subr.bf16.mxu0 %v1600
    %2988 = vmatpush1.bf16.msra.mxu0 %v1599
    %2989 = vmatprep.subr.bf16.mxu0 %v1596
    %2990 = vmatpush1.bf16.msra.mxu0 %v1595
    %2991 = vmatprep.subr.bf16.mxu0 %v1592
    %2992 = vmatpush1.bf16.msra.mxu0 %v1591
    %2993 = vmatprep.subr.bf16.mxu0 %v1588
    %2994 = vmatpush1.bf16.msra.mxu0 %v1587
    %2995 = vmatprep.subr.bf16.mxu0 %v1584
    %2996 = vmatpush1.bf16.msra.mxu0 %v1583
    %2997 = vmatprep.subr.bf16.mxu0 %v1580
    %2998 = vmatpush1.bf16.msra.mxu0 %v1579
    %2999 = vmatprep.subr.bf16.mxu0 %v1576
    %3000 = vmatpush1.bf16.msra.mxu0 %v1575
    %3001 = vmatprep.subr.bf16.mxu0 %v1572
    %3002 = vmatpush1.bf16.msra.mxu0 %v1571
    %3003 = vmatprep.subr.bf16.mxu0 %v1632
    %3004 = vmatpush2.bf16.msra.mxu0 %v1631
    %3005 = vmatprep.subr.bf16.mxu0 %v1628
    %3006 = vmatpush2.bf16.msra.mxu0 %v1627
    %3007 = vmatprep.subr.bf16.mxu0 %v1624
    %3008 = vmatpush2.bf16.msra.mxu0 %v1623
    %3009 = vmatprep.subr.bf16.mxu0 %v1620
    %3010 = vmatpush2.bf16.msra.mxu0 %v1619
    %3011 = vmatprep.subr.bf16.mxu0 %v1616
    %3012 = vmatpush2.bf16.msra.mxu0 %v1615
    %3013 = vmatprep.subr.bf16.mxu0 %v1612
    %3014 = vmatpush2.bf16.msra.mxu0 %v1611
    %3015 = vmatprep.subr.bf16.mxu0 %v1608
    %3016 = vmatpush2.bf16.msra.mxu0 %v1607
    %3017 = vmatprep.subr.bf16.mxu0 %v1604
    %3018 = vmatpush2.bf16.msra.mxu0 %v1603
    %3019 = vmatprep.mubr.bf16.mxu0 %v2851
    %3020 = vmatmul.mubr.bf16.gmra.mxu0 %v2850
    %v3021 = vpop.f32.mrf.mxu0
    %v3022 = vadd.f32 0.0, %v3021
    %v3023 = vpop.f32.mrf.mxu0
    %v3024 = vadd.f32 0.0, %v3023
    %v3025 = vpop.f32.mrf.mxu0
    %v3026 = vpop.f32.mrf.mxu0
    %3027 = vdwg.mxu0
    %3028 = vmatprep.subr.bf16.mxu0 %v2007
    %3029 = vmatpush1.bf16.msra.mxu0 %v2006
    %3030 = vmatprep.subr.bf16.mxu0 %v2003
    %3031 = vmatpush1.bf16.msra.mxu0 %v2002
    %3032 = vmatprep.subr.bf16.mxu0 %v1999
    %3033 = vmatpush1.bf16.msra.mxu0 %v1998
    %3034 = vmatprep.subr.bf16.mxu0 %v1995
    %3035 = vmatpush1.bf16.msra.mxu0 %v1994
    %3036 = vmatprep.subr.bf16.mxu0 %v1991
    %3037 = vmatpush1.bf16.msra.mxu0 %v1990
    %3038 = vmatprep.subr.bf16.mxu0 %v1987
    %3039 = vmatpush1.bf16.msra.mxu0 %v1986
    %3040 = vmatprep.subr.bf16.mxu0 %v1983
    %3041 = vmatpush1.bf16.msra.mxu0 %v1982
    %3042 = vmatprep.subr.bf16.mxu0 %v1979
    %3043 = vmatpush1.bf16.msra.mxu0 %v1978
    %3044 = vmatprep.subr.bf16.mxu0 %v2039
    %3045 = vmatpush2.bf16.msra.mxu0 %v2038
    %3046 = vmatprep.subr.bf16.mxu0 %v2035
    %3047 = vmatpush2.bf16.msra.mxu0 %v2034
    %3048 = vmatprep.subr.bf16.mxu0 %v2031
    %3049 = vmatpush2.bf16.msra.mxu0 %v2030
    %3050 = vmatprep.subr.bf16.mxu0 %v2027
    %3051 = vmatpush2.bf16.msra.mxu0 %v2026
    %3052 = vmatprep.subr.bf16.mxu0 %v2023
    %3053 = vmatpush2.bf16.msra.mxu0 %v2022
    %3054 = vmatprep.subr.bf16.mxu0 %v2019
    %3055 = vmatpush2.bf16.msra.mxu0 %v2018
    %3056 = vmatprep.subr.bf16.mxu0 %v2015
    %3057 = vmatpush2.bf16.msra.mxu0 %v2014
    %3058 = vmatprep.subr.bf16.mxu0 %v2011
    %3059 = vmatpush2.bf16.msra.mxu0 %v2010
    %3060 = vmatprep.mubr.bf16.mxu0 %v2259
    %3061 = vmatmul.mubr.bf16.gmra.mxu0 %v2258
    %v3062 = vpop.f32.mrf.mxu0
    %v3063 = vadd.f32 %v2981, %v3062
    %v3064 = vpop.f32.mrf.mxu0
    %v3065 = vadd.f32 %v2983, %v3064
    %v3066 = vpop.f32.mrf.mxu0
    %v3067 = vpop.f32.mrf.mxu0
    %3068 = vdwg.mxu0
    %3069 = vmatprep.subr.bf16.mxu0 %v2009
    %3070 = vmatpush1.bf16.msra.mxu0 %v2008
    %3071 = vmatprep.subr.bf16.mxu0 %v2005
    %3072 = vmatpush1.bf16.msra.mxu0 %v2004
    %3073 = vmatprep.subr.bf16.mxu0 %v2001
    %3074 = vmatpush1.bf16.msra.mxu0 %v2000
    %3075 = vmatprep.subr.bf16.mxu0 %v1997
    %3076 = vmatpush1.bf16.msra.mxu0 %v1996
    %3077 = vmatprep.subr.bf16.mxu0 %v1993
    %3078 = vmatpush1.bf16.msra.mxu0 %v1992
    %3079 = vmatprep.subr.bf16.mxu0 %v1989
    %3080 = vmatpush1.bf16.msra.mxu0 %v1988
    %3081 = vmatprep.subr.bf16.mxu0 %v1985
    %3082 = vmatpush1.bf16.msra.mxu0 %v1984
    %3083 = vmatprep.subr.bf16.mxu0 %v1981
    %3084 = vmatpush1.bf16.msra.mxu0 %v1980
    %3085 = vmatprep.subr.bf16.mxu0 %v2041
    %3086 = vmatpush2.bf16.msra.mxu0 %v2040
    %3087 = vmatprep.subr.bf16.mxu0 %v2037
    %3088 = vmatpush2.bf16.msra.mxu0 %v2036
    %3089 = vmatprep.subr.bf16.mxu0 %v2033
    %3090 = vmatpush2.bf16.msra.mxu0 %v2032
    %3091 = vmatprep.subr.bf16.mxu0 %v2029
    %3092 = vmatpush2.bf16.msra.mxu0 %v2028
    %3093 = vmatprep.subr.bf16.mxu0 %v2025
    %3094 = vmatpush2.bf16.msra.mxu0 %v2024
    %3095 = vmatprep.subr.bf16.mxu0 %v2021
    %3096 = vmatpush2.bf16.msra.mxu0 %v2020
    %3097 = vmatprep.subr.bf16.mxu0 %v2017
    %3098 = vmatpush2.bf16.msra.mxu0 %v2016
    %3099 = vmatprep.subr.bf16.mxu0 %v2013
    %3100 = vmatpush2.bf16.msra.mxu0 %v2012
    %3101 = vmatprep.mubr.bf16.mxu0 %v2259
    %3102 = vmatmul.mubr.bf16.gmra.mxu0 %v2258
    %v3103 = vpop.f32.mrf.mxu0
    %v3104 = vadd.f32 %v3022, %v3103
    %v3105 = vpop.f32.mrf.mxu0
    %v3106 = vadd.f32 %v3024, %v3105
    %v3107 = vpop.f32.mrf.mxu0
    %v3108 = vpop.f32.mrf.mxu0
    %3109 = vdwg.mxu0
    %s3110 = scalar_lea.vmem [#allocation2], 32
    %v3111 = vld [vmem:[%s3110] sm:$0xff]
    %v3113 = vunpack.c.l.b16 %v3111
    %v3114 = vunpack.c.h.b16 %v3111
    %v3115 = vpack.c.b16 %v3113, %v3113
    %v3116 = vpack.c.b16 %v3114, %v3114
    %3119 = vmatprep.subr.bf16.mxu0 %v2483
    %3120 = vmatpush1.bf16.msra.mxu0 %v2482
    %3121 = vmatprep.subr.bf16.mxu0 %v2479
    %3122 = vmatpush1.bf16.msra.mxu0 %v2478
    %3123 = vmatprep.subr.bf16.mxu0 %v2475
    %3124 = vmatpush1.bf16.msra.mxu0 %v2474
    %3125 = vmatprep.subr.bf16.mxu0 %v2471
    %3126 = vmatpush1.bf16.msra.mxu0 %v2470
    %3127 = vmatprep.subr.bf16.mxu0 %v2467
    %3128 = vmatpush1.bf16.msra.mxu0 %v2466
    %3129 = vmatprep.subr.bf16.mxu0 %v2463
    %3130 = vmatpush1.bf16.msra.mxu0 %v2462
    %3131 = vmatprep.subr.bf16.mxu0 %v2459
    %3132 = vmatpush1.bf16.msra.mxu0 %v2458
    %3133 = vmatprep.subr.bf16.mxu0 %v2455
    %3134 = vmatpush1.bf16.msra.mxu0 %v2454
    %3135 = vmatprep.subr.bf16.mxu0 %v2515
    %3136 = vmatpush2.bf16.msra.mxu0 %v2514
    %3137 = vmatprep.subr.bf16.mxu0 %v2511
    %3138 = vmatpush2.bf16.msra.mxu0 %v2510
    %3139 = vmatprep.subr.bf16.mxu0 %v2507
    %3140 = vmatpush2.bf16.msra.mxu0 %v2506
    %3141 = vmatprep.subr.bf16.mxu0 %v2503
    %3142 = vmatpush2.bf16.msra.mxu0 %v2502
    %3143 = vmatprep.subr.bf16.mxu0 %v2499
    %3144 = vmatpush2.bf16.msra.mxu0 %v2498
    %3145 = vmatprep.subr.bf16.mxu0 %v2495
    %3146 = vmatpush2.bf16.msra.mxu0 %v2494
    %3147 = vmatprep.subr.bf16.mxu0 %v2491
    %3148 = vmatpush2.bf16.msra.mxu0 %v2490
    %3149 = vmatprep.subr.bf16.mxu0 %v2487
    %3150 = vmatpush2.bf16.msra.mxu0 %v2486
    %3151 = vmatprep.mubr.bf16.mxu0 %v3116
    %3152 = vmatmul.mubr.bf16.gmra.mxu0 %v3115
    %v3153 = vpop.f32.mrf.mxu0
    %v3154 = vadd.f32 0.0, %v3153
    %v3155 = vpop.f32.mrf.mxu0
    %v3156 = vadd.f32 0.0, %v3155
    %v3157 = vpop.f32.mrf.mxu0
    %v3158 = vpop.f32.mrf.mxu0
    %3159 = vdwg.mxu0
    %3160 = vmatprep.subr.bf16.mxu0 %v2485
    %3161 = vmatpush1.bf16.msra.mxu0 %v2484
    %3162 = vmatprep.subr.bf16.mxu0 %v2481
    %3163 = vmatpush1.bf16.msra.mxu0 %v2480
    %3164 = vmatprep.subr.bf16.mxu0 %v2477
    %3165 = vmatpush1.bf16.msra.mxu0 %v2476
    %3166 = vmatprep.subr.bf16.mxu0 %v2473
    %3167 = vmatpush1.bf16.msra.mxu0 %v2472
    %3168 = vmatprep.subr.bf16.mxu0 %v2469
    %3169 = vmatpush1.bf16.msra.mxu0 %v2468
    %3170 = vmatprep.subr.bf16.mxu0 %v2465
    %3171 = vmatpush1.bf16.msra.mxu0 %v2464
    %3172 = vmatprep.subr.bf16.mxu0 %v2461
    %3173 = vmatpush1.bf16.msra.mxu0 %v2460
    %3174 = vmatprep.subr.bf16.mxu0 %v2457
    %3175 = vmatpush1.bf16.msra.mxu0 %v2456
    %3176 = vmatprep.subr.bf16.mxu0 %v2517
    %3177 = vmatpush2.bf16.msra.mxu0 %v2516
    %3178 = vmatprep.subr.bf16.mxu0 %v2513
    %3179 = vmatpush2.bf16.msra.mxu0 %v2512
    %3180 = vmatprep.subr.bf16.mxu0 %v2509
    %3181 = vmatpush2.bf16.msra.mxu0 %v2508
    %3182 = vmatprep.subr.bf16.mxu0 %v2505
    %3183 = vmatpush2.bf16.msra.mxu0 %v2504
    %3184 = vmatprep.subr.bf16.mxu0 %v2501
    %3185 = vmatpush2.bf16.msra.mxu0 %v2500
    %3186 = vmatprep.subr.bf16.mxu0 %v2497
    %3187 = vmatpush2.bf16.msra.mxu0 %v2496
    %3188 = vmatprep.subr.bf16.mxu0 %v2493
    %3189 = vmatpush2.bf16.msra.mxu0 %v2492
    %3190 = vmatprep.subr.bf16.mxu0 %v2489
    %3191 = vmatpush2.bf16.msra.mxu0 %v2488
    %3192 = vmatprep.mubr.bf16.mxu0 %v3116
    %3193 = vmatmul.mubr.bf16.gmra.mxu0 %v3115
    %v3194 = vpop.f32.mrf.mxu0
    %v3195 = vadd.f32 0.0, %v3194
    %v3196 = vpop.f32.mrf.mxu0
    %v3197 = vadd.f32 0.0, %v3196
    %v3198 = vpop.f32.mrf.mxu0
    %v3199 = vpop.f32.mrf.mxu0
    %3200 = vdwg.mxu0
    %v3201 = vadd.f32 %v3063, %v3154
    %v3202 = vadd.f32 %v3065, %v3156
    %v3203 = vadd.f32 %v3104, %v3195
    %v3204 = vadd.f32 %v3106, %v3197
    %v3205 = vmax.f32 %v3201, %v3202
    %v3206 = vmax.f32 %v3203, %v3204
    %v3207 = vmax.f32 %v3205, %v3206
    %v3208 = vadd.f32 %v3207, %v2676
    %v3209 = vmax.f32 %v3208, 0.0
    %v3210 = vpack.c.bf16 %v3209, %v3209
    %3211 = vmatprep.subr.bf16.mxu0 %v1598
    %3212 = vmatpush1.bf16.msra.mxu0 %v1597
    %3213 = vmatprep.subr.bf16.mxu0 %v1594
    %3214 = vmatpush1.bf16.msra.mxu0 %v1593
    %3215 = vmatprep.subr.bf16.mxu0 %v1590
    %3216 = vmatpush1.bf16.msra.mxu0 %v1589
    %3217 = vmatprep.subr.bf16.mxu0 %v1586
    %3218 = vmatpush1.bf16.msra.mxu0 %v1585
    %3219 = vmatprep.subr.bf16.mxu0 %v1582
    %3220 = vmatpush1.bf16.msra.mxu0 %v1581
    %3221 = vmatprep.subr.bf16.mxu0 %v1578
    %3222 = vmatpush1.bf16.msra.mxu0 %v1577
    %3223 = vmatprep.subr.bf16.mxu0 %v1574
    %3224 = vmatpush1.bf16.msra.mxu0 %v1573
    %3225 = vmatprep.subr.bf16.mxu0 %v1570
    %3226 = vmatpush1.bf16.msra.mxu0 %v1569
    %3227 = vmatprep.subr.bf16.mxu0 %v1630
    %3228 = vmatpush2.bf16.msra.mxu0 %v1629
    %3229 = vmatprep.subr.bf16.mxu0 %v1626
    %3230 = vmatpush2.bf16.msra.mxu0 %v1625
    %3231 = vmatprep.subr.bf16.mxu0 %v1622
    %3232 = vmatpush2.bf16.msra.mxu0 %v1621
    %3233 = vmatprep.subr.bf16.mxu0 %v1618
    %3234 = vmatpush2.bf16.msra.mxu0 %v1617
    %3235 = vmatprep.subr.bf16.mxu0 %v1614
    %3236 = vmatpush2.bf16.msra.mxu0 %v1613
    %3237 = vmatprep.subr.bf16.mxu0 %v1610
    %3238 = vmatpush2.bf16.msra.mxu0 %v1609
    %3239 = vmatprep.subr.bf16.mxu0 %v1606
    %3240 = vmatpush2.bf16.msra.mxu0 %v1605
    %3241 = vmatprep.subr.bf16.mxu0 %v1602
    %3242 = vmatpush2.bf16.msra.mxu0 %v1601
    %3243 = vmatprep.mubr.bf16.mxu0 %v3116
    %3244 = vmatmul.mubr.bf16.gmra.mxu0 %v3115
    %v3245 = vpop.f32.mrf.mxu0
    %v3246 = vadd.f32 0.0, %v3245
    %v3247 = vpop.f32.mrf.mxu0
    %v3248 = vadd.f32 0.0, %v3247
    %v3249 = vpop.f32.mrf.mxu0
    %v3250 = vpop.f32.mrf.mxu0
    %3251 = vdwg.mxu0
    %3252 = vmatprep.subr.bf16.mxu0 %v1600
    %3253 = vmatpush1.bf16.msra.mxu0 %v1599
    %3254 = vmatprep.subr.bf16.mxu0 %v1596
    %3255 = vmatpush1.bf16.msra.mxu0 %v1595
    %3256 = vmatprep.subr.bf16.mxu0 %v1592
    %3257 = vmatpush1.bf16.msra.mxu0 %v1591
    %3258 = vmatprep.subr.bf16.mxu0 %v1588
    %3259 = vmatpush1.bf16.msra.mxu0 %v1587
    %3260 = vmatprep.subr.bf16.mxu0 %v1584
    %3261 = vmatpush1.bf16.msra.mxu0 %v1583
    %3262 = vmatprep.subr.bf16.mxu0 %v1580
    %3263 = vmatpush1.bf16.msra.mxu0 %v1579
    %3264 = vmatprep.subr.bf16.mxu0 %v1576
    %3265 = vmatpush1.bf16.msra.mxu0 %v1575
    %3266 = vmatprep.subr.bf16.mxu0 %v1572
    %3267 = vmatpush1.bf16.msra.mxu0 %v1571
    %3268 = vmatprep.subr.bf16.mxu0 %v1632
    %3269 = vmatpush2.bf16.msra.mxu0 %v1631
    %3270 = vmatprep.subr.bf16.mxu0 %v1628
    %3271 = vmatpush2.bf16.msra.mxu0 %v1627
    %3272 = vmatprep.subr.bf16.mxu0 %v1624
    %3273 = vmatpush2.bf16.msra.mxu0 %v1623
    %3274 = vmatprep.subr.bf16.mxu0 %v1620
    %3275 = vmatpush2.bf16.msra.mxu0 %v1619
    %3276 = vmatprep.subr.bf16.mxu0 %v1616
    %3277 = vmatpush2.bf16.msra.mxu0 %v1615
    %3278 = vmatprep.subr.bf16.mxu0 %v1612
    %3279 = vmatpush2.bf16.msra.mxu0 %v1611
    %3280 = vmatprep.subr.bf16.mxu0 %v1608
    %3281 = vmatpush2.bf16.msra.mxu0 %v1607
    %3282 = vmatprep.subr.bf16.mxu0 %v1604
    %3283 = vmatpush2.bf16.msra.mxu0 %v1603
    %3284 = vmatprep.mubr.bf16.mxu0 %v3116
    %3285 = vmatmul.mubr.bf16.gmra.mxu0 %v3115
    %v3286 = vpop.f32.mrf.mxu0
    %v3287 = vadd.f32 0.0, %v3286
    %v3288 = vpop.f32.mrf.mxu0
    %v3289 = vadd.f32 0.0, %v3288
    %v3290 = vpop.f32.mrf.mxu0
    %v3291 = vpop.f32.mrf.mxu0
    %3292 = vdwg.mxu0
    %3293 = vmatprep.subr.bf16.mxu0 %v2007
    %3294 = vmatpush1.bf16.msra.mxu0 %v2006
    %3295 = vmatprep.subr.bf16.mxu0 %v2003
    %3296 = vmatpush1.bf16.msra.mxu0 %v2002
    %3297 = vmatprep.subr.bf16.mxu0 %v1999
    %3298 = vmatpush1.bf16.msra.mxu0 %v1998
    %3299 = vmatprep.subr.bf16.mxu0 %v1995
    %3300 = vmatpush1.bf16.msra.mxu0 %v1994
    %3301 = vmatprep.subr.bf16.mxu0 %v1991
    %3302 = vmatpush1.bf16.msra.mxu0 %v1990
    %3303 = vmatprep.subr.bf16.mxu0 %v1987
    %3304 = vmatpush1.bf16.msra.mxu0 %v1986
    %3305 = vmatprep.subr.bf16.mxu0 %v1983
    %3306 = vmatpush1.bf16.msra.mxu0 %v1982
    %3307 = vmatprep.subr.bf16.mxu0 %v1979
    %3308 = vmatpush1.bf16.msra.mxu0 %v1978
    %3309 = vmatprep.subr.bf16.mxu0 %v2039
    %3310 = vmatpush2.bf16.msra.mxu0 %v2038
    %3311 = vmatprep.subr.bf16.mxu0 %v2035
    %3312 = vmatpush2.bf16.msra.mxu0 %v2034
    %3313 = vmatprep.subr.bf16.mxu0 %v2031
    %3314 = vmatpush2.bf16.msra.mxu0 %v2030
    %3315 = vmatprep.subr.bf16.mxu0 %v2027
    %3316 = vmatpush2.bf16.msra.mxu0 %v2026
    %3317 = vmatprep.subr.bf16.mxu0 %v2023
    %3318 = vmatpush2.bf16.msra.mxu0 %v2022
    %3319 = vmatprep.subr.bf16.mxu0 %v2019
    %3320 = vmatpush2.bf16.msra.mxu0 %v2018
    %3321 = vmatprep.subr.bf16.mxu0 %v2015
    %3322 = vmatpush2.bf16.msra.mxu0 %v2014
    %3323 = vmatprep.subr.bf16.mxu0 %v2011
    %3324 = vmatpush2.bf16.msra.mxu0 %v2010
    %3325 = vmatprep.mubr.bf16.mxu0 %v2851
    %3326 = vmatmul.mubr.bf16.gmra.mxu0 %v2850
    %v3327 = vpop.f32.mrf.mxu0
    %v3328 = vadd.f32 %v3246, %v3327
    %v3329 = vpop.f32.mrf.mxu0
    %v3330 = vadd.f32 %v3248, %v3329
    %v3331 = vpop.f32.mrf.mxu0
    %v3332 = vpop.f32.mrf.mxu0
    %3333 = vdwg.mxu0
    %3334 = vmatprep.subr.bf16.mxu0 %v2009
    %3335 = vmatpush1.bf16.msra.mxu0 %v2008
    %3336 = vmatprep.subr.bf16.mxu0 %v2005
    %3337 = vmatpush1.bf16.msra.mxu0 %v2004
    %3338 = vmatprep.subr.bf16.mxu0 %v2001
    %3339 = vmatpush1.bf16.msra.mxu0 %v2000
    %3340 = vmatprep.subr.bf16.mxu0 %v1997
    %3341 = vmatpush1.bf16.msra.mxu0 %v1996
    %3342 = vmatprep.subr.bf16.mxu0 %v1993
    %3343 = vmatpush1.bf16.msra.mxu0 %v1992
    %3344 = vmatprep.subr.bf16.mxu0 %v1989
    %3345 = vmatpush1.bf16.msra.mxu0 %v1988
    %3346 = vmatprep.subr.bf16.mxu0 %v1985
    %3347 = vmatpush1.bf16.msra.mxu0 %v1984
    %3348 = vmatprep.subr.bf16.mxu0 %v1981
    %3349 = vmatpush1.bf16.msra.mxu0 %v1980
    %3350 = vmatprep.subr.bf16.mxu0 %v2041
    %3351 = vmatpush2.bf16.msra.mxu0 %v2040
    %3352 = vmatprep.subr.bf16.mxu0 %v2037
    %3353 = vmatpush2.bf16.msra.mxu0 %v2036
    %3354 = vmatprep.subr.bf16.mxu0 %v2033
    %3355 = vmatpush2.bf16.msra.mxu0 %v2032
    %3356 = vmatprep.subr.bf16.mxu0 %v2029
    %3357 = vmatpush2.bf16.msra.mxu0 %v2028
    %3358 = vmatprep.subr.bf16.mxu0 %v2025
    %3359 = vmatpush2.bf16.msra.mxu0 %v2024
    %3360 = vmatprep.subr.bf16.mxu0 %v2021
    %3361 = vmatpush2.bf16.msra.mxu0 %v2020
    %3362 = vmatprep.subr.bf16.mxu0 %v2017
    %3363 = vmatpush2.bf16.msra.mxu0 %v2016
    %3364 = vmatprep.subr.bf16.mxu0 %v2013
    %3365 = vmatpush2.bf16.msra.mxu0 %v2012
    %3366 = vmatprep.mubr.bf16.mxu0 %v2851
    %3367 = vmatmul.mubr.bf16.gmra.mxu0 %v2850
    %v3368 = vpop.f32.mrf.mxu0
    %v3369 = vadd.f32 %v3287, %v3368
    %v3370 = vpop.f32.mrf.mxu0
    %v3371 = vadd.f32 %v3289, %v3370
    %v3372 = vpop.f32.mrf.mxu0
    %v3373 = vpop.f32.mrf.mxu0
    %3374 = vdwg.mxu0
    %s3375 = scalar_lea.vmem [#allocation2], 40
    %v3376 = vld [vmem:[%s3375] sm:$0xff]
    %v3378 = vunpack.c.l.b16 %v3376
    %v3379 = vunpack.c.h.b16 %v3376
    %v3380 = vpack.c.b16 %v3378, %v3378
    %v3381 = vpack.c.b16 %v3379, %v3379
    %3384 = vmatprep.subr.bf16.mxu0 %v2483
    %3385 = vmatpush1.bf16.msra.mxu0 %v2482
    %3386 = vmatprep.subr.bf16.mxu0 %v2479
    %3387 = vmatpush1.bf16.msra.mxu0 %v2478
    %3388 = vmatprep.subr.bf16.mxu0 %v2475
    %3389 = vmatpush1.bf16.msra.mxu0 %v2474
    %3390 = vmatprep.subr.bf16.mxu0 %v2471
    %3391 = vmatpush1.bf16.msra.mxu0 %v2470
    %3392 = vmatprep.subr.bf16.mxu0 %v2467
    %3393 = vmatpush1.bf16.msra.mxu0 %v2466
    %3394 = vmatprep.subr.bf16.mxu0 %v2463
    %3395 = vmatpush1.bf16.msra.mxu0 %v2462
    %3396 = vmatprep.subr.bf16.mxu0 %v2459
    %3397 = vmatpush1.bf16.msra.mxu0 %v2458
    %3398 = vmatprep.subr.bf16.mxu0 %v2455
    %3399 = vmatpush1.bf16.msra.mxu0 %v2454
    %3400 = vmatprep.subr.bf16.mxu0 %v2515
    %3401 = vmatpush2.bf16.msra.mxu0 %v2514
    %3402 = vmatprep.subr.bf16.mxu0 %v2511
    %3403 = vmatpush2.bf16.msra.mxu0 %v2510
    %3404 = vmatprep.subr.bf16.mxu0 %v2507
    %3405 = vmatpush2.bf16.msra.mxu0 %v2506
    %3406 = vmatprep.subr.bf16.mxu0 %v2503
    %3407 = vmatpush2.bf16.msra.mxu0 %v2502
    %3408 = vmatprep.subr.bf16.mxu0 %v2499
    %3409 = vmatpush2.bf16.msra.mxu0 %v2498
    %3410 = vmatprep.subr.bf16.mxu0 %v2495
    %3411 = vmatpush2.bf16.msra.mxu0 %v2494
    %3412 = vmatprep.subr.bf16.mxu0 %v2491
    %3413 = vmatpush2.bf16.msra.mxu0 %v2490
    %3414 = vmatprep.subr.bf16.mxu0 %v2487
    %3415 = vmatpush2.bf16.msra.mxu0 %v2486
    %3416 = vmatprep.mubr.bf16.mxu0 %v3381
    %3417 = vmatmul.mubr.bf16.gmra.mxu0 %v3380
    %v3418 = vpop.f32.mrf.mxu0
    %v3419 = vadd.f32 0.0, %v3418
    %v3420 = vpop.f32.mrf.mxu0
    %v3421 = vadd.f32 0.0, %v3420
    %v3422 = vpop.f32.mrf.mxu0
    %v3423 = vpop.f32.mrf.mxu0
    %3424 = vdwg.mxu0
    %3425 = vmatprep.subr.bf16.mxu0 %v2485
    %3426 = vmatpush1.bf16.msra.mxu0 %v2484
    %3427 = vmatprep.subr.bf16.mxu0 %v2481
    %3428 = vmatpush1.bf16.msra.mxu0 %v2480
    %3429 = vmatprep.subr.bf16.mxu0 %v2477
    %3430 = vmatpush1.bf16.msra.mxu0 %v2476
    %3431 = vmatprep.subr.bf16.mxu0 %v2473
    %3432 = vmatpush1.bf16.msra.mxu0 %v2472
    %3433 = vmatprep.subr.bf16.mxu0 %v2469
    %3434 = vmatpush1.bf16.msra.mxu0 %v2468
    %3435 = vmatprep.subr.bf16.mxu0 %v2465
    %3436 = vmatpush1.bf16.msra.mxu0 %v2464
    %3437 = vmatprep.subr.bf16.mxu0 %v2461
    %3438 = vmatpush1.bf16.msra.mxu0 %v2460
    %3439 = vmatprep.subr.bf16.mxu0 %v2457
    %3440 = vmatpush1.bf16.msra.mxu0 %v2456
    %3441 = vmatprep.subr.bf16.mxu0 %v2517
    %3442 = vmatpush2.bf16.msra.mxu0 %v2516
    %3443 = vmatprep.subr.bf16.mxu0 %v2513
    %3444 = vmatpush2.bf16.msra.mxu0 %v2512
    %3445 = vmatprep.subr.bf16.mxu0 %v2509
    %3446 = vmatpush2.bf16.msra.mxu0 %v2508
    %3447 = vmatprep.subr.bf16.mxu0 %v2505
    %3448 = vmatpush2.bf16.msra.mxu0 %v2504
    %3449 = vmatprep.subr.bf16.mxu0 %v2501
    %3450 = vmatpush2.bf16.msra.mxu0 %v2500
    %3451 = vmatprep.subr.bf16.mxu0 %v2497
    %3452 = vmatpush2.bf16.msra.mxu0 %v2496
    %3453 = vmatprep.subr.bf16.mxu0 %v2493
    %3454 = vmatpush2.bf16.msra.mxu0 %v2492
    %3455 = vmatprep.subr.bf16.mxu0 %v2489
    %3456 = vmatpush2.bf16.msra.mxu0 %v2488
    %3457 = vmatprep.mubr.bf16.mxu0 %v3381
    %3458 = vmatmul.mubr.bf16.gmra.mxu0 %v3380
    %v3459 = vpop.f32.mrf.mxu0
    %v3460 = vadd.f32 0.0, %v3459
    %v3461 = vpop.f32.mrf.mxu0
    %v3462 = vadd.f32 0.0, %v3461
    %v3463 = vpop.f32.mrf.mxu0
    %v3464 = vpop.f32.mrf.mxu0
    %3465 = vdwg.mxu0
    %v3466 = vadd.f32 %v3328, %v3419
    %v3467 = vadd.f32 %v3330, %v3421
    %v3468 = vadd.f32 %v3369, %v3460
    %v3469 = vadd.f32 %v3371, %v3462
    %v3470 = vmax.f32 %v3466, %v3467
    %v3471 = vmax.f32 %v3468, %v3469
    %v3472 = vmax.f32 %v3470, %v3471
    %v3473 = vadd.f32 %v3472, %v2676
    %v3474 = vmax.f32 %v3473, 0.0
    %v3475 = vpack.c.bf16 %v3474, %v3474
    %v3476 = vld [vmem:[%s5] sm:$0xff]
    %v3477 = vld [vmem:[%s5 + $0x8] sm:$0xff]
    %v3478 = vld [vmem:[%s5 + $0x10] sm:$0xff]
    %v3479 = vld [vmem:[%s5 + $0x18] sm:$0xff]
    %v3480 = vld [vmem:[%s5 + $0x20] sm:$0xff]
    %v3481 = vld [vmem:[%s5 + $0x28] sm:$0xff]
    %v3482 = vld [vmem:[%s5 + $0x30] sm:$0xff]
    %v3483 = vld [vmem:[%s5 + $0x38] sm:$0xff]
    %v3484 = vld [vmem:[%s5 + $0x40] sm:$0xff]
    %v3485 = vld [vmem:[%s5 + $0x48] sm:$0xff]
    %v3486 = vld [vmem:[%s5 + $0x50] sm:$0xff]
    %v3487 = vld [vmem:[%s5 + $0x58] sm:$0xff]
    %v3488 = vld [vmem:[%s5 + $0x60] sm:$0xff]
    %v3489 = vld [vmem:[%s5 + $0x68] sm:$0xff]
    %v3490 = vld [vmem:[%s5 + $0x70] sm:$0xff]
    %v3491 = vld [vmem:[%s5 + $0x78] sm:$0xff]
    %v3492 = vld [vmem:[%s5 + $0x80] sm:$0xff]
    %v3493 = vld [vmem:[%s5 + $0x88] sm:$0xff]
    %v3494 = vld [vmem:[%s5 + $0x90] sm:$0xff]
    %v3495 = vld [vmem:[%s5 + $0x98] sm:$0xff]
    %v3496 = vld [vmem:[%s5 + $0xa0] sm:$0xff]
    %v3497 = vld [vmem:[%s5 + $0xa8] sm:$0xff]
    %v3498 = vld [vmem:[%s5 + $0xb0] sm:$0xff]
    %v3499 = vld [vmem:[%s5 + $0xb8] sm:$0xff]
    %v3500 = vld [vmem:[%s5 + $0xc0] sm:$0xff]
    %v3501 = vld [vmem:[%s5 + $0xc8] sm:$0xff]
    %v3502 = vld [vmem:[%s5 + $0xd0] sm:$0xff]
    %v3503 = vld [vmem:[%s5 + $0xd8] sm:$0xff]
    %v3504 = vld [vmem:[%s5 + $0xe0] sm:$0xff]
    %v3505 = vld [vmem:[%s5 + $0xe8] sm:$0xff]
    %v3506 = vld [vmem:[%s5 + $0xf0] sm:$0xff]
    %v3507 = vld [vmem:[%s5 + $0xf8] sm:$0xff]
    %v3508 = vld [vmem:[%s5 + $0x100] sm:$0xff]
    %v3509 = vld [vmem:[%s5 + $0x108] sm:$0xff]
    %v3510 = vld [vmem:[%s5 + $0x110] sm:$0xff]
    %v3511 = vld [vmem:[%s5 + $0x118] sm:$0xff]
    %v3512 = vld [vmem:[%s5 + $0x120] sm:$0xff]
    %v3513 = vld [vmem:[%s5 + $0x128] sm:$0xff]
    %v3514 = vld [vmem:[%s5 + $0x130] sm:$0xff]
    %v3515 = vld [vmem:[%s5 + $0x138] sm:$0xff]
    %v3516 = vld [vmem:[%s5 + $0x140] sm:$0xff]
    %v3517 = vld [vmem:[%s5 + $0x148] sm:$0xff]
    %v3518 = vld [vmem:[%s5 + $0x150] sm:$0xff]
    %v3519 = vld [vmem:[%s5 + $0x158] sm:$0xff]
    %v3520 = vld [vmem:[%s5 + $0x160] sm:$0xff]
    %v3521 = vld [vmem:[%s5 + $0x168] sm:$0xff]
    %v3522 = vld [vmem:[%s5 + $0x170] sm:$0xff]
    %v3523 = vld [vmem:[%s5 + $0x178] sm:$0xff]
    %v3524 = vld [vmem:[%s5 + $0x180] sm:$0xff]
    %v3525 = vld [vmem:[%s5 + $0x188] sm:$0xff]
    %v3526 = vld [vmem:[%s5 + $0x190] sm:$0xff]
    %v3527 = vld [vmem:[%s5 + $0x198] sm:$0xff]
    %v3528 = vld [vmem:[%s5 + $0x1a0] sm:$0xff]
    %v3529 = vld [vmem:[%s5 + $0x1a8] sm:$0xff]
    %v3530 = vld [vmem:[%s5 + $0x1b0] sm:$0xff]
    %v3531 = vld [vmem:[%s5 + $0x1b8] sm:$0xff]
    %v3532 = vld [vmem:[%s5 + $0x1c0] sm:$0xff]
    %v3533 = vld [vmem:[%s5 + $0x1c8] sm:$0xff]
    %v3534 = vld [vmem:[%s5 + $0x1d0] sm:$0xff]
    %v3535 = vld [vmem:[%s5 + $0x1d8] sm:$0xff]
    %v3536 = vld [vmem:[%s5 + $0x1e0] sm:$0xff]
    %v3537 = vld [vmem:[%s5 + $0x1e8] sm:$0xff]
    %v3538 = vld [vmem:[%s5 + $0x1f0] sm:$0xff]
    %v3539 = vld [vmem:[%s5 + $0x1f8] sm:$0xff]
    %v3540 = vld [vmem:[%s6] sm:$0x3]
    %v3542 = vlaneseq
    %v3543 = vshrl.u32 %v3542, 7
    %v3544 = vsub.s32 0, %v3543
    %v3545 = vrot.slane %v3540, %v3544
    %v3546 = vlaneseq
    %v3547 = vshrl.u32 %v3546, 7
    %v3548 = vsub.s32 1, %v3547
    %v3549 = vrot.slane %v3540, %v3548
    %v3616 = vunpack.c.l.b16 %v3476
    %v3617 = vunpack.c.h.b16 %v3476
    %v3618 = vunpack.c.l.b16 %v3477
    %v3619 = vunpack.c.h.b16 %v3477
    %v3620 = vunpack.c.l.b16 %v3478
    %v3621 = vunpack.c.h.b16 %v3478
    %v3622 = vunpack.c.l.b16 %v3479
    %v3623 = vunpack.c.h.b16 %v3479
    %v3624 = vunpack.c.l.b16 %v3480
    %v3625 = vunpack.c.h.b16 %v3480
    %v3626 = vunpack.c.l.b16 %v3481
    %v3627 = vunpack.c.h.b16 %v3481
    %v3628 = vunpack.c.l.b16 %v3482
    %v3629 = vunpack.c.h.b16 %v3482
    %v3630 = vunpack.c.l.b16 %v3483
    %v3631 = vunpack.c.h.b16 %v3483
    %v3632 = vunpack.c.l.b16 %v3484
    %v3633 = vunpack.c.h.b16 %v3484
    %v3634 = vunpack.c.l.b16 %v3485
    %v3635 = vunpack.c.h.b16 %v3485
    %v3636 = vunpack.c.l.b16 %v3486
    %v3637 = vunpack.c.h.b16 %v3486
    %v3638 = vunpack.c.l.b16 %v3487
    %v3639 = vunpack.c.h.b16 %v3487
    %v3640 = vunpack.c.l.b16 %v3488
    %v3641 = vunpack.c.h.b16 %v3488
    %v3642 = vunpack.c.l.b16 %v3489
    %v3643 = vunpack.c.h.b16 %v3489
    %v3644 = vunpack.c.l.b16 %v3490
    %v3645 = vunpack.c.h.b16 %v3490
    %v3646 = vunpack.c.l.b16 %v3491
    %v3647 = vunpack.c.h.b16 %v3491
    %v3648 = vunpack.c.l.b16 %v3492
    %v3649 = vunpack.c.h.b16 %v3492
    %v3650 = vunpack.c.l.b16 %v3493
    %v3651 = vunpack.c.h.b16 %v3493
    %v3652 = vunpack.c.l.b16 %v3494
    %v3653 = vunpack.c.h.b16 %v3494
    %v3654 = vunpack.c.l.b16 %v3495
    %v3655 = vunpack.c.h.b16 %v3495
    %v3656 = vunpack.c.l.b16 %v3496
    %v3657 = vunpack.c.h.b16 %v3496
    %v3658 = vunpack.c.l.b16 %v3497
    %v3659 = vunpack.c.h.b16 %v3497
    %v3660 = vunpack.c.l.b16 %v3498
    %v3661 = vunpack.c.h.b16 %v3498
    %v3662 = vunpack.c.l.b16 %v3499
    %v3663 = vunpack.c.h.b16 %v3499
    %v3664 = vunpack.c.l.b16 %v3500
    %v3665 = vunpack.c.h.b16 %v3500
    %v3666 = vunpack.c.l.b16 %v3501
    %v3667 = vunpack.c.h.b16 %v3501
    %v3668 = vunpack.c.l.b16 %v3502
    %v3669 = vunpack.c.h.b16 %v3502
    %v3670 = vunpack.c.l.b16 %v3503
    %v3671 = vunpack.c.h.b16 %v3503
    %v3672 = vunpack.c.l.b16 %v3504
    %v3673 = vunpack.c.h.b16 %v3504
    %v3674 = vunpack.c.l.b16 %v3505
    %v3675 = vunpack.c.h.b16 %v3505
    %v3676 = vunpack.c.l.b16 %v3506
    %v3677 = vunpack.c.h.b16 %v3506
    %v3678 = vunpack.c.l.b16 %v3507
    %v3679 = vunpack.c.h.b16 %v3507
    %v3680 = vunpack.c.l.b16 %v3508
    %v3681 = vunpack.c.h.b16 %v3508
    %v3682 = vunpack.c.l.b16 %v3509
    %v3683 = vunpack.c.h.b16 %v3509
    %v3684 = vunpack.c.l.b16 %v3510
    %v3685 = vunpack.c.h.b16 %v3510
    %v3686 = vunpack.c.l.b16 %v3511
    %v3687 = vunpack.c.h.b16 %v3511
    %v3688 = vunpack.c.l.b16 %v3512
    %v3689 = vunpack.c.h.b16 %v3512
    %v3690 = vunpack.c.l.b16 %v3513
    %v3691 = vunpack.c.h.b16 %v3513
    %v3692 = vunpack.c.l.b16 %v3514
    %v3693 = vunpack.c.h.b16 %v3514
    %v3694 = vunpack.c.l.b16 %v3515
    %v3695 = vunpack.c.h.b16 %v3515
    %v3696 = vunpack.c.l.b16 %v3516
    %v3697 = vunpack.c.h.b16 %v3516
    %v3698 = vunpack.c.l.b16 %v3517
    %v3699 = vunpack.c.h.b16 %v3517
    %v3700 = vunpack.c.l.b16 %v3518
    %v3701 = vunpack.c.h.b16 %v3518
    %v3702 = vunpack.c.l.b16 %v3519
    %v3703 = vunpack.c.h.b16 %v3519
    %v3704 = vunpack.c.l.b16 %v3520
    %v3705 = vunpack.c.h.b16 %v3520
    %v3706 = vunpack.c.l.b16 %v3521
    %v3707 = vunpack.c.h.b16 %v3521
    %v3708 = vunpack.c.l.b16 %v3522
    %v3709 = vunpack.c.h.b16 %v3522
    %v3710 = vunpack.c.l.b16 %v3523
    %v3711 = vunpack.c.h.b16 %v3523
    %v3712 = vunpack.c.l.b16 %v3524
    %v3713 = vunpack.c.h.b16 %v3524
    %v3714 = vunpack.c.l.b16 %v3525
    %v3715 = vunpack.c.h.b16 %v3525
    %v3716 = vunpack.c.l.b16 %v3526
    %v3717 = vunpack.c.h.b16 %v3526
    %v3718 = vunpack.c.l.b16 %v3527
    %v3719 = vunpack.c.h.b16 %v3527
    %v3720 = vunpack.c.l.b16 %v3528
    %v3721 = vunpack.c.h.b16 %v3528
    %v3722 = vunpack.c.l.b16 %v3529
    %v3723 = vunpack.c.h.b16 %v3529
    %v3724 = vunpack.c.l.b16 %v3530
    %v3725 = vunpack.c.h.b16 %v3530
    %v3726 = vunpack.c.l.b16 %v3531
    %v3727 = vunpack.c.h.b16 %v3531
    %v3728 = vunpack.c.l.b16 %v3532
    %v3729 = vunpack.c.h.b16 %v3532
    %v3730 = vunpack.c.l.b16 %v3533
    %v3731 = vunpack.c.h.b16 %v3533
    %v3732 = vunpack.c.l.b16 %v3534
    %v3733 = vunpack.c.h.b16 %v3534
    %v3734 = vunpack.c.l.b16 %v3535
    %v3735 = vunpack.c.h.b16 %v3535
    %v3736 = vunpack.c.l.b16 %v3536
    %v3737 = vunpack.c.h.b16 %v3536
    %v3738 = vunpack.c.l.b16 %v3537
    %v3739 = vunpack.c.h.b16 %v3537
    %v3740 = vunpack.c.l.b16 %v3538
    %v3741 = vunpack.c.h.b16 %v3538
    %v3742 = vunpack.c.l.b16 %v3539
    %v3743 = vunpack.c.h.b16 %v3539
    %v3744 = vpack.c.b16 %v3618, %v3616
    %v3745 = vpack.c.b16 %v3619, %v3617
    %v3746 = vpack.c.b16 %v3622, %v3620
    %v3747 = vpack.c.b16 %v3623, %v3621
    %v3748 = vpack.c.b16 %v3626, %v3624
    %v3749 = vpack.c.b16 %v3627, %v3625
    %v3750 = vpack.c.b16 %v3630, %v3628
    %v3751 = vpack.c.b16 %v3631, %v3629
    %v3752 = vpack.c.b16 %v3634, %v3632
    %v3753 = vpack.c.b16 %v3635, %v3633
    %v3754 = vpack.c.b16 %v3638, %v3636
    %v3755 = vpack.c.b16 %v3639, %v3637
    %v3756 = vpack.c.b16 %v3642, %v3640
    %v3757 = vpack.c.b16 %v3643, %v3641
    %v3758 = vpack.c.b16 %v3646, %v3644
    %v3759 = vpack.c.b16 %v3647, %v3645
    %v3760 = vpack.c.b16 %v3650, %v3648
    %v3761 = vpack.c.b16 %v3651, %v3649
    %v3762 = vpack.c.b16 %v3654, %v3652
    %v3763 = vpack.c.b16 %v3655, %v3653
    %v3764 = vpack.c.b16 %v3658, %v3656
    %v3765 = vpack.c.b16 %v3659, %v3657
    %v3766 = vpack.c.b16 %v3662, %v3660
    %v3767 = vpack.c.b16 %v3663, %v3661
    %v3768 = vpack.c.b16 %v3666, %v3664
    %v3769 = vpack.c.b16 %v3667, %v3665
    %v3770 = vpack.c.b16 %v3670, %v3668
    %v3771 = vpack.c.b16 %v3671, %v3669
    %v3772 = vpack.c.b16 %v3674, %v3672
    %v3773 = vpack.c.b16 %v3675, %v3673
    %v3774 = vpack.c.b16 %v3678, %v3676
    %v3775 = vpack.c.b16 %v3679, %v3677
    %v3776 = vpack.c.b16 %v3682, %v3680
    %v3777 = vpack.c.b16 %v3683, %v3681
    %v3778 = vpack.c.b16 %v3686, %v3684
    %v3779 = vpack.c.b16 %v3687, %v3685
    %v3780 = vpack.c.b16 %v3690, %v3688
    %v3781 = vpack.c.b16 %v3691, %v3689
    %v3782 = vpack.c.b16 %v3694, %v3692
    %v3783 = vpack.c.b16 %v3695, %v3693
    %v3784 = vpack.c.b16 %v3698, %v3696
    %v3785 = vpack.c.b16 %v3699, %v3697
    %v3786 = vpack.c.b16 %v3702, %v3700
    %v3787 = vpack.c.b16 %v3703, %v3701
    %v3788 = vpack.c.b16 %v3706, %v3704
    %v3789 = vpack.c.b16 %v3707, %v3705
    %v3790 = vpack.c.b16 %v3710, %v3708
    %v3791 = vpack.c.b16 %v3711, %v3709
    %v3792 = vpack.c.b16 %v3714, %v3712
    %v3793 = vpack.c.b16 %v3715, %v3713
    %v3794 = vpack.c.b16 %v3718, %v3716
    %v3795 = vpack.c.b16 %v3719, %v3717
    %v3796 = vpack.c.b16 %v3722, %v3720
    %v3797 = vpack.c.b16 %v3723, %v3721
    %v3798 = vpack.c.b16 %v3726, %v3724
    %v3799 = vpack.c.b16 %v3727, %v3725
    %v3800 = vpack.c.b16 %v3730, %v3728
    %v3801 = vpack.c.b16 %v3731, %v3729
    %v3802 = vpack.c.b16 %v3734, %v3732
    %v3803 = vpack.c.b16 %v3735, %v3733
    %v3804 = vpack.c.b16 %v3738, %v3736
    %v3805 = vpack.c.b16 %v3739, %v3737
    %v3806 = vpack.c.b16 %v3742, %v3740
    %v3807 = vpack.c.b16 %v3743, %v3741
    %3872 = vmatprep.subr.bf16.mxu0 %v3759
    %3873 = vmatpush1.bf16.msra.mxu0 %v3758
    %3874 = vmatprep.subr.bf16.mxu0 %v3757
    %3875 = vmatpush1.bf16.msra.mxu0 %v3756
    %3876 = vmatprep.subr.bf16.mxu0 %v3755
    %3877 = vmatpush1.bf16.msra.mxu0 %v3754
    %3878 = vmatprep.subr.bf16.mxu0 %v3753
    %3879 = vmatpush1.bf16.msra.mxu0 %v3752
    %3880 = vmatprep.subr.bf16.mxu0 %v3751
    %3881 = vmatpush1.bf16.msra.mxu0 %v3750
    %3882 = vmatprep.subr.bf16.mxu0 %v3749
    %3883 = vmatpush1.bf16.msra.mxu0 %v3748
    %3884 = vmatprep.subr.bf16.mxu0 %v3747
    %3885 = vmatpush1.bf16.msra.mxu0 %v3746
    %3886 = vmatprep.subr.bf16.mxu0 %v3745
    %3887 = vmatpush1.bf16.msra.mxu0 %v3744
    %3888 = vmatprep.subr.bf16.mxu0 %v3775
    %3889 = vmatpush2.bf16.msra.mxu0 %v3774
    %3890 = vmatprep.subr.bf16.mxu0 %v3773
    %3891 = vmatpush2.bf16.msra.mxu0 %v3772
    %3892 = vmatprep.subr.bf16.mxu0 %v3771
    %3893 = vmatpush2.bf16.msra.mxu0 %v3770
    %3894 = vmatprep.subr.bf16.mxu0 %v3769
    %3895 = vmatpush2.bf16.msra.mxu0 %v3768
    %3896 = vmatprep.subr.bf16.mxu0 %v3767
    %3897 = vmatpush2.bf16.msra.mxu0 %v3766
    %3898 = vmatprep.subr.bf16.mxu0 %v3765
    %3899 = vmatpush2.bf16.msra.mxu0 %v3764
    %3900 = vmatprep.subr.bf16.mxu0 %v3763
    %3901 = vmatpush2.bf16.msra.mxu0 %v3762
    %3902 = vmatprep.subr.bf16.mxu0 %v3761
    %3903 = vmatpush2.bf16.msra.mxu0 %v3760
    %3904 = vmatprep.mubr.bf16.mxu0 %v2945
    %3905 = vmatmul.mubr.bf16.gmra.mxu0 %v2680
    %v3906 = vpop.f32.mrf.mxu0
    %v3907 = vadd.f32 %v3545, %v3906
    %v3908 = vpop.f32.mrf.mxu0
    %v3909 = vadd.f32 %v3549, %v3908
    %v3910 = vpop.f32.mrf.mxu0
    %v3911 = vpop.f32.mrf.mxu0
    %3912 = vdwg.mxu0
    %3913 = vmatprep.subr.bf16.mxu0 %v3791
    %3914 = vmatpush1.bf16.msra.mxu0 %v3790
    %3915 = vmatprep.subr.bf16.mxu0 %v3789
    %3916 = vmatpush1.bf16.msra.mxu0 %v3788
    %3917 = vmatprep.subr.bf16.mxu0 %v3787
    %3918 = vmatpush1.bf16.msra.mxu0 %v3786
    %3919 = vmatprep.subr.bf16.mxu0 %v3785
    %3920 = vmatpush1.bf16.msra.mxu0 %v3784
    %3921 = vmatprep.subr.bf16.mxu0 %v3783
    %3922 = vmatpush1.bf16.msra.mxu0 %v3782
    %3923 = vmatprep.subr.bf16.mxu0 %v3781
    %3924 = vmatpush1.bf16.msra.mxu0 %v3780
    %3925 = vmatprep.subr.bf16.mxu0 %v3779
    %3926 = vmatpush1.bf16.msra.mxu0 %v3778
    %3927 = vmatprep.subr.bf16.mxu0 %v3777
    %3928 = vmatpush1.bf16.msra.mxu0 %v3776
    %3929 = vmatprep.subr.bf16.mxu0 %v3807
    %3930 = vmatpush2.bf16.msra.mxu0 %v3806
    %3931 = vmatprep.subr.bf16.mxu0 %v3805
    %3932 = vmatpush2.bf16.msra.mxu0 %v3804
    %3933 = vmatprep.subr.bf16.mxu0 %v3803
    %3934 = vmatpush2.bf16.msra.mxu0 %v3802
    %3935 = vmatprep.subr.bf16.mxu0 %v3801
    %3936 = vmatpush2.bf16.msra.mxu0 %v3800
    %3937 = vmatprep.subr.bf16.mxu0 %v3799
    %3938 = vmatpush2.bf16.msra.mxu0 %v3798
    %3939 = vmatprep.subr.bf16.mxu0 %v3797
    %3940 = vmatpush2.bf16.msra.mxu0 %v3796
    %3941 = vmatprep.subr.bf16.mxu0 %v3795
    %3942 = vmatpush2.bf16.msra.mxu0 %v3794
    %3943 = vmatprep.subr.bf16.mxu0 %v3793
    %3944 = vmatpush2.bf16.msra.mxu0 %v3792
    %3945 = vmatprep.mubr.bf16.mxu0 %v3475
    %3946 = vmatmul.mubr.bf16.gmra.mxu0 %v3210
    %v3947 = vpop.f32.mrf.mxu0
    %v3948 = vadd.f32 %v3907, %v3947
    %v3949 = vpop.f32.mrf.mxu0
    %v3950 = vadd.f32 %v3909, %v3949
    %v3951 = vpop.f32.mrf.mxu0
    %v3952 = vpop.f32.mrf.mxu0
    %3953 = vdwg.mxu0
    %v3954 = vmax.f32 %v3948, 0.0
    %v3955 = vmax.f32 %v3950, 0.0
    %v3956 = vpack.c.bf16 %v3954, %v3954
    %v3957 = vpack.c.bf16 %v3955, %v3955
    %v3958 = vld [vmem:[%s7] sm:$0xf]
    %v3959 = vld [vmem:[%s7 + $0x4] sm:$0xf]
    %v3960 = vld [vmem:[%s7 + $0x8] sm:$0xf]
    %v3961 = vld [vmem:[%s7 + $0xc] sm:$0xf]
    %v3962 = vld [vmem:[%s7 + $0x10] sm:$0xf]
    %v3963 = vld [vmem:[%s7 + $0x14] sm:$0xf]
    %v3964 = vld [vmem:[%s7 + $0x18] sm:$0xf]
    %v3965 = vld [vmem:[%s7 + $0x1c] sm:$0xf]
    %v3966 = vld [vmem:[%s7 + $0x20] sm:$0xf]
    %v3967 = vld [vmem:[%s7 + $0x24] sm:$0xf]
    %v3968 = vld [vmem:[%s7 + $0x28] sm:$0xf]
    %v3969 = vld [vmem:[%s7 + $0x2c] sm:$0xf]
    %v3970 = vld [vmem:[%s7 + $0x30] sm:$0xf]
    %v3971 = vld [vmem:[%s7 + $0x34] sm:$0xf]
    %v3972 = vld [vmem:[%s7 + $0x38] sm:$0xf]
    %v3973 = vld [vmem:[%s7 + $0x3c] sm:$0xf]
    %v3974 = vld [vmem:[%s7 + $0x40] sm:$0xf]
    %v3975 = vld [vmem:[%s7 + $0x44] sm:$0xf]
    %v3976 = vld [vmem:[%s7 + $0x48] sm:$0xf]
    %v3977 = vld [vmem:[%s7 + $0x4c] sm:$0xf]
    %v3978 = vld [vmem:[%s7 + $0x50] sm:$0xf]
    %v3979 = vld [vmem:[%s7 + $0x54] sm:$0xf]
    %v3980 = vld [vmem:[%s7 + $0x58] sm:$0xf]
    %v3981 = vld [vmem:[%s7 + $0x5c] sm:$0xf]
    %v3982 = vld [vmem:[%s7 + $0x60] sm:$0xf]
    %v3983 = vld [vmem:[%s7 + $0x64] sm:$0xf]
    %v3984 = vld [vmem:[%s7 + $0x68] sm:$0xf]
    %v3985 = vld [vmem:[%s7 + $0x6c] sm:$0xf]
    %v3986 = vld [vmem:[%s7 + $0x70] sm:$0xf]
    %v3987 = vld [vmem:[%s7 + $0x74] sm:$0xf]
    %v3988 = vld [vmem:[%s7 + $0x78] sm:$0xf]
    %v3989 = vld [vmem:[%s7 + $0x7c] sm:$0xf]
    %v3990 = vld [vmem:[%s8] sm:$0x1]
    %v3992 = vlaneseq
    %v3993 = vshrl.u32 %v3992, 7
    %v3994 = vsub.s32 0, %v3993
    %v3995 = vrot.slane %v3990, %v3994
    %v4029 = vunpack.c.l.b16 %v3958
    %v4030 = vunpack.c.l.b16 %v3959
    %v4031 = vunpack.c.l.b16 %v3960
    %v4032 = vunpack.c.l.b16 %v3961
    %v4033 = vunpack.c.l.b16 %v3962
    %v4034 = vunpack.c.l.b16 %v3963
    %v4035 = vunpack.c.l.b16 %v3964
    %v4036 = vunpack.c.l.b16 %v3965
    %v4037 = vunpack.c.l.b16 %v3966
    %v4038 = vunpack.c.l.b16 %v3967
    %v4039 = vunpack.c.l.b16 %v3968
    %v4040 = vunpack.c.l.b16 %v3969
    %v4041 = vunpack.c.l.b16 %v3970
    %v4042 = vunpack.c.l.b16 %v3971
    %v4043 = vunpack.c.l.b16 %v3972
    %v4044 = vunpack.c.l.b16 %v3973
    %v4045 = vunpack.c.l.b16 %v3974
    %v4046 = vunpack.c.l.b16 %v3975
    %v4047 = vunpack.c.l.b16 %v3976
    %v4048 = vunpack.c.l.b16 %v3977
    %v4049 = vunpack.c.l.b16 %v3978
    %v4050 = vunpack.c.l.b16 %v3979
    %v4051 = vunpack.c.l.b16 %v3980
    %v4052 = vunpack.c.l.b16 %v3981
    %v4053 = vunpack.c.l.b16 %v3982
    %v4054 = vunpack.c.l.b16 %v3983
    %v4055 = vunpack.c.l.b16 %v3984
    %v4056 = vunpack.c.l.b16 %v3985
    %v4057 = vunpack.c.l.b16 %v3986
    %v4058 = vunpack.c.l.b16 %v3987
    %v4059 = vunpack.c.l.b16 %v3988
    %v4060 = vunpack.c.l.b16 %v3989
    %v4061 = vpack.c.b16 %v4030, %v4029
    %v4062 = vpack.c.b16 %v4032, %v4031
    %v4063 = vpack.c.b16 %v4034, %v4033
    %v4064 = vpack.c.b16 %v4036, %v4035
    %v4065 = vpack.c.b16 %v4038, %v4037
    %v4066 = vpack.c.b16 %v4040, %v4039
    %v4067 = vpack.c.b16 %v4042, %v4041
    %v4068 = vpack.c.b16 %v4044, %v4043
    %v4069 = vpack.c.b16 %v4046, %v4045
    %v4070 = vpack.c.b16 %v4048, %v4047
    %v4071 = vpack.c.b16 %v4050, %v4049
    %v4072 = vpack.c.b16 %v4052, %v4051
    %v4073 = vpack.c.b16 %v4054, %v4053
    %v4074 = vpack.c.b16 %v4056, %v4055
    %v4075 = vpack.c.b16 %v4058, %v4057
    %v4076 = vpack.c.b16 %v4060, %v4059
    %4093 = vmatprep.subr.bf16.mxu0 0
    %4094 = vmatpush1.bf16.msra.mxu0 %v4068
    %4095 = vmatprep.subr.bf16.mxu0 0
    %4096 = vmatpush1.bf16.msra.mxu0 %v4067
    %4097 = vmatprep.subr.bf16.mxu0 0
    %4098 = vmatpush1.bf16.msra.mxu0 %v4066
    %4099 = vmatprep.subr.bf16.mxu0 0
    %4100 = vmatpush1.bf16.msra.mxu0 %v4065
    %4101 = vmatprep.subr.bf16.mxu0 0
    %4102 = vmatpush1.bf16.msra.mxu0 %v4064
    %4103 = vmatprep.subr.bf16.mxu0 0
    %4104 = vmatpush1.bf16.msra.mxu0 %v4063
    %4105 = vmatprep.subr.bf16.mxu0 0
    %4106 = vmatpush1.bf16.msra.mxu0 %v4062
    %4107 = vmatprep.subr.bf16.mxu0 0
    %4108 = vmatpush1.bf16.msra.mxu0 %v4061
    %4109 = vmatprep.subr.bf16.mxu0 0
    %4110 = vmatpush2.bf16.msra.mxu0 %v4076
    %4111 = vmatprep.subr.bf16.mxu0 0
    %4112 = vmatpush2.bf16.msra.mxu0 %v4075
    %4113 = vmatprep.subr.bf16.mxu0 0
    %4114 = vmatpush2.bf16.msra.mxu0 %v4074
    %4115 = vmatprep.subr.bf16.mxu0 0
    %4116 = vmatpush2.bf16.msra.mxu0 %v4073
    %4117 = vmatprep.subr.bf16.mxu0 0
    %4118 = vmatpush2.bf16.msra.mxu0 %v4072
    %4119 = vmatprep.subr.bf16.mxu0 0
    %4120 = vmatpush2.bf16.msra.mxu0 %v4071
    %4121 = vmatprep.subr.bf16.mxu0 0
    %4122 = vmatpush2.bf16.msra.mxu0 %v4070
    %4123 = vmatprep.subr.bf16.mxu0 0
    %4124 = vmatpush2.bf16.msra.mxu0 %v4069
    %4125 = vmatprep.mubr.bf16.mxu0 %v3957
    %4126 = vmatmul.mubr.bf16.gmra.mxu0 %v3956
    %v4127 = vpop.f32.mrf.mxu0
    %v4128 = vadd.f32 %v3995, %v4127
    %v4129 = vpop.f32.mrf.mxu0
    %v4130 = vpop.f32.mrf.mxu0
    %v4131 = vpop.f32.mrf.mxu0
    %4132 = vdwg.mxu0
    %4133 = vmax.xlane.f32.xlu0 %v4128
    %v4134 = vpop.xlane.xlu0 %4133
    %v4135 = vsub.f32 %v4128, %v4134
    %v4136 = vmul.f32 %v4135, 1.442695
    %v4137 = vpow.pop %v4136
    %4138 = vadd.xlane.f32.xlu0 %v4137
    %v4139 = vpop.xlane.xlu0 %4138
    %v4140 = vlog2.pop %v4139
    %v4141 = vmul.f32 %v4140, 0.6931472
    %v4142 = vadd.f32 %v4141, %v4134
    %v4143 = vsub.f32 %v4128, %v4142
    %4144 = vst [vmem:[%s9] sm:$0xff] %v4143
    // Predicated region
    $region46: #{net_forward.1} parent=1 // pred_check
      _
    $region47: #{net_forward.1} parent=1 // pred_check_branch
      %4146 = sbr.rel (0) target = $region49
    $region48: #{net_forward.1} parent=1 // pred_region
      _
    $region49: #{net_forward.1} parent=1 // pred_fallthru
      _
    // Predicated region
    $region50: #{net_forward.1} parent=1 // pred_check
      _
    $region51: #{net_forward.1} parent=1 // pred_check_branch
      %4148 = sbr.rel (0) target = $region53
    $region52: #{net_forward.1} parent=1 // pred_region
      _
    $region53: #{net_forward.1} parent=1 // pred_fallthru
      _
    %4149 = vsyncpa [#allocation4], 1
    %4150 = vsyncpa [#allocation6], 1

</llo_original>
